<compile_context>
chip_gen: v6e
topology: v6e:2x2x1
jax: 0.10.0
libtpu: 0.0.40
codegen_flags: <defaults>
</compile_context>

<pallas_src>
import functools

import jax
import jax.numpy as jnp
from jax.experimental import pallas as pl
from jax.experimental.pallas import tpu as pltpu

BN_EPS = 1e-5


# ----------------------------- Pallas kernels ------------------------------

def _matmul_bn_relu_kernel(w_ref, x_ref, g_ref, b_ref, o_ref, *, inv_m):
    # y = W @ X : (C_out, K) @ (K, M) -> (C_out, M); M lane-dense; f32 accumulation.
    y = jnp.dot(w_ref[...], x_ref[...], preferred_element_type=jnp.float32)
    # Single-pass training-mode BatchNorm over the M = B*Ho*Wo axis.
    # Zero-padded M columns contribute 0 to both sums; inv_m = 1/true_M keeps stats exact.
    s1 = jnp.sum(y, axis=1, keepdims=True)
    s2 = jnp.sum(y * y, axis=1, keepdims=True)
    mean = s1 * inv_m
    var = jnp.maximum(s2 * inv_m - mean * mean, 0.0)      # biased variance
    scale = g_ref[...] * jax.lax.rsqrt(var + BN_EPS)      # rsqrt -> EUP slot
    shift = b_ref[...] - mean * scale
    o_ref[...] = jnp.maximum(y * scale + shift, 0.0)


def _matmul_relu_kernel(w_ref, x_ref, o_ref):
    y = jnp.dot(w_ref[...], x_ref[...], preferred_element_type=jnp.float32)
    o_ref[...] = jnp.maximum(y, 0.0)


def matmul_bn_relu(w_mat, cols, gamma, beta, m_true):
    c_out_pad, _ = w_mat.shape
    m_pad = cols.shape[1]
    return pl.pallas_call(
        functools.partial(_matmul_bn_relu_kernel, inv_m=1.0 / float(m_true)),
        out_shape=jax.ShapeDtypeStruct((c_out_pad, m_pad), jnp.float32),
        in_specs=[pl.BlockSpec(memory_space=pltpu.MemorySpace.VMEM)] * 4,
        out_specs=pl.BlockSpec(memory_space=pltpu.MemorySpace.VMEM),
    )(w_mat, cols, gamma, beta)


def matmul_relu(w_mat, cols):
    c_out_pad, _ = w_mat.shape
    m_pad = cols.shape[1]
    return pl.pallas_call(
        _matmul_relu_kernel,
        out_shape=jax.ShapeDtypeStruct((c_out_pad, m_pad), jnp.float32),
        in_specs=[pl.BlockSpec(memory_space=pltpu.MemorySpace.VMEM)] * 2,
        out_specs=pl.BlockSpec(memory_space=pltpu.MemorySpace.VMEM),
    )(w_mat, cols)


# ------------------------------- JAX glue ----------------------------------

def _pad_axis(a, axis, amount):
    if amount == 0:
        return a
    widths = [(0, 0)] * a.ndim
    widths[axis] = (0, amount)
    return jnp.pad(a, widths)


def _dilate_and_pad(x, sh, sw, ph_eff, pw_eff):
    """Zero-insert (s-1) between pixels, pad (k-1-p) per side.  x layout (C, B, H, W)."""
    C, B, H, W = x.shape
    if sh == 1 and sw == 1:
        xd = x
    else:
        Hd, Wd = (H - 1) * sh + 1, (W - 1) * sw + 1
        xd = jnp.zeros((C, B, Hd, Wd), x.dtype).at[:, :, ::sh, ::sw].set(x)
    return jnp.pad(xd, ((0, 0), (0, 0), (ph_eff, ph_eff), (pw_eff, pw_eff)))


def _im2col_T(xp, kh, kw):
    """(C, B, Hp, Wp) -> (C*kh*kw, B*Ho*Wo); K ordered (c, ki, kj), M ordered (b, i, j)."""
    C, B, Hp, Wp = xp.shape
    Ho, Wo = Hp - kh + 1, Wp - kw + 1
    shifts = [xp[:, :, i:i + Ho, j:j + Wo] for i in range(kh) for j in range(kw)]
    p = jnp.stack(shifts, axis=1)                       # (C, kh*kw, B, Ho, Wo)
    return p.reshape(C * kh * kw, B * Ho * Wo), Ho, Wo


def conv_transpose_block(x, w_mat, gamma, beta, kh, kw, sh, sw, ph, pw, c_out, with_bn):
    """ConvTranspose2d(bias=False) [+ BatchNorm2d train-mode] + ReLU.  x: (C_in,B,H,W)."""
    B = x.shape[1]
    k_pad = w_mat.shape[1]
    xp = _dilate_and_pad(x, sh, sw, kh - 1 - ph, kw - 1 - pw)
    cols, Ho, Wo = _im2col_T(xp, kh, kw)
    M = B * Ho * Wo
    cols = cols.astype(jnp.bfloat16)                    # bf16 MXU operands
    cols = _pad_axis(cols, 0, k_pad - cols.shape[0])    # K  -> multiple of 128
    cols = _pad_axis(cols, 1, (-M) % 128)               # M  -> lane-dense multiple of 128
    if with_bn:
        y = matmul_bn_relu(w_mat, cols, gamma, beta, M)
    else:
        y = matmul_relu(w_mat, cols)
    return y[:c_out, :M].reshape(c_out, B, Ho, Wo)      # drop padding, back to (C,B,H,W)


# ------------------------------ parameters ----------------------------------

_LAYER_GEOM = (
    # ((kh, kw), (sh, sw), (ph, pw), with_bn)
    ((4, 4), (1, 1), (0, 0), True),
    ((3, 4), (2, 2), (1, 1), True),
    ((4, 4), (1, 2), (1, 1), True),
    ((4, 4), (1, 2), (1, 1), True),
    ((4, 4), (1, 2), (1, 1), True),
    ((3, 9), (1, 1), (1, 0), False),
)


def make_params(key, nz, ngf, nc):
    chans = ((nz, ngf * 8), (ngf * 8, ngf * 16), (ngf * 16, ngf * 8),
             (ngf * 8, ngf * 4), (ngf * 4, ngf * 2), (ngf * 2, nc))
    params, cfg = [], []
    for (cin, cout), ((kh, kw), (sh, sw), (ph, pw), bn) in zip(chans, _LAYER_GEOM):
        key, wk = jax.random.split(key)
        # PyTorch ConvTranspose2d weight layout (C_in, C_out, kh, kw); DCGAN-style init.
        w_t = 0.02 * jax.random.normal(wk, (cin, cout, kh, kw), jnp.float32)
        # Equivalent forward-conv weight matrix: flip spatially, swap channel axes.
        w_mat = jnp.flip(w_t, (2, 3)).transpose(1, 0, 2, 3).reshape(cout, cin * kh * kw)
        w_mat = _pad_axis(w_mat, 0, (-cout) % 8)                 # sublane-friendly C_out
        w_mat = _pad_axis(w_mat, 1, (-w_mat.shape[1]) % 128)     # K multiple of 128
        w_mat = w_mat.astype(jnp.bfloat16)
        cpad = w_mat.shape[0]
        if bn:   # PyTorch BatchNorm2d default init: gamma=1, beta=0
            gamma = jnp.ones((cpad, 1), jnp.float32)
            beta = jnp.zeros((cpad, 1), jnp.float32)
        else:
            gamma = beta = None
        params.append(dict(w=w_mat, gamma=gamma, beta=beta))
        cfg.append((kh, kw, sh, sw, ph, pw, cout, bn))
    return params, tuple(cfg)


# -------------------------------- forward -----------------------------------

@functools.partial(jax.jit, static_argnums=(2,))
def generator2_forward(x, params, cfg):
    out = jnp.transpose(x, (1, 0, 2, 3))                # NCHW -> (C, B, H, W)
    for lp, (kh, kw, sh, sw, ph, pw, c_out, bn) in zip(params, cfg):
        out = conv_transpose_block(out, lp["w"], lp["gamma"], lp["beta"],
                                   kh, kw, sh, sw, ph, pw, c_out, bn)
    out = jnp.transpose(out, (1, 0, 2, 3))              # (nc, B, 10, 72) -> (B, nc, 10, 72)
    return out.reshape(-1, 1, 10, 72)                   # matches PyTorch .view(-1,1,10,72)


# --------------------------------- main --------------------------------------

if __name__ == "__main__":
    nz, ngf, nc, batch = 8, 4, 1, 2
    key = jax.random.PRNGKey(0)
    key, xk = jax.random.split(key)
    x = jax.random.normal(xk, (batch, nz, 1, 1), jnp.float32)   # latent, NCHW

    params, cfg = make_params(key, nz, ngf, nc)
    out = generator2_forward(x, params, cfg)
    out = jax.block_until_ready(out)

    assert out.shape == (batch * nc, 1, 10, 72), out.shape
    assert bool(jnp.all(jnp.isfinite(out))) and bool(jnp.all(out >= 0.0))
    print("KERNEL_OK")
</pallas_src>

<mosaic_0001>
module attributes {stable_mosaic.version = 11 : i64} {
  func.func @_matmul_bn_relu_kernel(%arg0: memref<32x128xbf16, #tpu.memory_space<vmem>>, %arg1: memref<128x128xbf16, #tpu.memory_space<vmem>>, %arg2: memref<32x1xf32, #tpu.memory_space<vmem>>, %arg3: memref<32x1xf32, #tpu.memory_space<vmem>>, %arg4: memref<32x128xf32, #tpu.memory_space<vmem>>) attributes {dimension_semantics = [], scalar_prefetch = 0 : i64, scratch_operands = 0 : i64, tpu.core_type = #tpu.core_type<tc>} {
    %c0 = arith.constant 0 : index
    %c0_0 = arith.constant 0 : index
    %0 = vector.load %arg0[%c0, %c0_0] : memref<32x128xbf16, #tpu.memory_space<vmem>>, vector<32x128xbf16>
    %c0_1 = arith.constant 0 : index
    %c0_2 = arith.constant 0 : index
    %1 = vector.load %arg1[%c0_1, %c0_2] : memref<128x128xbf16, #tpu.memory_space<vmem>>, vector<128x128xbf16>
    %cst = arith.constant dense<0.000000e+00> : vector<32x128xf32>
    %2 = tpu.matmul %0, %1, %cst {dimension_numbers = #tpu.dot_dimension_numbers<[1], [0], [0], [1], [0, 0, 1, 1], [], []>} : vector<32x128xbf16>, vector<128x128xbf16>, vector<32x128xf32> -> vector<32x128xf32>
    %cst_3 = arith.constant dense<0.000000e+00> : vector<32xf32>
    %3 = vector.multi_reduction <add>, %2, %cst_3 [1] : vector<32x128xf32> to vector<32xf32>
    %4 = vector.shape_cast %3 : vector<32xf32> to vector<32x1xf32>
    %5 = arith.mulf %2, %2 : vector<32x128xf32>
    %cst_4 = arith.constant dense<0.000000e+00> : vector<32xf32>
    %6 = vector.multi_reduction <add>, %5, %cst_4 [1] : vector<32x128xf32> to vector<32xf32>
    %7 = vector.shape_cast %6 : vector<32xf32> to vector<32x1xf32>
    %cst_5 = arith.constant 3.125000e-02 : f32
    %8 = vector.broadcast %cst_5 : f32 to vector<32x1xf32>
    %9 = arith.mulf %4, %8 : vector<32x1xf32>
    %cst_6 = arith.constant 3.125000e-02 : f32
    %10 = vector.broadcast %cst_6 : f32 to vector<32x1xf32>
    %11 = arith.mulf %7, %10 : vector<32x1xf32>
    %12 = arith.mulf %9, %9 : vector<32x1xf32>
    %13 = arith.subf %11, %12 : vector<32x1xf32>
    %cst_7 = arith.constant 0.000000e+00 : f32
    %14 = vector.broadcast %cst_7 : f32 to vector<32x1xf32>
    %15 = arith.maximumf %13, %14 : vector<32x1xf32>
    %c0_8 = arith.constant 0 : index
    %c0_9 = arith.constant 0 : index
    %16 = vector.load %arg2[%c0_8, %c0_9] : memref<32x1xf32, #tpu.memory_space<vmem>>, vector<32x1xf32>
    %cst_10 = arith.constant 9.99999974E-6 : f32
    %17 = vector.broadcast %cst_10 : f32 to vector<32x1xf32>
    %18 = arith.addf %15, %17 : vector<32x1xf32>
    %19 = math.rsqrt %18 : vector<32x1xf32>
    %20 = arith.mulf %16, %19 : vector<32x1xf32>
    %c0_11 = arith.constant 0 : index
    %c0_12 = arith.constant 0 : index
    %21 = vector.load %arg3[%c0_11, %c0_12] : memref<32x1xf32, #tpu.memory_space<vmem>>, vector<32x1xf32>
    %22 = arith.mulf %9, %20 : vector<32x1xf32>
    %23 = arith.subf %21, %22 : vector<32x1xf32>
    %24 = vector.broadcast %20 : vector<32x1xf32> to vector<32x128xf32>
    %25 = arith.mulf %2, %24 : vector<32x128xf32>
    %26 = vector.broadcast %23 : vector<32x1xf32> to vector<32x128xf32>
    %27 = arith.addf %25, %26 : vector<32x128xf32>
    %cst_13 = arith.constant 0.000000e+00 : f32
    %28 = vector.broadcast %cst_13 : f32 to vector<32x128xf32>
    %29 = arith.maximumf %27, %28 : vector<32x128xf32>
    %c0_14 = arith.constant 0 : index
    %c0_15 = arith.constant 0 : index
    %30 = vector.load %arg4[%c0_14, %c0_15] : memref<32x128xf32, #tpu.memory_space<vmem>>, vector<32x128xf32>
    tpu.vector_store %arg4[%c0_14, %c0_15], %29 {strides = array<i32>} : memref<32x128xf32, #tpu.memory_space<vmem>>, vector<32x128xf32>,
    return
  }
}

module attributes {stable_mosaic.version = 11 : i64} {
  func.func @_matmul_bn_relu_kernel(%arg0: memref<64x384xbf16, #tpu.memory_space<vmem>>, %arg1: memref<384x128xbf16, #tpu.memory_space<vmem>>, %arg2: memref<64x1xf32, #tpu.memory_space<vmem>>, %arg3: memref<64x1xf32, #tpu.memory_space<vmem>>, %arg4: memref<64x128xf32, #tpu.memory_space<vmem>>) attributes {dimension_semantics = [], scalar_prefetch = 0 : i64, scratch_operands = 0 : i64, tpu.core_type = #tpu.core_type<tc>} {
    %c0 = arith.constant 0 : index
    %c0_0 = arith.constant 0 : index
    %0 = vector.load %arg0[%c0, %c0_0] : memref<64x384xbf16, #tpu.memory_space<vmem>>, vector<64x384xbf16>
    %c0_1 = arith.constant 0 : index
    %c0_2 = arith.constant 0 : index
    %1 = vector.load %arg1[%c0_1, %c0_2] : memref<384x128xbf16, #tpu.memory_space<vmem>>, vector<384x128xbf16>
    %cst = arith.constant dense<0.000000e+00> : vector<64x128xf32>
    %2 = tpu.matmul %0, %1, %cst {dimension_numbers = #tpu.dot_dimension_numbers<[1], [0], [0], [1], [0, 0, 1, 1], [], []>} : vector<64x384xbf16>, vector<384x128xbf16>, vector<64x128xf32> -> vector<64x128xf32>
    %cst_3 = arith.constant dense<0.000000e+00> : vector<64xf32>
    %3 = vector.multi_reduction <add>, %2, %cst_3 [1] : vector<64x128xf32> to vector<64xf32>
    %4 = vector.shape_cast %3 : vector<64xf32> to vector<64x1xf32>
    %5 = arith.mulf %2, %2 : vector<64x128xf32>
    %cst_4 = arith.constant dense<0.000000e+00> : vector<64xf32>
    %6 = vector.multi_reduction <add>, %5, %cst_4 [1] : vector<64x128xf32> to vector<64xf32>
    %7 = vector.shape_cast %6 : vector<64xf32> to vector<64x1xf32>
    %cst_5 = arith.constant 0.00892857183 : f32
    %8 = vector.broadcast %cst_5 : f32 to vector<64x1xf32>
    %9 = arith.mulf %4, %8 : vector<64x1xf32>
    %cst_6 = arith.constant 0.00892857183 : f32
    %10 = vector.broadcast %cst_6 : f32 to vector<64x1xf32>
    %11 = arith.mulf %7, %10 : vector<64x1xf32>
    %12 = arith.mulf %9, %9 : vector<64x1xf32>
    %13 = arith.subf %11, %12 : vector<64x1xf32>
    %cst_7 = arith.constant 0.000000e+00 : f32
    %14 = vector.broadcast %cst_7 : f32 to vector<64x1xf32>
    %15 = arith.maximumf %13, %14 : vector<64x1xf32>
    %c0_8 = arith.constant 0 : index
    %c0_9 = arith.constant 0 : index
    %16 = vector.load %arg2[%c0_8, %c0_9] : memref<64x1xf32, #tpu.memory_space<vmem>>, vector<64x1xf32>
    %cst_10 = arith.constant 9.99999974E-6 : f32
    %17 = vector.broadcast %cst_10 : f32 to vector<64x1xf32>
    %18 = arith.addf %15, %17 : vector<64x1xf32>
    %19 = math.rsqrt %18 : vector<64x1xf32>
    %20 = arith.mulf %16, %19 : vector<64x1xf32>
    %c0_11 = arith.constant 0 : index
    %c0_12 = arith.constant 0 : index
    %21 = vector.load %arg3[%c0_11, %c0_12] : memref<64x1xf32, #tpu.memory_space<vmem>>, vector<64x1xf32>
    %22 = arith.mulf %9, %20 : vector<64x1xf32>
    %23 = arith.subf %21, %22 : vector<64x1xf32>
    %24 = vector.broadcast %20 : vector<64x1xf32> to vector<64x128xf32>
    %25 = arith.mulf %2, %24 : vector<64x128xf32>
    %26 = vector.broadcast %23 : vector<64x1xf32> to vector<64x128xf32>
    %27 = arith.addf %25, %26 : vector<64x128xf32>
    %cst_13 = arith.constant 0.000000e+00 : f32
    %28 = vector.broadcast %cst_13 : f32 to vector<64x128xf32>
    %29 = arith.maximumf %27, %28 : vector<64x128xf32>
    %c0_14 = arith.constant 0 : index
    %c0_15 = arith.constant 0 : index
    %30 = vector.load %arg4[%c0_14, %c0_15] : memref<64x128xf32, #tpu.memory_space<vmem>>, vector<64x128xf32>
    tpu.vector_store %arg4[%c0_14, %c0_15], %29 {strides = array<i32>} : memref<64x128xf32, #tpu.memory_space<vmem>>, vector<64x128xf32>,
    return
  }
}

module attributes {stable_mosaic.version = 11 : i64} {
  func.func @_matmul_bn_relu_kernel(%arg0: memref<32x1024xbf16, #tpu.memory_space<vmem>>, %arg1: memref<1024x256xbf16, #tpu.memory_space<vmem>>, %arg2: memref<32x1xf32, #tpu.memory_space<vmem>>, %arg3: memref<32x1xf32, #tpu.memory_space<vmem>>, %arg4: memref<32x256xf32, #tpu.memory_space<vmem>>) attributes {dimension_semantics = [], scalar_prefetch = 0 : i64, scratch_operands = 0 : i64, tpu.core_type = #tpu.core_type<tc>} {
    %c0 = arith.constant 0 : index
    %c0_0 = arith.constant 0 : index
    %0 = vector.load %arg0[%c0, %c0_0] : memref<32x1024xbf16, #tpu.memory_space<vmem>>, vector<32x1024xbf16>
    %c0_1 = arith.constant 0 : index
    %c0_2 = arith.constant 0 : index
    %1 = vector.load %arg1[%c0_1, %c0_2] : memref<1024x256xbf16, #tpu.memory_space<vmem>>, vector<1024x256xbf16>
    %cst = arith.constant dense<0.000000e+00> : vector<32x256xf32>
    %2 = tpu.matmul %0, %1, %cst {dimension_numbers = #tpu.dot_dimension_numbers<[1], [0], [0], [1], [0, 0, 1, 1], [], []>} : vector<32x1024xbf16>, vector<1024x256xbf16>, vector<32x256xf32> -> vector<32x256xf32>
    %cst_3 = arith.constant dense<0.000000e+00> : vector<32xf32>
    %3 = vector.multi_reduction <add>, %2, %cst_3 [1] : vector<32x256xf32> to vector<32xf32>
    %4 = vector.shape_cast %3 : vector<32xf32> to vector<32x1xf32>
    %5 = arith.mulf %2, %2 : vector<32x256xf32>
    %cst_4 = arith.constant dense<0.000000e+00> : vector<32xf32>
    %6 = vector.multi_reduction <add>, %5, %cst_4 [1] : vector<32x256xf32> to vector<32xf32>
    %7 = vector.shape_cast %6 : vector<32xf32> to vector<32x1xf32>
    %cst_5 = arith.constant 3.906250e-03 : f32
    %8 = vector.broadcast %cst_5 : f32 to vector<32x1xf32>
    %9 = arith.mulf %4, %8 : vector<32x1xf32>
    %cst_6 = arith.constant 3.906250e-03 : f32
    %10 = vector.broadcast %cst_6 : f32 to vector<32x1xf32>
    %11 = arith.mulf %7, %10 : vector<32x1xf32>
    %12 = arith.mulf %9, %9 : vector<32x1xf32>
    %13 = arith.subf %11, %12 : vector<32x1xf32>
    %cst_7 = arith.constant 0.000000e+00 : f32
    %14 = vector.broadcast %cst_7 : f32 to vector<32x1xf32>
    %15 = arith.maximumf %13, %14 : vector<32x1xf32>
    %c0_8 = arith.constant 0 : index
    %c0_9 = arith.constant 0 : index
    %16 = vector.load %arg2[%c0_8, %c0_9] : memref<32x1xf32, #tpu.memory_space<vmem>>, vector<32x1xf32>
    %cst_10 = arith.constant 9.99999974E-6 : f32
    %17 = vector.broadcast %cst_10 : f32 to vector<32x1xf32>
    %18 = arith.addf %15, %17 : vector<32x1xf32>
    %19 = math.rsqrt %18 : vector<32x1xf32>
    %20 = arith.mulf %16, %19 : vector<32x1xf32>
    %c0_11 = arith.constant 0 : index
    %c0_12 = arith.constant 0 : index
    %21 = vector.load %arg3[%c0_11, %c0_12] : memref<32x1xf32, #tpu.memory_space<vmem>>, vector<32x1xf32>
    %22 = arith.mulf %9, %20 : vector<32x1xf32>
    %23 = arith.subf %21, %22 : vector<32x1xf32>
    %24 = vector.broadcast %20 : vector<32x1xf32> to vector<32x256xf32>
    %25 = arith.mulf %2, %24 : vector<32x256xf32>
    %26 = vector.broadcast %23 : vector<32x1xf32> to vector<32x256xf32>
    %27 = arith.addf %25, %26 : vector<32x256xf32>
    %cst_13 = arith.constant 0.000000e+00 : f32
    %28 = vector.broadcast %cst_13 : f32 to vector<32x256xf32>
    %29 = arith.maximumf %27, %28 : vector<32x256xf32>
    %c0_14 = arith.constant 0 : index
    %c0_15 = arith.constant 0 : index
    %30 = vector.load %arg4[%c0_14, %c0_15] : memref<32x256xf32, #tpu.memory_space<vmem>>, vector<32x256xf32>
    tpu.vector_store %arg4[%c0_14, %c0_15], %29 {strides = array<i32>} : memref<32x256xf32, #tpu.memory_space<vmem>>, vector<32x256xf32>,
    return
  }
}

module attributes {stable_mosaic.version = 11 : i64} {
  func.func @_matmul_bn_relu_kernel(%arg0: memref<16x512xbf16, #tpu.memory_space<vmem>>, %arg1: memref<512x640xbf16, #tpu.memory_space<vmem>>, %arg2: memref<16x1xf32, #tpu.memory_space<vmem>>, %arg3: memref<16x1xf32, #tpu.memory_space<vmem>>, %arg4: memref<16x640xf32, #tpu.memory_space<vmem>>) attributes {dimension_semantics = [], scalar_prefetch = 0 : i64, scratch_operands = 0 : i64, tpu.core_type = #tpu.core_type<tc>} {
    %c0 = arith.constant 0 : index
    %c0_0 = arith.constant 0 : index
    %0 = vector.load %arg0[%c0, %c0_0] : memref<16x512xbf16, #tpu.memory_space<vmem>>, vector<16x512xbf16>
    %c0_1 = arith.constant 0 : index
    %c0_2 = arith.constant 0 : index
    %1 = vector.load %arg1[%c0_1, %c0_2] : memref<512x640xbf16, #tpu.memory_space<vmem>>, vector<512x640xbf16>
    %cst = arith.constant dense<0.000000e+00> : vector<16x640xf32>
    %2 = tpu.matmul %0, %1, %cst {dimension_numbers = #tpu.dot_dimension_numbers<[1], [0], [0], [1], [0, 0, 1, 1], [], []>} : vector<16x512xbf16>, vector<512x640xbf16>, vector<16x640xf32> -> vector<16x640xf32>
    %cst_3 = arith.constant dense<0.000000e+00> : vector<16xf32>
    %3 = vector.multi_reduction <add>, %2, %cst_3 [1] : vector<16x640xf32> to vector<16xf32>
    %4 = vector.shape_cast %3 : vector<16xf32> to vector<16x1xf32>
    %5 = arith.mulf %2, %2 : vector<16x640xf32>
    %cst_4 = arith.constant dense<0.000000e+00> : vector<16xf32>
    %6 = vector.multi_reduction <add>, %5, %cst_4 [1] : vector<16x640xf32> to vector<16xf32>
    %7 = vector.shape_cast %6 : vector<16xf32> to vector<16x1xf32>
    %cst_5 = arith.constant 0.00173611112 : f32
    %8 = vector.broadcast %cst_5 : f32 to vector<16x1xf32>
    %9 = arith.mulf %4, %8 : vector<16x1xf32>
    %cst_6 = arith.constant 0.00173611112 : f32
    %10 = vector.broadcast %cst_6 : f32 to vector<16x1xf32>
    %11 = arith.mulf %7, %10 : vector<16x1xf32>
    %12 = arith.mulf %9, %9 : vector<16x1xf32>
    %13 = arith.subf %11, %12 : vector<16x1xf32>
    %cst_7 = arith.constant 0.000000e+00 : f32
    %14 = vector.broadcast %cst_7 : f32 to vector<16x1xf32>
    %15 = arith.maximumf %13, %14 : vector<16x1xf32>
    %c0_8 = arith.constant 0 : index
    %c0_9 = arith.constant 0 : index
    %16 = vector.load %arg2[%c0_8, %c0_9] : memref<16x1xf32, #tpu.memory_space<vmem>>, vector<16x1xf32>
    %cst_10 = arith.constant 9.99999974E-6 : f32
    %17 = vector.broadcast %cst_10 : f32 to vector<16x1xf32>
    %18 = arith.addf %15, %17 : vector<16x1xf32>
    %19 = math.rsqrt %18 : vector<16x1xf32>
    %20 = arith.mulf %16, %19 : vector<16x1xf32>
    %c0_11 = arith.constant 0 : index
    %c0_12 = arith.constant 0 : index
    %21 = vector.load %arg3[%c0_11, %c0_12] : memref<16x1xf32, #tpu.memory_space<vmem>>, vector<16x1xf32>
    %22 = arith.mulf %9, %20 : vector<16x1xf32>
    %23 = arith.subf %21, %22 : vector<16x1xf32>
    %24 = vector.broadcast %20 : vector<16x1xf32> to vector<16x640xf32>
    %25 = arith.mulf %2, %24 : vector<16x640xf32>
    %26 = vector.broadcast %23 : vector<16x1xf32> to vector<16x640xf32>
    %27 = arith.addf %25, %26 : vector<16x640xf32>
    %cst_13 = arith.constant 0.000000e+00 : f32
    %28 = vector.broadcast %cst_13 : f32 to vector<16x640xf32>
    %29 = arith.maximumf %27, %28 : vector<16x640xf32>
    %c0_14 = arith.constant 0 : index
    %c0_15 = arith.constant 0 : index
    %30 = vector.load %arg4[%c0_14, %c0_15] : memref<16x640xf32, #tpu.memory_space<vmem>>, vector<16x640xf32>
    tpu.vector_store %arg4[%c0_14, %c0_15], %29 {strides = array<i32>} : memref<16x640xf32, #tpu.memory_space<vmem>>, vector<16x640xf32>,
    return
  }
}

module attributes {stable_mosaic.version = 11 : i64} {
  func.func @_matmul_bn_relu_kernel(%arg0: memref<8x256xbf16, #tpu.memory_space<vmem>>, %arg1: memref<256x1280xbf16, #tpu.memory_space<vmem>>, %arg2: memref<8x1xf32, #tpu.memory_space<vmem>>, %arg3: memref<8x1xf32, #tpu.memory_space<vmem>>, %arg4: memref<8x1280xf32, #tpu.memory_space<vmem>>) attributes {dimension_semantics = [], scalar_prefetch = 0 : i64, scratch_operands = 0 : i64, tpu.core_type = #tpu.core_type<tc>} {
    %c0 = arith.constant 0 : index
    %c0_0 = arith.constant 0 : index
    %0 = vector.load %arg0[%c0, %c0_0] : memref<8x256xbf16, #tpu.memory_space<vmem>>, vector<8x256xbf16>
    %c0_1 = arith.constant 0 : index
    %c0_2 = arith.constant 0 : index
    %1 = vector.load %arg1[%c0_1, %c0_2] : memref<256x1280xbf16, #tpu.memory_space<vmem>>, vector<256x1280xbf16>
    %cst = arith.constant dense<0.000000e+00> : vector<8x1280xf32>
    %2 = tpu.matmul %0, %1, %cst {dimension_numbers = #tpu.dot_dimension_numbers<[1], [0], [0], [1], [0, 0, 1, 1], [], []>} : vector<8x256xbf16>, vector<256x1280xbf16>, vector<8x1280xf32> -> vector<8x1280xf32>
    %cst_3 = arith.constant dense<0.000000e+00> : vector<8xf32>
    %3 = vector.multi_reduction <add>, %2, %cst_3 [1] : vector<8x1280xf32> to vector<8xf32>
    %4 = vector.shape_cast %3 : vector<8xf32> to vector<8x1xf32>
    %5 = arith.mulf %2, %2 : vector<8x1280xf32>
    %cst_4 = arith.constant dense<0.000000e+00> : vector<8xf32>
    %6 = vector.multi_reduction <add>, %5, %cst_4 [1] : vector<8x1280xf32> to vector<8xf32>
    %7 = vector.shape_cast %6 : vector<8xf32> to vector<8x1xf32>
    %cst_5 = arith.constant 7.812500e-04 : f32
    %8 = vector.broadcast %cst_5 : f32 to vector<8x1xf32>
    %9 = arith.mulf %4, %8 : vector<8x1xf32>
    %cst_6 = arith.constant 7.812500e-04 : f32
    %10 = vector.broadcast %cst_6 : f32 to vector<8x1xf32>
    %11 = arith.mulf %7, %10 : vector<8x1xf32>
    %12 = arith.mulf %9, %9 : vector<8x1xf32>
    %13 = arith.subf %11, %12 : vector<8x1xf32>
    %cst_7 = arith.constant 0.000000e+00 : f32
    %14 = vector.broadcast %cst_7 : f32 to vector<8x1xf32>
    %15 = arith.maximumf %13, %14 : vector<8x1xf32>
    %c0_8 = arith.constant 0 : index
    %c0_9 = arith.constant 0 : index
    %16 = vector.load %arg2[%c0_8, %c0_9] : memref<8x1xf32, #tpu.memory_space<vmem>>, vector<8x1xf32>
    %cst_10 = arith.constant 9.99999974E-6 : f32
    %17 = vector.broadcast %cst_10 : f32 to vector<8x1xf32>
    %18 = arith.addf %15, %17 : vector<8x1xf32>
    %19 = math.rsqrt %18 : vector<8x1xf32>
    %20 = arith.mulf %16, %19 : vector<8x1xf32>
    %c0_11 = arith.constant 0 : index
    %c0_12 = arith.constant 0 : index
    %21 = vector.load %arg3[%c0_11, %c0_12] : memref<8x1xf32, #tpu.memory_space<vmem>>, vector<8x1xf32>
    %22 = arith.mulf %9, %20 : vector<8x1xf32>
    %23 = arith.subf %21, %22 : vector<8x1xf32>
    %24 = vector.broadcast %20 : vector<8x1xf32> to vector<8x1280xf32>
    %25 = arith.mulf %2, %24 : vector<8x1280xf32>
    %26 = vector.broadcast %23 : vector<8x1xf32> to vector<8x1280xf32>
    %27 = arith.addf %25, %26 : vector<8x1280xf32>
    %cst_13 = arith.constant 0.000000e+00 : f32
    %28 = vector.broadcast %cst_13 : f32 to vector<8x1280xf32>
    %29 = arith.maximumf %27, %28 : vector<8x1280xf32>
    %c0_14 = arith.constant 0 : index
    %c0_15 = arith.constant 0 : index
    %30 = vector.load %arg4[%c0_14, %c0_15] : memref<8x1280xf32, #tpu.memory_space<vmem>>, vector<8x1280xf32>
    tpu.vector_store %arg4[%c0_14, %c0_15], %29 {strides = array<i32>} : memref<8x1280xf32, #tpu.memory_space<vmem>>, vector<8x1280xf32>,
    return
  }
}

module attributes {stable_mosaic.version = 11 : i64} {
  func.func @_matmul_relu_kernel(%arg0: memref<8x256xbf16, #tpu.memory_space<vmem>>, %arg1: memref<256x1536xbf16, #tpu.memory_space<vmem>>, %arg2: memref<8x1536xf32, #tpu.memory_space<vmem>>) attributes {dimension_semantics = [], scalar_prefetch = 0 : i64, scratch_operands = 0 : i64, tpu.core_type = #tpu.core_type<tc>} {
    %c0 = arith.constant 0 : index
    %c0_0 = arith.constant 0 : index
    %0 = vector.load %arg0[%c0, %c0_0] : memref<8x256xbf16, #tpu.memory_space<vmem>>, vector<8x256xbf16>
    %c0_1 = arith.constant 0 : index
    %c0_2 = arith.constant 0 : index
    %1 = vector.load %arg1[%c0_1, %c0_2] : memref<256x1536xbf16, #tpu.memory_space<vmem>>, vector<256x1536xbf16>
    %cst = arith.constant dense<0.000000e+00> : vector<8x1536xf32>
    %2 = tpu.matmul %0, %1, %cst {dimension_numbers = #tpu.dot_dimension_numbers<[1], [0], [0], [1], [0, 0, 1, 1], [], []>} : vector<8x256xbf16>, vector<256x1536xbf16>, vector<8x1536xf32> -> vector<8x1536xf32>
    %cst_3 = arith.constant 0.000000e+00 : f32
    %3 = vector.broadcast %cst_3 : f32 to vector<8x1536xf32>
    %4 = arith.maximumf %2, %3 : vector<8x1536xf32>
    %c0_4 = arith.constant 0 : index
    %c0_5 = arith.constant 0 : index
    %5 = vector.load %arg2[%c0_4, %c0_5] : memref<8x1536xf32, #tpu.memory_space<vmem>>, vector<8x1536xf32>
    tpu.vector_store %arg2[%c0_4, %c0_5], %4 {strides = array<i32>} : memref<8x1536xf32, #tpu.memory_space<vmem>>, vector<8x1536xf32>,
    return
  }
}

</mosaic_0001>

<llo_original>
// kernel: generator2_forward.6
$region0: #{generator2_forward.6}
  #allocation0 [shape = 'u32[]', space=smem, size = 0x4, offset = 0x4, fixed_abs, tag = 'smem constant byte address 0x4 - core index']
  #allocation1 [shape = 'u32[144,128]{1,0:T(1,128)}', space=vmem, size = 0x12000, scoped, tag = 'internal scratch']
  %s0 = inlined_call_operand.hbm [shape: bf16[32,128], index: 0, kind: input, shape index: {}]
  %s1 = inlined_call_operand.vmem [shape: bf16[128,128], index: 1, kind: input, shape index: {}]
  %s2 = inlined_call_operand.vmem [shape: f32[32,1], index: 2, kind: input, shape index: {}]
  %s3 = inlined_call_operand.vmem [shape: f32[32,1], index: 3, kind: input, shape index: {}]
  %s4 = inlined_call_operand.vmem [shape: f32[32,128], index: 4, kind: output, shape index: {}]
  %s5 = sld [smem:[#allocation0]]
  $region30: #{generator2_forward.6} parent=0
    _
  %s7 = ssub.s32 1, %s5
  %s8 = scalar_select 0, %s7, %s5
  $region1: #{generator2_forward.6} parent=0
    #allocation2 [shape = 'u8[8192]{0}', space=vmem, size = 0x2000, scoped, tag = 'input window, operand 0, single buffered']
    #allocation3 [shape = 's32[1]{0}', space=sflag, size = 0x4, scoped, tag = 'scoped memory for generator2_forward.6']
    %9 = vsyncpa [#allocation3], 0
    // Predicated region
    $region2: #{generator2_forward.6} parent=1 // pred_check
      _
    $region3: #{generator2_forward.6} parent=1 // pred_check_branch
      %11 = sbr.rel (0) target = $region5
    $region4: #{generator2_forward.6} parent=1 // pred_region
      %s13 = ssub.s32 256, 256
      %14 = vsyncadd [#allocation3], %s13
      %s15 = sshll.u32 [#allocation2], 4
      %s16 = int_to_ptr.vmem [resolvable:$true] %s15
      %21 = dma.hbm_to_vmem [thread:$0]  %s0, 256, %s16, [#allocation3], 64, 64, 4
    $region5: #{generator2_forward.6} parent=1 // pred_fallthru
      _
    // Predicated region
    $region6: #{generator2_forward.6} parent=1 // pred_check
      _
    $region7: #{generator2_forward.6} parent=1 // pred_check_branch
      %23 = sbr.rel (0) target = $region9
    $region8: #{generator2_forward.6} parent=1 // pred_region
      _
    $region9: #{generator2_forward.6} parent=1 // pred_fallthru
      _
    // Predicated region
    $region10: #{generator2_forward.6} parent=1 // pred_check
      _
    $region11: #{generator2_forward.6} parent=1 // pred_check_branch
      %25 = sbr.rel (0) target = $region13
    $region12: #{generator2_forward.6} parent=1 // pred_region
      _
    $region13: #{generator2_forward.6} parent=1 // pred_fallthru
      _
    // Predicated region
    $region14: #{generator2_forward.6} parent=1 // pred_check
      _
    $region15: #{generator2_forward.6} parent=1 // pred_check_branch
      %27 = sbr.rel (0) target = $region17
    $region16: #{generator2_forward.6} parent=1 // pred_region
      _
    $region17: #{generator2_forward.6} parent=1 // pred_fallthru
      _
    // Predicated region
    $region18: #{generator2_forward.6} parent=1 // pred_check
      _
    $region19: #{generator2_forward.6} parent=1 // pred_check_branch
      %29 = sbr.rel (0) target = $region21
    $region20: #{generator2_forward.6} parent=1 // pred_region
      %30 = dma.done [#allocation3], 256
    $region21: #{generator2_forward.6} parent=1 // pred_fallthru
      _
    %v32 = vld [vmem:[#allocation2] sm:$0xf]
    %v33 = vld [vmem:[#allocation2 + $0x4] sm:$0xf]
    %v34 = vld [vmem:[#allocation2 + $0x8] sm:$0xf]
    %v35 = vld [vmem:[#allocation2 + $0xc] sm:$0xf]
    %v36 = vld [vmem:[%s1] sm:$0xf]
    %v37 = vld [vmem:[%s1 + $0x4] sm:$0xf]
    %v38 = vld [vmem:[%s1 + $0x8] sm:$0xf]
    %v39 = vld [vmem:[%s1 + $0xc] sm:$0xf]
    %v40 = vld [vmem:[%s1 + $0x10] sm:$0xf]
    %v41 = vld [vmem:[%s1 + $0x14] sm:$0xf]
    %v42 = vld [vmem:[%s1 + $0x18] sm:$0xf]
    %v43 = vld [vmem:[%s1 + $0x1c] sm:$0xf]
    %v44 = vld [vmem:[%s1 + $0x20] sm:$0xf]
    %v45 = vld [vmem:[%s1 + $0x24] sm:$0xf]
    %v46 = vld [vmem:[%s1 + $0x28] sm:$0xf]
    %v47 = vld [vmem:[%s1 + $0x2c] sm:$0xf]
    %v48 = vld [vmem:[%s1 + $0x30] sm:$0xf]
    %v49 = vld [vmem:[%s1 + $0x34] sm:$0xf]
    %v50 = vld [vmem:[%s1 + $0x38] sm:$0xf]
    %v51 = vld [vmem:[%s1 + $0x3c] sm:$0xf]
    %v56 = vunpack.c.l.b16 %v32
    %v57 = vunpack.c.l.b16 %v33
    %v58 = vunpack.c.l.b16 %v34
    %v59 = vunpack.c.l.b16 %v35
    %v60 = vpack.c.b16 %v57, %v56
    %v61 = vpack.c.b16 %v59, %v58
    %v80 = vunpack.c.l.b16 %v36
    %v81 = vunpack.c.l.b16 %v37
    %v82 = vunpack.c.l.b16 %v38
    %v83 = vunpack.c.l.b16 %v39
    %v84 = vunpack.c.l.b16 %v40
    %v85 = vunpack.c.l.b16 %v41
    %v86 = vunpack.c.l.b16 %v42
    %v87 = vunpack.c.l.b16 %v43
    %v88 = vunpack.c.l.b16 %v44
    %v89 = vunpack.c.l.b16 %v45
    %v90 = vunpack.c.l.b16 %v46
    %v91 = vunpack.c.l.b16 %v47
    %v92 = vunpack.c.l.b16 %v48
    %v93 = vunpack.c.l.b16 %v49
    %v94 = vunpack.c.l.b16 %v50
    %v95 = vunpack.c.l.b16 %v51
    %v96 = vpack.c.b16 %v81, %v80
    %v97 = vpack.c.b16 %v83, %v82
    %v98 = vpack.c.b16 %v85, %v84
    %v99 = vpack.c.b16 %v87, %v86
    %v100 = vpack.c.b16 %v89, %v88
    %v101 = vpack.c.b16 %v91, %v90
    %v102 = vpack.c.b16 %v93, %v92
    %v103 = vpack.c.b16 %v95, %v94
    %112 = vmatprep.subr.bf16.mxu0 0
    %113 = vmatpush1.bf16.msra.mxu0 %v103
    %114 = vmatprep.subr.bf16.mxu0 0
    %115 = vmatpush1.bf16.msra.mxu0 %v102
    %116 = vmatprep.subr.bf16.mxu0 0
    %117 = vmatpush1.bf16.msra.mxu0 %v101
    %118 = vmatprep.subr.bf16.mxu0 0
    %119 = vmatpush1.bf16.msra.mxu0 %v100
    %120 = vmatprep.subr.bf16.mxu0 0
    %121 = vmatpush1.bf16.msra.mxu0 %v99
    %122 = vmatprep.subr.bf16.mxu0 0
    %123 = vmatpush1.bf16.msra.mxu0 %v98
    %124 = vmatprep.subr.bf16.mxu0 0
    %125 = vmatpush1.bf16.msra.mxu0 %v97
    %126 = vmatprep.subr.bf16.mxu0 0
    %127 = vmatpush1.bf16.msra.mxu0 %v96
    %128 = vmatprep.subr.bf16.mxu0 0
    %129 = vmatpush2.bf16.msra.mxu0 0
    %130 = vmatprep.subr.bf16.mxu0 0
    %131 = vmatpush2.bf16.msra.mxu0 0
    %132 = vmatprep.subr.bf16.mxu0 0
    %133 = vmatpush2.bf16.msra.mxu0 0
    %134 = vmatprep.subr.bf16.mxu0 0
    %135 = vmatpush2.bf16.msra.mxu0 0
    %136 = vmatprep.subr.bf16.mxu0 0
    %137 = vmatpush2.bf16.msra.mxu0 0
    %138 = vmatprep.subr.bf16.mxu0 0
    %139 = vmatpush2.bf16.msra.mxu0 0
    %140 = vmatprep.subr.bf16.mxu0 0
    %141 = vmatpush2.bf16.msra.mxu0 0
    %142 = vmatprep.subr.bf16.mxu0 0
    %143 = vmatpush2.bf16.msra.mxu0 0
    %144 = vmatprep.mubr.bf16.mxu0 0
    %145 = vmatmul.mubr.bf16.gmra.mxu0 %v60
    %v146 = vpop.f32.mrf.mxu0
    %v147 = vadd.f32 0.0, %v146
    %v148 = vpop.f32.mrf.mxu0
    %v149 = vpop.f32.mrf.mxu0
    %v150 = vadd.f32 0.0, %v149
    %v151 = vpop.f32.mrf.mxu0
    %152 = vmatprep.mubr.bf16.mxu0 0
    %153 = vmatmul.mubr.bf16.gmra.mxu0 %v61
    %v154 = vpop.f32.mrf.mxu0
    %v155 = vadd.f32 0.0, %v154
    %v156 = vpop.f32.mrf.mxu0
    %v157 = vpop.f32.mrf.mxu0
    %v158 = vadd.f32 0.0, %v157
    %v159 = vpop.f32.mrf.mxu0
    %160 = vdwg.mxu0
    %161 = vadd.xlane.f32.xlu0 %v147
    %v162 = vpop.xlane.xlu0 %161
    %163 = vadd.xlane.f32.xlu0 %v150
    %v164 = vpop.xlane.xlu0 %163
    %165 = vadd.xlane.f32.xlu0 %v155
    %v166 = vpop.xlane.xlu0 %165
    %167 = vadd.xlane.f32.xlu0 %v158
    %v168 = vpop.xlane.xlu0 %167
    %v169 = vmul.f32 %v147, %v147
    %v170 = vmul.f32 %v150, %v150
    %v171 = vmul.f32 %v155, %v155
    %v172 = vmul.f32 %v158, %v158
    %173 = vadd.xlane.f32.xlu0 %v169
    %v174 = vpop.xlane.xlu0 %173
    %175 = vadd.xlane.f32.xlu0 %v170
    %v176 = vpop.xlane.xlu0 %175
    %177 = vadd.xlane.f32.xlu0 %v171
    %v178 = vpop.xlane.xlu0 %177
    %179 = vadd.xlane.f32.xlu0 %v172
    %v180 = vpop.xlane.xlu0 %179
    %v181 = vmul.f32 %v162, 0.03125
    %v182 = vmul.f32 %v164, 0.03125
    %v183 = vmul.f32 %v166, 0.03125
    %v184 = vmul.f32 %v168, 0.03125
    %v185 = vmul.f32 %v174, 0.03125
    %v186 = vmul.f32 %v176, 0.03125
    %v187 = vmul.f32 %v178, 0.03125
    %v188 = vmul.f32 %v180, 0.03125
    %v189 = vmul.f32 %v181, %v181
    %v190 = vmul.f32 %v182, %v182
    %v191 = vmul.f32 %v183, %v183
    %v192 = vmul.f32 %v184, %v184
    %v193 = vsub.f32 %v185, %v189
    %v194 = vsub.f32 %v186, %v190
    %v195 = vsub.f32 %v187, %v191
    %v196 = vsub.f32 %v188, %v192
    %v197 = vmax.f32 %v193, 0.0
    %v198 = vmax.f32 %v194, 0.0
    %v199 = vmax.f32 %v195, 0.0
    %v200 = vmax.f32 %v196, 0.0
    %v201 = vld [vmem:[%s2] sm:$0xff]
    %v202 = vld [vmem:[%s2 + $0x8] sm:$0xff]
    %v203 = vld [vmem:[%s2 + $0x10] sm:$0xff]
    %v204 = vld [vmem:[%s2 + $0x18] sm:$0xff]
    %v205 = vadd.f32 %v197, 1e-05
    %v206 = vadd.f32 %v198, 1e-05
    %v207 = vadd.f32 %v199, 1e-05
    %v208 = vadd.f32 %v200, 1e-05
    %v209 = vrsqrt.pop %v205
    %v210 = vrsqrt.pop %v206
    %v211 = vrsqrt.pop %v207
    %v212 = vrsqrt.pop %v208
    %v213 = vmul.f32 %v201, %v209
    %v214 = vmul.f32 %v202, %v210
    %v215 = vmul.f32 %v203, %v211
    %v216 = vmul.f32 %v204, %v212
    %v217 = vld [vmem:[%s3] sm:$0xff]
    %v218 = vld [vmem:[%s3 + $0x8] sm:$0xff]
    %v219 = vld [vmem:[%s3 + $0x10] sm:$0xff]
    %v220 = vld [vmem:[%s3 + $0x18] sm:$0xff]
    %v221 = vmul.f32 %v181, %v213
    %v222 = vmul.f32 %v182, %v214
    %v223 = vmul.f32 %v183, %v215
    %v224 = vmul.f32 %v184, %v216
    %v225 = vsub.f32 %v217, %v221
    %v226 = vsub.f32 %v218, %v222
    %v227 = vsub.f32 %v219, %v223
    %v228 = vsub.f32 %v220, %v224
    %230 = vset.pattern.permute.xlu0 0
    %231 = vperm.xlu0 %230, %v213
    %v232 = vpop.permute.xlu0 %231
    %235 = vset.pattern.permute.xlu0 0
    %236 = vperm.xlu0 %235, %v214
    %v237 = vpop.permute.xlu0 %236
    %240 = vset.pattern.permute.xlu0 0
    %241 = vperm.xlu0 %240, %v215
    %v242 = vpop.permute.xlu0 %241
    %245 = vset.pattern.permute.xlu0 0
    %246 = vperm.xlu0 %245, %v216
    %v247 = vpop.permute.xlu0 %246
    %v249 = vmul.f32 %v147, %v232
    %v250 = vmul.f32 %v150, %v237
    %v251 = vmul.f32 %v155, %v242
    %v252 = vmul.f32 %v158, %v247
    %254 = vset.pattern.permute.xlu0 0
    %255 = vperm.xlu0 %254, %v225
    %v256 = vpop.permute.xlu0 %255
    %259 = vset.pattern.permute.xlu0 0
    %260 = vperm.xlu0 %259, %v226
    %v261 = vpop.permute.xlu0 %260
    %264 = vset.pattern.permute.xlu0 0
    %265 = vperm.xlu0 %264, %v227
    %v266 = vpop.permute.xlu0 %265
    %269 = vset.pattern.permute.xlu0 0
    %270 = vperm.xlu0 %269, %v228
    %v271 = vpop.permute.xlu0 %270
    %v273 = vadd.f32 %v249, %v256
    %v274 = vadd.f32 %v250, %v261
    %v275 = vadd.f32 %v251, %v266
    %v276 = vadd.f32 %v252, %v271
    %v277 = vmax.f32 %v273, 0.0
    %v278 = vmax.f32 %v274, 0.0
    %v279 = vmax.f32 %v275, 0.0
    %v280 = vmax.f32 %v276, 0.0
    %281 = vst [vmem:[%s4] sm:$0xff] %v277
    %282 = vst [vmem:[%s4 + $0x8] sm:$0xff] %v278
    %283 = vst [vmem:[%s4 + $0x10] sm:$0xff] %v279
    %284 = vst [vmem:[%s4 + $0x18] sm:$0xff] %v280
    // Predicated region
    $region22: #{generator2_forward.6} parent=1 // pred_check
      _
    $region23: #{generator2_forward.6} parent=1 // pred_check_branch
      %286 = sbr.rel (0) target = $region25
    $region24: #{generator2_forward.6} parent=1 // pred_region
      _
    $region25: #{generator2_forward.6} parent=1 // pred_fallthru
      _
    // Predicated region
    $region26: #{generator2_forward.6} parent=1 // pred_check
      _
    $region27: #{generator2_forward.6} parent=1 // pred_check_branch
      %288 = sbr.rel (0) target = $region29
    $region28: #{generator2_forward.6} parent=1 // pred_region
      _
    $region29: #{generator2_forward.6} parent=1 // pred_fallthru
      _
    %289 = vsyncpa [#allocation3], 1

// kernel: generator2_forward.7
$region0: #{generator2_forward.7}
  #allocation0 [shape = 'u32[]', space=smem, size = 0x4, offset = 0x4, fixed_abs, tag = 'smem constant byte address 0x4 - core index']
  #allocation1 [shape = 'u32[144,128]{1,0:T(1,128)}', space=vmem, size = 0x12000, scoped, tag = 'internal scratch']
  %s0 = inlined_call_operand.vmem [shape: bf16[64,384], index: 0, kind: input, shape index: {}]
  %s1 = inlined_call_operand.vmem [shape: bf16[384,128], index: 1, kind: input, shape index: {}]
  %s2 = inlined_call_operand.vmem [shape: f32[64,1], index: 2, kind: input, shape index: {}]
  %s3 = inlined_call_operand.vmem [shape: f32[64,1], index: 3, kind: input, shape index: {}]
  %s4 = inlined_call_operand.vmem [shape: f32[64,128], index: 4, kind: output, shape index: {}]
  %s5 = sld [smem:[#allocation0]]
  $region26: #{generator2_forward.7} parent=0
    _
  %s7 = ssub.s32 1, %s5
  %s8 = scalar_select 0, %s7, %s5
  // Predicated region
  $region2: #{generator2_forward.7} parent=0 // pred_check
    _
  $region3: #{generator2_forward.7} parent=0 // pred_check_branch
    %10 = sbr.rel (0) target = $region5
  $region4: #{generator2_forward.7} parent=0 // pred_region
    _
  $region5: #{generator2_forward.7} parent=0 // pred_fallthru
    _
  // Predicated region
  $region6: #{generator2_forward.7} parent=0 // pred_check
    _
  $region7: #{generator2_forward.7} parent=0 // pred_check_branch
    %12 = sbr.rel (0) target = $region9
  $region8: #{generator2_forward.7} parent=0 // pred_region
    _
  $region9: #{generator2_forward.7} parent=0 // pred_fallthru
    _
  // Predicated region
  $region10: #{generator2_forward.7} parent=0 // pred_check
    _
  $region11: #{generator2_forward.7} parent=0 // pred_check_branch
    %14 = sbr.rel (0) target = $region13
  $region12: #{generator2_forward.7} parent=0 // pred_region
    _
  $region13: #{generator2_forward.7} parent=0 // pred_fallthru
    _
  // Predicated region
  $region14: #{generator2_forward.7} parent=0 // pred_check
    _
  $region15: #{generator2_forward.7} parent=0 // pred_check_branch
    %16 = sbr.rel (0) target = $region17
  $region16: #{generator2_forward.7} parent=0 // pred_region
    _
  $region17: #{generator2_forward.7} parent=0 // pred_fallthru
    _
  %v18 = vld [vmem:[%s0] sm:$0xff]
  %v19 = vld [vmem:[%s0 + $0x8] sm:$0xf]
  %v20 = vld [vmem:[%s0 + $0xc] sm:$0xff]
  %v21 = vld [vmem:[%s0 + $0x14] sm:$0xf]
  %v22 = vld [vmem:[%s0 + $0x18] sm:$0xff]
  %v23 = vld [vmem:[%s0 + $0x20] sm:$0xf]
  %v24 = vld [vmem:[%s0 + $0x24] sm:$0xff]
  %v25 = vld [vmem:[%s0 + $0x2c] sm:$0xf]
  %v26 = vld [vmem:[%s0 + $0x30] sm:$0xff]
  %v27 = vld [vmem:[%s0 + $0x38] sm:$0xf]
  %v28 = vld [vmem:[%s0 + $0x3c] sm:$0xff]
  %v29 = vld [vmem:[%s0 + $0x44] sm:$0xf]
  %v30 = vld [vmem:[%s0 + $0x48] sm:$0xff]
  %v31 = vld [vmem:[%s0 + $0x50] sm:$0xf]
  %v32 = vld [vmem:[%s0 + $0x54] sm:$0xff]
  %v33 = vld [vmem:[%s0 + $0x5c] sm:$0xf]
  %v34 = vld [vmem:[%s1] sm:$0xf]
  %v35 = vld [vmem:[%s1 + $0x4] sm:$0xf]
  %v36 = vld [vmem:[%s1 + $0x8] sm:$0xf]
  %v37 = vld [vmem:[%s1 + $0xc] sm:$0xf]
  %v38 = vld [vmem:[%s1 + $0x10] sm:$0xf]
  %v39 = vld [vmem:[%s1 + $0x14] sm:$0xf]
  %v40 = vld [vmem:[%s1 + $0x18] sm:$0xf]
  %v41 = vld [vmem:[%s1 + $0x1c] sm:$0xf]
  %v42 = vld [vmem:[%s1 + $0x20] sm:$0xf]
  %v43 = vld [vmem:[%s1 + $0x24] sm:$0xf]
  %v44 = vld [vmem:[%s1 + $0x28] sm:$0xf]
  %v45 = vld [vmem:[%s1 + $0x2c] sm:$0xf]
  %v46 = vld [vmem:[%s1 + $0x30] sm:$0xf]
  %v47 = vld [vmem:[%s1 + $0x34] sm:$0xf]
  %v48 = vld [vmem:[%s1 + $0x38] sm:$0xf]
  %v49 = vld [vmem:[%s1 + $0x3c] sm:$0xf]
  %v50 = vld [vmem:[%s1 + $0x40] sm:$0xf]
  %v51 = vld [vmem:[%s1 + $0x44] sm:$0xf]
  %v52 = vld [vmem:[%s1 + $0x48] sm:$0xf]
  %v53 = vld [vmem:[%s1 + $0x4c] sm:$0xf]
  %v54 = vld [vmem:[%s1 + $0x50] sm:$0xf]
  %v55 = vld [vmem:[%s1 + $0x54] sm:$0xf]
  %v56 = vld [vmem:[%s1 + $0x58] sm:$0xf]
  %v57 = vld [vmem:[%s1 + $0x5c] sm:$0xf]
  %v58 = vld [vmem:[%s1 + $0x60] sm:$0xf]
  %v59 = vld [vmem:[%s1 + $0x64] sm:$0xf]
  %v60 = vld [vmem:[%s1 + $0x68] sm:$0xf]
  %v61 = vld [vmem:[%s1 + $0x6c] sm:$0xf]
  %v62 = vld [vmem:[%s1 + $0x70] sm:$0xf]
  %v63 = vld [vmem:[%s1 + $0x74] sm:$0xf]
  %v64 = vld [vmem:[%s1 + $0x78] sm:$0xf]
  %v65 = vld [vmem:[%s1 + $0x7c] sm:$0xf]
  %v66 = vld [vmem:[%s1 + $0x80] sm:$0xf]
  %v67 = vld [vmem:[%s1 + $0x84] sm:$0xf]
  %v68 = vld [vmem:[%s1 + $0x88] sm:$0xf]
  %v69 = vld [vmem:[%s1 + $0x8c] sm:$0xf]
  %v70 = vld [vmem:[%s1 + $0x90] sm:$0xf]
  %v71 = vld [vmem:[%s1 + $0x94] sm:$0xf]
  %v72 = vld [vmem:[%s1 + $0x98] sm:$0xf]
  %v73 = vld [vmem:[%s1 + $0x9c] sm:$0xf]
  %v74 = vld [vmem:[%s1 + $0xa0] sm:$0xf]
  %v75 = vld [vmem:[%s1 + $0xa4] sm:$0xf]
  %v76 = vld [vmem:[%s1 + $0xa8] sm:$0xf]
  %v77 = vld [vmem:[%s1 + $0xac] sm:$0xf]
  %v78 = vld [vmem:[%s1 + $0xb0] sm:$0xf]
  %v79 = vld [vmem:[%s1 + $0xb4] sm:$0xf]
  %v80 = vld [vmem:[%s1 + $0xb8] sm:$0xf]
  %v81 = vld [vmem:[%s1 + $0xbc] sm:$0xf]
  %v98 = vunpack.c.l.b16 %v18
  %v99 = vunpack.c.h.b16 %v18
  %v100 = vunpack.c.l.b16 %v19
  %v101 = vunpack.c.l.b16 %v20
  %v102 = vunpack.c.h.b16 %v20
  %v103 = vunpack.c.l.b16 %v21
  %v104 = vunpack.c.l.b16 %v22
  %v105 = vunpack.c.h.b16 %v22
  %v106 = vunpack.c.l.b16 %v23
  %v107 = vunpack.c.l.b16 %v24
  %v108 = vunpack.c.h.b16 %v24
  %v109 = vunpack.c.l.b16 %v25
  %v110 = vunpack.c.l.b16 %v26
  %v111 = vunpack.c.h.b16 %v26
  %v112 = vunpack.c.l.b16 %v27
  %v113 = vunpack.c.l.b16 %v28
  %v114 = vunpack.c.h.b16 %v28
  %v115 = vunpack.c.l.b16 %v29
  %v116 = vunpack.c.l.b16 %v30
  %v117 = vunpack.c.h.b16 %v30
  %v118 = vunpack.c.l.b16 %v31
  %v119 = vunpack.c.l.b16 %v32
  %v120 = vunpack.c.h.b16 %v32
  %v121 = vunpack.c.l.b16 %v33
  %v122 = vpack.c.b16 %v101, %v98
  %v123 = vpack.c.b16 %v102, %v99
  %v124 = vpack.c.b16 %v103, %v100
  %v125 = vpack.c.b16 %v107, %v104
  %v126 = vpack.c.b16 %v108, %v105
  %v127 = vpack.c.b16 %v109, %v106
  %v128 = vpack.c.b16 %v113, %v110
  %v129 = vpack.c.b16 %v114, %v111
  %v130 = vpack.c.b16 %v115, %v112
  %v131 = vpack.c.b16 %v119, %v116
  %v132 = vpack.c.b16 %v120, %v117
  %v133 = vpack.c.b16 %v121, %v118
  %v194 = vunpack.c.l.b16 %v34
  %v195 = vunpack.c.l.b16 %v35
  %v196 = vunpack.c.l.b16 %v36
  %v197 = vunpack.c.l.b16 %v37
  %v198 = vunpack.c.l.b16 %v38
  %v199 = vunpack.c.l.b16 %v39
  %v200 = vunpack.c.l.b16 %v40
  %v201 = vunpack.c.l.b16 %v41
  %v202 = vunpack.c.l.b16 %v42
  %v203 = vunpack.c.l.b16 %v43
  %v204 = vunpack.c.l.b16 %v44
  %v205 = vunpack.c.l.b16 %v45
  %v206 = vunpack.c.l.b16 %v46
  %v207 = vunpack.c.l.b16 %v47
  %v208 = vunpack.c.l.b16 %v48
  %v209 = vunpack.c.l.b16 %v49
  %v210 = vunpack.c.l.b16 %v50
  %v211 = vunpack.c.l.b16 %v51
  %v212 = vunpack.c.l.b16 %v52
  %v213 = vunpack.c.l.b16 %v53
  %v214 = vunpack.c.l.b16 %v54
  %v215 = vunpack.c.l.b16 %v55
  %v216 = vunpack.c.l.b16 %v56
  %v217 = vunpack.c.l.b16 %v57
  %v218 = vunpack.c.l.b16 %v58
  %v219 = vunpack.c.l.b16 %v59
  %v220 = vunpack.c.l.b16 %v60
  %v221 = vunpack.c.l.b16 %v61
  %v222 = vunpack.c.l.b16 %v62
  %v223 = vunpack.c.l.b16 %v63
  %v224 = vunpack.c.l.b16 %v64
  %v225 = vunpack.c.l.b16 %v65
  %v226 = vunpack.c.l.b16 %v66
  %v227 = vunpack.c.l.b16 %v67
  %v228 = vunpack.c.l.b16 %v68
  %v229 = vunpack.c.l.b16 %v69
  %v230 = vunpack.c.l.b16 %v70
  %v231 = vunpack.c.l.b16 %v71
  %v232 = vunpack.c.l.b16 %v72
  %v233 = vunpack.c.l.b16 %v73
  %v234 = vunpack.c.l.b16 %v74
  %v235 = vunpack.c.l.b16 %v75
  %v236 = vunpack.c.l.b16 %v76
  %v237 = vunpack.c.l.b16 %v77
  %v238 = vunpack.c.l.b16 %v78
  %v239 = vunpack.c.l.b16 %v79
  %v240 = vunpack.c.l.b16 %v80
  %v241 = vunpack.c.l.b16 %v81
  %v242 = vpack.c.b16 %v195, %v194
  %v243 = vpack.c.b16 %v197, %v196
  %v244 = vpack.c.b16 %v199, %v198
  %v245 = vpack.c.b16 %v201, %v200
  %v246 = vpack.c.b16 %v203, %v202
  %v247 = vpack.c.b16 %v205, %v204
  %v248 = vpack.c.b16 %v207, %v206
  %v249 = vpack.c.b16 %v209, %v208
  %v250 = vpack.c.b16 %v211, %v210
  %v251 = vpack.c.b16 %v213, %v212
  %v252 = vpack.c.b16 %v215, %v214
  %v253 = vpack.c.b16 %v217, %v216
  %v254 = vpack.c.b16 %v219, %v218
  %v255 = vpack.c.b16 %v221, %v220
  %v256 = vpack.c.b16 %v223, %v222
  %v257 = vpack.c.b16 %v225, %v224
  %v258 = vpack.c.b16 %v227, %v226
  %v259 = vpack.c.b16 %v229, %v228
  %v260 = vpack.c.b16 %v231, %v230
  %v261 = vpack.c.b16 %v233, %v232
  %v262 = vpack.c.b16 %v235, %v234
  %v263 = vpack.c.b16 %v237, %v236
  %v264 = vpack.c.b16 %v239, %v238
  %v265 = vpack.c.b16 %v241, %v240
  %290 = vmatprep.subr.bf16.mxu0 0
  %291 = vmatpush1.bf16.msra.mxu0 %v249
  %292 = vmatprep.subr.bf16.mxu0 0
  %293 = vmatpush1.bf16.msra.mxu0 %v248
  %294 = vmatprep.subr.bf16.mxu0 0
  %295 = vmatpush1.bf16.msra.mxu0 %v247
  %296 = vmatprep.subr.bf16.mxu0 0
  %297 = vmatpush1.bf16.msra.mxu0 %v246
  %298 = vmatprep.subr.bf16.mxu0 0
  %299 = vmatpush1.bf16.msra.mxu0 %v245
  %300 = vmatprep.subr.bf16.mxu0 0
  %301 = vmatpush1.bf16.msra.mxu0 %v244
  %302 = vmatprep.subr.bf16.mxu0 0
  %303 = vmatpush1.bf16.msra.mxu0 %v243
  %304 = vmatprep.subr.bf16.mxu0 0
  %305 = vmatpush1.bf16.msra.mxu0 %v242
  %306 = vmatprep.subr.bf16.mxu0 0
  %307 = vmatpush2.bf16.msra.mxu0 %v257
  %308 = vmatprep.subr.bf16.mxu0 0
  %309 = vmatpush2.bf16.msra.mxu0 %v256
  %310 = vmatprep.subr.bf16.mxu0 0
  %311 = vmatpush2.bf16.msra.mxu0 %v255
  %312 = vmatprep.subr.bf16.mxu0 0
  %313 = vmatpush2.bf16.msra.mxu0 %v254
  %314 = vmatprep.subr.bf16.mxu0 0
  %315 = vmatpush2.bf16.msra.mxu0 %v253
  %316 = vmatprep.subr.bf16.mxu0 0
  %317 = vmatpush2.bf16.msra.mxu0 %v252
  %318 = vmatprep.subr.bf16.mxu0 0
  %319 = vmatpush2.bf16.msra.mxu0 %v251
  %320 = vmatprep.subr.bf16.mxu0 0
  %321 = vmatpush2.bf16.msra.mxu0 %v250
  %322 = vmatprep.mubr.bf16.mxu0 %v123
  %323 = vmatmul.mubr.bf16.gmra.mxu0 %v122
  %v324 = vpop.f32.mrf.mxu0
  %v325 = vadd.f32 0.0, %v324
  %v326 = vpop.f32.mrf.mxu0
  %v327 = vpop.f32.mrf.mxu0
  %v328 = vadd.f32 0.0, %v327
  %v329 = vpop.f32.mrf.mxu0
  %330 = vmatprep.mubr.bf16.mxu0 %v126
  %331 = vmatmul.mubr.bf16.gmra.mxu0 %v125
  %v332 = vpop.f32.mrf.mxu0
  %v333 = vadd.f32 0.0, %v332
  %v334 = vpop.f32.mrf.mxu0
  %v335 = vpop.f32.mrf.mxu0
  %v336 = vadd.f32 0.0, %v335
  %v337 = vpop.f32.mrf.mxu0
  %338 = vmatprep.mubr.bf16.mxu0 %v129
  %339 = vmatmul.mubr.bf16.gmra.mxu0 %v128
  %v340 = vpop.f32.mrf.mxu0
  %v341 = vadd.f32 0.0, %v340
  %v342 = vpop.f32.mrf.mxu0
  %v343 = vpop.f32.mrf.mxu0
  %v344 = vadd.f32 0.0, %v343
  %v345 = vpop.f32.mrf.mxu0
  %346 = vmatprep.mubr.bf16.mxu0 %v132
  %347 = vmatmul.mubr.bf16.gmra.mxu0 %v131
  %v348 = vpop.f32.mrf.mxu0
  %v349 = vadd.f32 0.0, %v348
  %v350 = vpop.f32.mrf.mxu0
  %v351 = vpop.f32.mrf.mxu0
  %v352 = vadd.f32 0.0, %v351
  %v353 = vpop.f32.mrf.mxu0
  %354 = vdwg.mxu0
  %355 = vmatprep.subr.bf16.mxu0 0
  %356 = vmatpush1.bf16.msra.mxu0 %v265
  %357 = vmatprep.subr.bf16.mxu0 0
  %358 = vmatpush1.bf16.msra.mxu0 %v264
  %359 = vmatprep.subr.bf16.mxu0 0
  %360 = vmatpush1.bf16.msra.mxu0 %v263
  %361 = vmatprep.subr.bf16.mxu0 0
  %362 = vmatpush1.bf16.msra.mxu0 %v262
  %363 = vmatprep.subr.bf16.mxu0 0
  %364 = vmatpush1.bf16.msra.mxu0 %v261
  %365 = vmatprep.subr.bf16.mxu0 0
  %366 = vmatpush1.bf16.msra.mxu0 %v260
  %367 = vmatprep.subr.bf16.mxu0 0
  %368 = vmatpush1.bf16.msra.mxu0 %v259
  %369 = vmatprep.subr.bf16.mxu0 0
  %370 = vmatpush1.bf16.msra.mxu0 %v258
  %371 = vmatprep.subr.bf16.mxu0 0
  %372 = vmatpush2.bf16.msra.mxu0 0
  %373 = vmatprep.subr.bf16.mxu0 0
  %374 = vmatpush2.bf16.msra.mxu0 0
  %375 = vmatprep.subr.bf16.mxu0 0
  %376 = vmatpush2.bf16.msra.mxu0 0
  %377 = vmatprep.subr.bf16.mxu0 0
  %378 = vmatpush2.bf16.msra.mxu0 0
  %379 = vmatprep.subr.bf16.mxu0 0
  %380 = vmatpush2.bf16.msra.mxu0 0
  %381 = vmatprep.subr.bf16.mxu0 0
  %382 = vmatpush2.bf16.msra.mxu0 0
  %383 = vmatprep.subr.bf16.mxu0 0
  %384 = vmatpush2.bf16.msra.mxu0 0
  %385 = vmatprep.subr.bf16.mxu0 0
  %386 = vmatpush2.bf16.msra.mxu0 0
  %387 = vmatprep.mubr.bf16.mxu0 0
  %388 = vmatmul.mubr.bf16.gmra.mxu0 %v124
  %v389 = vpop.f32.mrf.mxu0
  %v390 = vadd.f32 %v325, %v389
  %v391 = vpop.f32.mrf.mxu0
  %v392 = vpop.f32.mrf.mxu0
  %v393 = vadd.f32 %v328, %v392
  %v394 = vpop.f32.mrf.mxu0
  %395 = vmatprep.mubr.bf16.mxu0 0
  %396 = vmatmul.mubr.bf16.gmra.mxu0 %v127
  %v397 = vpop.f32.mrf.mxu0
  %v398 = vadd.f32 %v333, %v397
  %v399 = vpop.f32.mrf.mxu0
  %v400 = vpop.f32.mrf.mxu0
  %v401 = vadd.f32 %v336, %v400
  %v402 = vpop.f32.mrf.mxu0
  %403 = vmatprep.mubr.bf16.mxu0 0
  %404 = vmatmul.mubr.bf16.gmra.mxu0 %v130
  %v405 = vpop.f32.mrf.mxu0
  %v406 = vadd.f32 %v341, %v405
  %v407 = vpop.f32.mrf.mxu0
  %v408 = vpop.f32.mrf.mxu0
  %v409 = vadd.f32 %v344, %v408
  %v410 = vpop.f32.mrf.mxu0
  %411 = vmatprep.mubr.bf16.mxu0 0
  %412 = vmatmul.mubr.bf16.gmra.mxu0 %v133
  %v413 = vpop.f32.mrf.mxu0
  %v414 = vadd.f32 %v349, %v413
  %v415 = vpop.f32.mrf.mxu0
  %v416 = vpop.f32.mrf.mxu0
  %v417 = vadd.f32 %v352, %v416
  %v418 = vpop.f32.mrf.mxu0
  %419 = vdwg.mxu0
  %420 = vadd.xlane.f32.xlu0 %v390
  %v421 = vpop.xlane.xlu0 %420
  %422 = vadd.xlane.f32.xlu0 %v393
  %v423 = vpop.xlane.xlu0 %422
  %424 = vadd.xlane.f32.xlu0 %v398
  %v425 = vpop.xlane.xlu0 %424
  %426 = vadd.xlane.f32.xlu0 %v401
  %v427 = vpop.xlane.xlu0 %426
  %428 = vadd.xlane.f32.xlu0 %v406
  %v429 = vpop.xlane.xlu0 %428
  %430 = vadd.xlane.f32.xlu0 %v409
  %v431 = vpop.xlane.xlu0 %430
  %432 = vadd.xlane.f32.xlu0 %v414
  %v433 = vpop.xlane.xlu0 %432
  %434 = vadd.xlane.f32.xlu0 %v417
  %v435 = vpop.xlane.xlu0 %434
  %v436 = vmul.f32 %v390, %v390
  %v437 = vmul.f32 %v393, %v393
  %v438 = vmul.f32 %v398, %v398
  %v439 = vmul.f32 %v401, %v401
  %v440 = vmul.f32 %v406, %v406
  %v441 = vmul.f32 %v409, %v409
  %v442 = vmul.f32 %v414, %v414
  %v443 = vmul.f32 %v417, %v417
  %444 = vadd.xlane.f32.xlu0 %v436
  %v445 = vpop.xlane.xlu0 %444
  %446 = vadd.xlane.f32.xlu0 %v437
  %v447 = vpop.xlane.xlu0 %446
  %448 = vadd.xlane.f32.xlu0 %v438
  %v449 = vpop.xlane.xlu0 %448
  %450 = vadd.xlane.f32.xlu0 %v439
  %v451 = vpop.xlane.xlu0 %450
  %452 = vadd.xlane.f32.xlu0 %v440
  %v453 = vpop.xlane.xlu0 %452
  %454 = vadd.xlane.f32.xlu0 %v441
  %v455 = vpop.xlane.xlu0 %454
  %456 = vadd.xlane.f32.xlu0 %v442
  %v457 = vpop.xlane.xlu0 %456
  %458 = vadd.xlane.f32.xlu0 %v443
  %v459 = vpop.xlane.xlu0 %458
  %v460 = vmul.f32 %v421, 0.008928572
  %v461 = vmul.f32 %v423, 0.008928572
  %v462 = vmul.f32 %v425, 0.008928572
  %v463 = vmul.f32 %v427, 0.008928572
  %v464 = vmul.f32 %v429, 0.008928572
  %v465 = vmul.f32 %v431, 0.008928572
  %v466 = vmul.f32 %v433, 0.008928572
  %v467 = vmul.f32 %v435, 0.008928572
  %v468 = vmul.f32 %v445, 0.008928572
  %v469 = vmul.f32 %v447, 0.008928572
  %v470 = vmul.f32 %v449, 0.008928572
  %v471 = vmul.f32 %v451, 0.008928572
  %v472 = vmul.f32 %v453, 0.008928572
  %v473 = vmul.f32 %v455, 0.008928572
  %v474 = vmul.f32 %v457, 0.008928572
  %v475 = vmul.f32 %v459, 0.008928572
  %v476 = vmul.f32 %v460, %v460
  %v477 = vmul.f32 %v461, %v461
  %v478 = vmul.f32 %v462, %v462
  %v479 = vmul.f32 %v463, %v463
  %v480 = vmul.f32 %v464, %v464
  %v481 = vmul.f32 %v465, %v465
  %v482 = vmul.f32 %v466, %v466
  %v483 = vmul.f32 %v467, %v467
  %v484 = vsub.f32 %v468, %v476
  %v485 = vsub.f32 %v469, %v477
  %v486 = vsub.f32 %v470, %v478
  %v487 = vsub.f32 %v471, %v479
  %v488 = vsub.f32 %v472, %v480
  %v489 = vsub.f32 %v473, %v481
  %v490 = vsub.f32 %v474, %v482
  %v491 = vsub.f32 %v475, %v483
  %v492 = vmax.f32 %v484, 0.0
  %v493 = vmax.f32 %v485, 0.0
  %v494 = vmax.f32 %v486, 0.0
  %v495 = vmax.f32 %v487, 0.0
  %v496 = vmax.f32 %v488, 0.0
  %v497 = vmax.f32 %v489, 0.0
  %v498 = vmax.f32 %v490, 0.0
  %v499 = vmax.f32 %v491, 0.0
  %v500 = vld [vmem:[%s2] sm:$0xff]
  %v501 = vld [vmem:[%s2 + $0x8] sm:$0xff]
  %v502 = vld [vmem:[%s2 + $0x10] sm:$0xff]
  %v503 = vld [vmem:[%s2 + $0x18] sm:$0xff]
  %v504 = vld [vmem:[%s2 + $0x20] sm:$0xff]
  %v505 = vld [vmem:[%s2 + $0x28] sm:$0xff]
  %v506 = vld [vmem:[%s2 + $0x30] sm:$0xff]
  %v507 = vld [vmem:[%s2 + $0x38] sm:$0xff]
  %v508 = vadd.f32 %v492, 1e-05
  %v509 = vadd.f32 %v493, 1e-05
  %v510 = vadd.f32 %v494, 1e-05
  %v511 = vadd.f32 %v495, 1e-05
  %v512 = vadd.f32 %v496, 1e-05
  %v513 = vadd.f32 %v497, 1e-05
  %v514 = vadd.f32 %v498, 1e-05
  %v515 = vadd.f32 %v499, 1e-05
  %v516 = vrsqrt.pop %v508
  %v517 = vrsqrt.pop %v509
  %v518 = vrsqrt.pop %v510
  %v519 = vrsqrt.pop %v511
  %v520 = vrsqrt.pop %v512
  %v521 = vrsqrt.pop %v513
  %v522 = vrsqrt.pop %v514
  %v523 = vrsqrt.pop %v515
  %v524 = vmul.f32 %v500, %v516
  %v525 = vmul.f32 %v501, %v517
  %v526 = vmul.f32 %v502, %v518
  %v527 = vmul.f32 %v503, %v519
  %v528 = vmul.f32 %v504, %v520
  %v529 = vmul.f32 %v505, %v521
  %v530 = vmul.f32 %v506, %v522
  %v531 = vmul.f32 %v507, %v523
  %v532 = vld [vmem:[%s3] sm:$0xff]
  %v533 = vld [vmem:[%s3 + $0x8] sm:$0xff]
  %v534 = vld [vmem:[%s3 + $0x10] sm:$0xff]
  %v535 = vld [vmem:[%s3 + $0x18] sm:$0xff]
  %v536 = vld [vmem:[%s3 + $0x20] sm:$0xff]
  %v537 = vld [vmem:[%s3 + $0x28] sm:$0xff]
  %v538 = vld [vmem:[%s3 + $0x30] sm:$0xff]
  %v539 = vld [vmem:[%s3 + $0x38] sm:$0xff]
  %v540 = vmul.f32 %v460, %v524
  %v541 = vmul.f32 %v461, %v525
  %v542 = vmul.f32 %v462, %v526
  %v543 = vmul.f32 %v463, %v527
  %v544 = vmul.f32 %v464, %v528
  %v545 = vmul.f32 %v465, %v529
  %v546 = vmul.f32 %v466, %v530
  %v547 = vmul.f32 %v467, %v531
  %v548 = vsub.f32 %v532, %v540
  %v549 = vsub.f32 %v533, %v541
  %v550 = vsub.f32 %v534, %v542
  %v551 = vsub.f32 %v535, %v543
  %v552 = vsub.f32 %v536, %v544
  %v553 = vsub.f32 %v537, %v545
  %v554 = vsub.f32 %v538, %v546
  %v555 = vsub.f32 %v539, %v547
  %557 = vset.pattern.permute.xlu0 0
  %558 = vperm.xlu0 %557, %v524
  %v559 = vpop.permute.xlu0 %558
  %562 = vset.pattern.permute.xlu0 0
  %563 = vperm.xlu0 %562, %v525
  %v564 = vpop.permute.xlu0 %563
  %567 = vset.pattern.permute.xlu0 0
  %568 = vperm.xlu0 %567, %v526
  %v569 = vpop.permute.xlu0 %568
  %572 = vset.pattern.permute.xlu0 0
  %573 = vperm.xlu0 %572, %v527
  %v574 = vpop.permute.xlu0 %573
  %577 = vset.pattern.permute.xlu0 0
  %578 = vperm.xlu0 %577, %v528
  %v579 = vpop.permute.xlu0 %578
  %582 = vset.pattern.permute.xlu0 0
  %583 = vperm.xlu0 %582, %v529
  %v584 = vpop.permute.xlu0 %583
  %587 = vset.pattern.permute.xlu0 0
  %588 = vperm.xlu0 %587, %v530
  %v589 = vpop.permute.xlu0 %588
  %592 = vset.pattern.permute.xlu0 0
  %593 = vperm.xlu0 %592, %v531
  %v594 = vpop.permute.xlu0 %593
  %v596 = vmul.f32 %v390, %v559
  %v597 = vmul.f32 %v393, %v564
  %v598 = vmul.f32 %v398, %v569
  %v599 = vmul.f32 %v401, %v574
  %v600 = vmul.f32 %v406, %v579
  %v601 = vmul.f32 %v409, %v584
  %v602 = vmul.f32 %v414, %v589
  %v603 = vmul.f32 %v417, %v594
  %605 = vset.pattern.permute.xlu0 0
  %606 = vperm.xlu0 %605, %v548
  %v607 = vpop.permute.xlu0 %606
  %610 = vset.pattern.permute.xlu0 0
  %611 = vperm.xlu0 %610, %v549
  %v612 = vpop.permute.xlu0 %611
  %615 = vset.pattern.permute.xlu0 0
  %616 = vperm.xlu0 %615, %v550
  %v617 = vpop.permute.xlu0 %616
  %620 = vset.pattern.permute.xlu0 0
  %621 = vperm.xlu0 %620, %v551
  %v622 = vpop.permute.xlu0 %621
  %625 = vset.pattern.permute.xlu0 0
  %626 = vperm.xlu0 %625, %v552
  %v627 = vpop.permute.xlu0 %626
  %630 = vset.pattern.permute.xlu0 0
  %631 = vperm.xlu0 %630, %v553
  %v632 = vpop.permute.xlu0 %631
  %635 = vset.pattern.permute.xlu0 0
  %636 = vperm.xlu0 %635, %v554
  %v637 = vpop.permute.xlu0 %636
  %640 = vset.pattern.permute.xlu0 0
  %641 = vperm.xlu0 %640, %v555
  %v642 = vpop.permute.xlu0 %641
  %v644 = vadd.f32 %v596, %v607
  %v645 = vadd.f32 %v597, %v612
  %v646 = vadd.f32 %v598, %v617
  %v647 = vadd.f32 %v599, %v622
  %v648 = vadd.f32 %v600, %v627
  %v649 = vadd.f32 %v601, %v632
  %v650 = vadd.f32 %v602, %v637
  %v651 = vadd.f32 %v603, %v642
  %v652 = vmax.f32 %v644, 0.0
  %v653 = vmax.f32 %v645, 0.0
  %v654 = vmax.f32 %v646, 0.0
  %v655 = vmax.f32 %v647, 0.0
  %v656 = vmax.f32 %v648, 0.0
  %v657 = vmax.f32 %v649, 0.0
  %v658 = vmax.f32 %v650, 0.0
  %v659 = vmax.f32 %v651, 0.0
  %660 = vst [vmem:[%s4] sm:$0xff] %v652
  %661 = vst [vmem:[%s4 + $0x8] sm:$0xff] %v653
  %662 = vst [vmem:[%s4 + $0x10] sm:$0xff] %v654
  %663 = vst [vmem:[%s4 + $0x18] sm:$0xff] %v655
  %664 = vst [vmem:[%s4 + $0x20] sm:$0xff] %v656
  %665 = vst [vmem:[%s4 + $0x28] sm:$0xff] %v657
  %666 = vst [vmem:[%s4 + $0x30] sm:$0xff] %v658
  %667 = vst [vmem:[%s4 + $0x38] sm:$0xff] %v659
  // Predicated region
  $region18: #{generator2_forward.7} parent=0 // pred_check
    _
  $region19: #{generator2_forward.7} parent=0 // pred_check_branch
    %669 = sbr.rel (0) target = $region21
  $region20: #{generator2_forward.7} parent=0 // pred_region
    _
  $region21: #{generator2_forward.7} parent=0 // pred_fallthru
    _
  // Predicated region
  $region22: #{generator2_forward.7} parent=0 // pred_check
    _
  $region23: #{generator2_forward.7} parent=0 // pred_check_branch
    %671 = sbr.rel (0) target = $region25
  $region24: #{generator2_forward.7} parent=0 // pred_region
    _
  $region25: #{generator2_forward.7} parent=0 // pred_fallthru
    _

// kernel: generator2_forward.8
$region0: #{generator2_forward.8}
  #allocation0 [shape = 'u32[]', space=smem, size = 0x4, offset = 0x4, fixed_abs, tag = 'smem constant byte address 0x4 - core index']
  #allocation1 [shape = 'u32[144,128]{1,0:T(1,128)}', space=vmem, size = 0x12000, scoped, tag = 'internal scratch']
  %s0 = inlined_call_operand.vmem [shape: bf16[32,1024], index: 0, kind: input, shape index: {}]
  %s1 = inlined_call_operand.vmem [shape: bf16[1024,256], index: 1, kind: input, shape index: {}]
  %s2 = inlined_call_operand.vmem [shape: f32[32,1], index: 2, kind: input, shape index: {}]
  %s3 = inlined_call_operand.vmem [shape: f32[32,1], index: 3, kind: input, shape index: {}]
  %s4 = inlined_call_operand.vmem [shape: f32[32,256], index: 4, kind: output, shape index: {}]
  %s5 = sld [smem:[#allocation0]]
  $region26: #{generator2_forward.8} parent=0
    _
  %s7 = ssub.s32 1, %s5
  %s8 = scalar_select 0, %s7, %s5
  // Predicated region
  $region2: #{generator2_forward.8} parent=0 // pred_check
    _
  $region3: #{generator2_forward.8} parent=0 // pred_check_branch
    %10 = sbr.rel (0) target = $region5
  $region4: #{generator2_forward.8} parent=0 // pred_region
    _
  $region5: #{generator2_forward.8} parent=0 // pred_fallthru
    _
  // Predicated region
  $region6: #{generator2_forward.8} parent=0 // pred_check
    _
  $region7: #{generator2_forward.8} parent=0 // pred_check_branch
    %12 = sbr.rel (0) target = $region9
  $region8: #{generator2_forward.8} parent=0 // pred_region
    _
  $region9: #{generator2_forward.8} parent=0 // pred_fallthru
    _
  // Predicated region
  $region10: #{generator2_forward.8} parent=0 // pred_check
    _
  $region11: #{generator2_forward.8} parent=0 // pred_check_branch
    %14 = sbr.rel (0) target = $region13
  $region12: #{generator2_forward.8} parent=0 // pred_region
    _
  $region13: #{generator2_forward.8} parent=0 // pred_fallthru
    _
  // Predicated region
  $region14: #{generator2_forward.8} parent=0 // pred_check
    _
  $region15: #{generator2_forward.8} parent=0 // pred_check_branch
    %16 = sbr.rel (0) target = $region17
  $region16: #{generator2_forward.8} parent=0 // pred_region
    _
  $region17: #{generator2_forward.8} parent=0 // pred_fallthru
    _
  %v17 = vld [vmem:[%s0] sm:$0xff]
  %v18 = vld [vmem:[%s0 + $0x8] sm:$0xff]
  %v19 = vld [vmem:[%s0 + $0x10] sm:$0xff]
  %v20 = vld [vmem:[%s0 + $0x18] sm:$0xff]
  %v21 = vld [vmem:[%s0 + $0x20] sm:$0xff]
  %v22 = vld [vmem:[%s0 + $0x28] sm:$0xff]
  %v23 = vld [vmem:[%s0 + $0x30] sm:$0xff]
  %v24 = vld [vmem:[%s0 + $0x38] sm:$0xff]
  %v25 = vld [vmem:[%s0 + $0x40] sm:$0xff]
  %v26 = vld [vmem:[%s0 + $0x48] sm:$0xff]
  %v27 = vld [vmem:[%s0 + $0x50] sm:$0xff]
  %v28 = vld [vmem:[%s0 + $0x58] sm:$0xff]
  %v29 = vld [vmem:[%s0 + $0x60] sm:$0xff]
  %v30 = vld [vmem:[%s0 + $0x68] sm:$0xff]
  %v31 = vld [vmem:[%s0 + $0x70] sm:$0xff]
  %v32 = vld [vmem:[%s0 + $0x78] sm:$0xff]
  %v33 = vld [vmem:[%s1] sm:$0xff]
  %v34 = vld [vmem:[%s1 + $0x8] sm:$0xff]
  %v35 = vld [vmem:[%s1 + $0x10] sm:$0xff]
  %v36 = vld [vmem:[%s1 + $0x18] sm:$0xff]
  %v37 = vld [vmem:[%s1 + $0x20] sm:$0xff]
  %v38 = vld [vmem:[%s1 + $0x28] sm:$0xff]
  %v39 = vld [vmem:[%s1 + $0x30] sm:$0xff]
  %v40 = vld [vmem:[%s1 + $0x38] sm:$0xff]
  %v41 = vld [vmem:[%s1 + $0x40] sm:$0xff]
  %v42 = vld [vmem:[%s1 + $0x48] sm:$0xff]
  %v43 = vld [vmem:[%s1 + $0x50] sm:$0xff]
  %v44 = vld [vmem:[%s1 + $0x58] sm:$0xff]
  %v45 = vld [vmem:[%s1 + $0x60] sm:$0xff]
  %v46 = vld [vmem:[%s1 + $0x68] sm:$0xff]
  %v47 = vld [vmem:[%s1 + $0x70] sm:$0xff]
  %v48 = vld [vmem:[%s1 + $0x78] sm:$0xff]
  %v49 = vld [vmem:[%s1 + $0x80] sm:$0xff]
  %v50 = vld [vmem:[%s1 + $0x88] sm:$0xff]
  %v51 = vld [vmem:[%s1 + $0x90] sm:$0xff]
  %v52 = vld [vmem:[%s1 + $0x98] sm:$0xff]
  %v53 = vld [vmem:[%s1 + $0xa0] sm:$0xff]
  %v54 = vld [vmem:[%s1 + $0xa8] sm:$0xff]
  %v55 = vld [vmem:[%s1 + $0xb0] sm:$0xff]
  %v56 = vld [vmem:[%s1 + $0xb8] sm:$0xff]
  %v57 = vld [vmem:[%s1 + $0xc0] sm:$0xff]
  %v58 = vld [vmem:[%s1 + $0xc8] sm:$0xff]
  %v59 = vld [vmem:[%s1 + $0xd0] sm:$0xff]
  %v60 = vld [vmem:[%s1 + $0xd8] sm:$0xff]
  %v61 = vld [vmem:[%s1 + $0xe0] sm:$0xff]
  %v62 = vld [vmem:[%s1 + $0xe8] sm:$0xff]
  %v63 = vld [vmem:[%s1 + $0xf0] sm:$0xff]
  %v64 = vld [vmem:[%s1 + $0xf8] sm:$0xff]
  %v65 = vld [vmem:[%s1 + $0x100] sm:$0xff]
  %v66 = vld [vmem:[%s1 + $0x108] sm:$0xff]
  %v67 = vld [vmem:[%s1 + $0x110] sm:$0xff]
  %v68 = vld [vmem:[%s1 + $0x118] sm:$0xff]
  %v69 = vld [vmem:[%s1 + $0x120] sm:$0xff]
  %v70 = vld [vmem:[%s1 + $0x128] sm:$0xff]
  %v71 = vld [vmem:[%s1 + $0x130] sm:$0xff]
  %v72 = vld [vmem:[%s1 + $0x138] sm:$0xff]
  %v73 = vld [vmem:[%s1 + $0x140] sm:$0xff]
  %v74 = vld [vmem:[%s1 + $0x148] sm:$0xff]
  %v75 = vld [vmem:[%s1 + $0x150] sm:$0xff]
  %v76 = vld [vmem:[%s1 + $0x158] sm:$0xff]
  %v77 = vld [vmem:[%s1 + $0x160] sm:$0xff]
  %v78 = vld [vmem:[%s1 + $0x168] sm:$0xff]
  %v79 = vld [vmem:[%s1 + $0x170] sm:$0xff]
  %v80 = vld [vmem:[%s1 + $0x178] sm:$0xff]
  %v81 = vld [vmem:[%s1 + $0x180] sm:$0xff]
  %v82 = vld [vmem:[%s1 + $0x188] sm:$0xff]
  %v83 = vld [vmem:[%s1 + $0x190] sm:$0xff]
  %v84 = vld [vmem:[%s1 + $0x198] sm:$0xff]
  %v85 = vld [vmem:[%s1 + $0x1a0] sm:$0xff]
  %v86 = vld [vmem:[%s1 + $0x1a8] sm:$0xff]
  %v87 = vld [vmem:[%s1 + $0x1b0] sm:$0xff]
  %v88 = vld [vmem:[%s1 + $0x1b8] sm:$0xff]
  %v89 = vld [vmem:[%s1 + $0x1c0] sm:$0xff]
  %v90 = vld [vmem:[%s1 + $0x1c8] sm:$0xff]
  %v91 = vld [vmem:[%s1 + $0x1d0] sm:$0xff]
  %v92 = vld [vmem:[%s1 + $0x1d8] sm:$0xff]
  %v93 = vld [vmem:[%s1 + $0x1e0] sm:$0xff]
  %v94 = vld [vmem:[%s1 + $0x1e8] sm:$0xff]
  %v95 = vld [vmem:[%s1 + $0x1f0] sm:$0xff]
  %v96 = vld [vmem:[%s1 + $0x1f8] sm:$0xff]
  %v97 = vld [vmem:[%s1 + $0x200] sm:$0xff]
  %v98 = vld [vmem:[%s1 + $0x208] sm:$0xff]
  %v99 = vld [vmem:[%s1 + $0x210] sm:$0xff]
  %v100 = vld [vmem:[%s1 + $0x218] sm:$0xff]
  %v101 = vld [vmem:[%s1 + $0x220] sm:$0xff]
  %v102 = vld [vmem:[%s1 + $0x228] sm:$0xff]
  %v103 = vld [vmem:[%s1 + $0x230] sm:$0xff]
  %v104 = vld [vmem:[%s1 + $0x238] sm:$0xff]
  %v105 = vld [vmem:[%s1 + $0x240] sm:$0xff]
  %v106 = vld [vmem:[%s1 + $0x248] sm:$0xff]
  %v107 = vld [vmem:[%s1 + $0x250] sm:$0xff]
  %v108 = vld [vmem:[%s1 + $0x258] sm:$0xff]
  %v109 = vld [vmem:[%s1 + $0x260] sm:$0xff]
  %v110 = vld [vmem:[%s1 + $0x268] sm:$0xff]
  %v111 = vld [vmem:[%s1 + $0x270] sm:$0xff]
  %v112 = vld [vmem:[%s1 + $0x278] sm:$0xff]
  %v113 = vld [vmem:[%s1 + $0x280] sm:$0xff]
  %v114 = vld [vmem:[%s1 + $0x288] sm:$0xff]
  %v115 = vld [vmem:[%s1 + $0x290] sm:$0xff]
  %v116 = vld [vmem:[%s1 + $0x298] sm:$0xff]
  %v117 = vld [vmem:[%s1 + $0x2a0] sm:$0xff]
  %v118 = vld [vmem:[%s1 + $0x2a8] sm:$0xff]
  %v119 = vld [vmem:[%s1 + $0x2b0] sm:$0xff]
  %v120 = vld [vmem:[%s1 + $0x2b8] sm:$0xff]
  %v121 = vld [vmem:[%s1 + $0x2c0] sm:$0xff]
  %v122 = vld [vmem:[%s1 + $0x2c8] sm:$0xff]
  %v123 = vld [vmem:[%s1 + $0x2d0] sm:$0xff]
  %v124 = vld [vmem:[%s1 + $0x2d8] sm:$0xff]
  %v125 = vld [vmem:[%s1 + $0x2e0] sm:$0xff]
  %v126 = vld [vmem:[%s1 + $0x2e8] sm:$0xff]
  %v127 = vld [vmem:[%s1 + $0x2f0] sm:$0xff]
  %v128 = vld [vmem:[%s1 + $0x2f8] sm:$0xff]
  %v129 = vld [vmem:[%s1 + $0x300] sm:$0xff]
  %v130 = vld [vmem:[%s1 + $0x308] sm:$0xff]
  %v131 = vld [vmem:[%s1 + $0x310] sm:$0xff]
  %v132 = vld [vmem:[%s1 + $0x318] sm:$0xff]
  %v133 = vld [vmem:[%s1 + $0x320] sm:$0xff]
  %v134 = vld [vmem:[%s1 + $0x328] sm:$0xff]
  %v135 = vld [vmem:[%s1 + $0x330] sm:$0xff]
  %v136 = vld [vmem:[%s1 + $0x338] sm:$0xff]
  %v137 = vld [vmem:[%s1 + $0x340] sm:$0xff]
  %v138 = vld [vmem:[%s1 + $0x348] sm:$0xff]
  %v139 = vld [vmem:[%s1 + $0x350] sm:$0xff]
  %v140 = vld [vmem:[%s1 + $0x358] sm:$0xff]
  %v141 = vld [vmem:[%s1 + $0x360] sm:$0xff]
  %v142 = vld [vmem:[%s1 + $0x368] sm:$0xff]
  %v143 = vld [vmem:[%s1 + $0x370] sm:$0xff]
  %v144 = vld [vmem:[%s1 + $0x378] sm:$0xff]
  %v145 = vld [vmem:[%s1 + $0x380] sm:$0xff]
  %v146 = vld [vmem:[%s1 + $0x388] sm:$0xff]
  %v147 = vld [vmem:[%s1 + $0x390] sm:$0xff]
  %v148 = vld [vmem:[%s1 + $0x398] sm:$0xff]
  %v149 = vld [vmem:[%s1 + $0x3a0] sm:$0xff]
  %v150 = vld [vmem:[%s1 + $0x3a8] sm:$0xff]
  %v151 = vld [vmem:[%s1 + $0x3b0] sm:$0xff]
  %v152 = vld [vmem:[%s1 + $0x3b8] sm:$0xff]
  %v153 = vld [vmem:[%s1 + $0x3c0] sm:$0xff]
  %v154 = vld [vmem:[%s1 + $0x3c8] sm:$0xff]
  %v155 = vld [vmem:[%s1 + $0x3d0] sm:$0xff]
  %v156 = vld [vmem:[%s1 + $0x3d8] sm:$0xff]
  %v157 = vld [vmem:[%s1 + $0x3e0] sm:$0xff]
  %v158 = vld [vmem:[%s1 + $0x3e8] sm:$0xff]
  %v159 = vld [vmem:[%s1 + $0x3f0] sm:$0xff]
  %v160 = vld [vmem:[%s1 + $0x3f8] sm:$0xff]
  %v177 = vunpack.c.l.b16 %v17
  %v178 = vunpack.c.h.b16 %v17
  %v179 = vunpack.c.l.b16 %v18
  %v180 = vunpack.c.h.b16 %v18
  %v181 = vunpack.c.l.b16 %v19
  %v182 = vunpack.c.h.b16 %v19
  %v183 = vunpack.c.l.b16 %v20
  %v184 = vunpack.c.h.b16 %v20
  %v185 = vunpack.c.l.b16 %v21
  %v186 = vunpack.c.h.b16 %v21
  %v187 = vunpack.c.l.b16 %v22
  %v188 = vunpack.c.h.b16 %v22
  %v189 = vunpack.c.l.b16 %v23
  %v190 = vunpack.c.h.b16 %v23
  %v191 = vunpack.c.l.b16 %v24
  %v192 = vunpack.c.h.b16 %v24
  %v193 = vunpack.c.l.b16 %v25
  %v194 = vunpack.c.h.b16 %v25
  %v195 = vunpack.c.l.b16 %v26
  %v196 = vunpack.c.h.b16 %v26
  %v197 = vunpack.c.l.b16 %v27
  %v198 = vunpack.c.h.b16 %v27
  %v199 = vunpack.c.l.b16 %v28
  %v200 = vunpack.c.h.b16 %v28
  %v201 = vunpack.c.l.b16 %v29
  %v202 = vunpack.c.h.b16 %v29
  %v203 = vunpack.c.l.b16 %v30
  %v204 = vunpack.c.h.b16 %v30
  %v205 = vunpack.c.l.b16 %v31
  %v206 = vunpack.c.h.b16 %v31
  %v207 = vunpack.c.l.b16 %v32
  %v208 = vunpack.c.h.b16 %v32
  %v209 = vpack.c.b16 %v185, %v177
  %v210 = vpack.c.b16 %v186, %v178
  %v211 = vpack.c.b16 %v187, %v179
  %v212 = vpack.c.b16 %v188, %v180
  %v213 = vpack.c.b16 %v189, %v181
  %v214 = vpack.c.b16 %v190, %v182
  %v215 = vpack.c.b16 %v191, %v183
  %v216 = vpack.c.b16 %v192, %v184
  %v217 = vpack.c.b16 %v201, %v193
  %v218 = vpack.c.b16 %v202, %v194
  %v219 = vpack.c.b16 %v203, %v195
  %v220 = vpack.c.b16 %v204, %v196
  %v221 = vpack.c.b16 %v205, %v197
  %v222 = vpack.c.b16 %v206, %v198
  %v223 = vpack.c.b16 %v207, %v199
  %v224 = vpack.c.b16 %v208, %v200
  %v369 = vunpack.c.l.b16 %v33
  %v370 = vunpack.c.h.b16 %v33
  %v371 = vunpack.c.l.b16 %v34
  %v372 = vunpack.c.h.b16 %v34
  %v373 = vunpack.c.l.b16 %v35
  %v374 = vunpack.c.h.b16 %v35
  %v375 = vunpack.c.l.b16 %v36
  %v376 = vunpack.c.h.b16 %v36
  %v377 = vunpack.c.l.b16 %v37
  %v378 = vunpack.c.h.b16 %v37
  %v379 = vunpack.c.l.b16 %v38
  %v380 = vunpack.c.h.b16 %v38
  %v381 = vunpack.c.l.b16 %v39
  %v382 = vunpack.c.h.b16 %v39
  %v383 = vunpack.c.l.b16 %v40
  %v384 = vunpack.c.h.b16 %v40
  %v385 = vunpack.c.l.b16 %v41
  %v386 = vunpack.c.h.b16 %v41
  %v387 = vunpack.c.l.b16 %v42
  %v388 = vunpack.c.h.b16 %v42
  %v389 = vunpack.c.l.b16 %v43
  %v390 = vunpack.c.h.b16 %v43
  %v391 = vunpack.c.l.b16 %v44
  %v392 = vunpack.c.h.b16 %v44
  %v393 = vunpack.c.l.b16 %v45
  %v394 = vunpack.c.h.b16 %v45
  %v395 = vunpack.c.l.b16 %v46
  %v396 = vunpack.c.h.b16 %v46
  %v397 = vunpack.c.l.b16 %v47
  %v398 = vunpack.c.h.b16 %v47
  %v399 = vunpack.c.l.b16 %v48
  %v400 = vunpack.c.h.b16 %v48
  %v401 = vunpack.c.l.b16 %v49
  %v402 = vunpack.c.h.b16 %v49
  %v403 = vunpack.c.l.b16 %v50
  %v404 = vunpack.c.h.b16 %v50
  %v405 = vunpack.c.l.b16 %v51
  %v406 = vunpack.c.h.b16 %v51
  %v407 = vunpack.c.l.b16 %v52
  %v408 = vunpack.c.h.b16 %v52
  %v409 = vunpack.c.l.b16 %v53
  %v410 = vunpack.c.h.b16 %v53
  %v411 = vunpack.c.l.b16 %v54
  %v412 = vunpack.c.h.b16 %v54
  %v413 = vunpack.c.l.b16 %v55
  %v414 = vunpack.c.h.b16 %v55
  %v415 = vunpack.c.l.b16 %v56
  %v416 = vunpack.c.h.b16 %v56
  %v417 = vunpack.c.l.b16 %v57
  %v418 = vunpack.c.h.b16 %v57
  %v419 = vunpack.c.l.b16 %v58
  %v420 = vunpack.c.h.b16 %v58
  %v421 = vunpack.c.l.b16 %v59
  %v422 = vunpack.c.h.b16 %v59
  %v423 = vunpack.c.l.b16 %v60
  %v424 = vunpack.c.h.b16 %v60
  %v425 = vunpack.c.l.b16 %v61
  %v426 = vunpack.c.h.b16 %v61
  %v427 = vunpack.c.l.b16 %v62
  %v428 = vunpack.c.h.b16 %v62
  %v429 = vunpack.c.l.b16 %v63
  %v430 = vunpack.c.h.b16 %v63
  %v431 = vunpack.c.l.b16 %v64
  %v432 = vunpack.c.h.b16 %v64
  %v433 = vunpack.c.l.b16 %v65
  %v434 = vunpack.c.h.b16 %v65
  %v435 = vunpack.c.l.b16 %v66
  %v436 = vunpack.c.h.b16 %v66
  %v437 = vunpack.c.l.b16 %v67
  %v438 = vunpack.c.h.b16 %v67
  %v439 = vunpack.c.l.b16 %v68
  %v440 = vunpack.c.h.b16 %v68
  %v441 = vunpack.c.l.b16 %v69
  %v442 = vunpack.c.h.b16 %v69
  %v443 = vunpack.c.l.b16 %v70
  %v444 = vunpack.c.h.b16 %v70
  %v445 = vunpack.c.l.b16 %v71
  %v446 = vunpack.c.h.b16 %v71
  %v447 = vunpack.c.l.b16 %v72
  %v448 = vunpack.c.h.b16 %v72
  %v449 = vunpack.c.l.b16 %v73
  %v450 = vunpack.c.h.b16 %v73
  %v451 = vunpack.c.l.b16 %v74
  %v452 = vunpack.c.h.b16 %v74
  %v453 = vunpack.c.l.b16 %v75
  %v454 = vunpack.c.h.b16 %v75
  %v455 = vunpack.c.l.b16 %v76
  %v456 = vunpack.c.h.b16 %v76
  %v457 = vunpack.c.l.b16 %v77
  %v458 = vunpack.c.h.b16 %v77
  %v459 = vunpack.c.l.b16 %v78
  %v460 = vunpack.c.h.b16 %v78
  %v461 = vunpack.c.l.b16 %v79
  %v462 = vunpack.c.h.b16 %v79
  %v463 = vunpack.c.l.b16 %v80
  %v464 = vunpack.c.h.b16 %v80
  %v465 = vunpack.c.l.b16 %v81
  %v466 = vunpack.c.h.b16 %v81
  %v467 = vunpack.c.l.b16 %v82
  %v468 = vunpack.c.h.b16 %v82
  %v469 = vunpack.c.l.b16 %v83
  %v470 = vunpack.c.h.b16 %v83
  %v471 = vunpack.c.l.b16 %v84
  %v472 = vunpack.c.h.b16 %v84
  %v473 = vunpack.c.l.b16 %v85
  %v474 = vunpack.c.h.b16 %v85
  %v475 = vunpack.c.l.b16 %v86
  %v476 = vunpack.c.h.b16 %v86
  %v477 = vunpack.c.l.b16 %v87
  %v478 = vunpack.c.h.b16 %v87
  %v479 = vunpack.c.l.b16 %v88
  %v480 = vunpack.c.h.b16 %v88
  %v481 = vunpack.c.l.b16 %v89
  %v482 = vunpack.c.h.b16 %v89
  %v483 = vunpack.c.l.b16 %v90
  %v484 = vunpack.c.h.b16 %v90
  %v485 = vunpack.c.l.b16 %v91
  %v486 = vunpack.c.h.b16 %v91
  %v487 = vunpack.c.l.b16 %v92
  %v488 = vunpack.c.h.b16 %v92
  %v489 = vunpack.c.l.b16 %v93
  %v490 = vunpack.c.h.b16 %v93
  %v491 = vunpack.c.l.b16 %v94
  %v492 = vunpack.c.h.b16 %v94
  %v493 = vunpack.c.l.b16 %v95
  %v494 = vunpack.c.h.b16 %v95
  %v495 = vunpack.c.l.b16 %v96
  %v496 = vunpack.c.h.b16 %v96
  %v497 = vunpack.c.l.b16 %v97
  %v498 = vunpack.c.h.b16 %v97
  %v499 = vunpack.c.l.b16 %v98
  %v500 = vunpack.c.h.b16 %v98
  %v501 = vunpack.c.l.b16 %v99
  %v502 = vunpack.c.h.b16 %v99
  %v503 = vunpack.c.l.b16 %v100
  %v504 = vunpack.c.h.b16 %v100
  %v505 = vunpack.c.l.b16 %v101
  %v506 = vunpack.c.h.b16 %v101
  %v507 = vunpack.c.l.b16 %v102
  %v508 = vunpack.c.h.b16 %v102
  %v509 = vunpack.c.l.b16 %v103
  %v510 = vunpack.c.h.b16 %v103
  %v511 = vunpack.c.l.b16 %v104
  %v512 = vunpack.c.h.b16 %v104
  %v513 = vunpack.c.l.b16 %v105
  %v514 = vunpack.c.h.b16 %v105
  %v515 = vunpack.c.l.b16 %v106
  %v516 = vunpack.c.h.b16 %v106
  %v517 = vunpack.c.l.b16 %v107
  %v518 = vunpack.c.h.b16 %v107
  %v519 = vunpack.c.l.b16 %v108
  %v520 = vunpack.c.h.b16 %v108
  %v521 = vunpack.c.l.b16 %v109
  %v522 = vunpack.c.h.b16 %v109
  %v523 = vunpack.c.l.b16 %v110
  %v524 = vunpack.c.h.b16 %v110
  %v525 = vunpack.c.l.b16 %v111
  %v526 = vunpack.c.h.b16 %v111
  %v527 = vunpack.c.l.b16 %v112
  %v528 = vunpack.c.h.b16 %v112
  %v529 = vunpack.c.l.b16 %v113
  %v530 = vunpack.c.h.b16 %v113
  %v531 = vunpack.c.l.b16 %v114
  %v532 = vunpack.c.h.b16 %v114
  %v533 = vunpack.c.l.b16 %v115
  %v534 = vunpack.c.h.b16 %v115
  %v535 = vunpack.c.l.b16 %v116
  %v536 = vunpack.c.h.b16 %v116
  %v537 = vunpack.c.l.b16 %v117
  %v538 = vunpack.c.h.b16 %v117
  %v539 = vunpack.c.l.b16 %v118
  %v540 = vunpack.c.h.b16 %v118
  %v541 = vunpack.c.l.b16 %v119
  %v542 = vunpack.c.h.b16 %v119
  %v543 = vunpack.c.l.b16 %v120
  %v544 = vunpack.c.h.b16 %v120
  %v545 = vunpack.c.l.b16 %v121
  %v546 = vunpack.c.h.b16 %v121
  %v547 = vunpack.c.l.b16 %v122
  %v548 = vunpack.c.h.b16 %v122
  %v549 = vunpack.c.l.b16 %v123
  %v550 = vunpack.c.h.b16 %v123
  %v551 = vunpack.c.l.b16 %v124
  %v552 = vunpack.c.h.b16 %v124
  %v553 = vunpack.c.l.b16 %v125
  %v554 = vunpack.c.h.b16 %v125
  %v555 = vunpack.c.l.b16 %v126
  %v556 = vunpack.c.h.b16 %v126
  %v557 = vunpack.c.l.b16 %v127
  %v558 = vunpack.c.h.b16 %v127
  %v559 = vunpack.c.l.b16 %v128
  %v560 = vunpack.c.h.b16 %v128
  %v561 = vunpack.c.l.b16 %v129
  %v562 = vunpack.c.h.b16 %v129
  %v563 = vunpack.c.l.b16 %v130
  %v564 = vunpack.c.h.b16 %v130
  %v565 = vunpack.c.l.b16 %v131
  %v566 = vunpack.c.h.b16 %v131
  %v567 = vunpack.c.l.b16 %v132
  %v568 = vunpack.c.h.b16 %v132
  %v569 = vunpack.c.l.b16 %v133
  %v570 = vunpack.c.h.b16 %v133
  %v571 = vunpack.c.l.b16 %v134
  %v572 = vunpack.c.h.b16 %v134
  %v573 = vunpack.c.l.b16 %v135
  %v574 = vunpack.c.h.b16 %v135
  %v575 = vunpack.c.l.b16 %v136
  %v576 = vunpack.c.h.b16 %v136
  %v577 = vunpack.c.l.b16 %v137
  %v578 = vunpack.c.h.b16 %v137
  %v579 = vunpack.c.l.b16 %v138
  %v580 = vunpack.c.h.b16 %v138
  %v581 = vunpack.c.l.b16 %v139
  %v582 = vunpack.c.h.b16 %v139
  %v583 = vunpack.c.l.b16 %v140
  %v584 = vunpack.c.h.b16 %v140
  %v585 = vunpack.c.l.b16 %v141
  %v586 = vunpack.c.h.b16 %v141
  %v587 = vunpack.c.l.b16 %v142
  %v588 = vunpack.c.h.b16 %v142
  %v589 = vunpack.c.l.b16 %v143
  %v590 = vunpack.c.h.b16 %v143
  %v591 = vunpack.c.l.b16 %v144
  %v592 = vunpack.c.h.b16 %v144
  %v593 = vunpack.c.l.b16 %v145
  %v594 = vunpack.c.h.b16 %v145
  %v595 = vunpack.c.l.b16 %v146
  %v596 = vunpack.c.h.b16 %v146
  %v597 = vunpack.c.l.b16 %v147
  %v598 = vunpack.c.h.b16 %v147
  %v599 = vunpack.c.l.b16 %v148
  %v600 = vunpack.c.h.b16 %v148
  %v601 = vunpack.c.l.b16 %v149
  %v602 = vunpack.c.h.b16 %v149
  %v603 = vunpack.c.l.b16 %v150
  %v604 = vunpack.c.h.b16 %v150
  %v605 = vunpack.c.l.b16 %v151
  %v606 = vunpack.c.h.b16 %v151
  %v607 = vunpack.c.l.b16 %v152
  %v608 = vunpack.c.h.b16 %v152
  %v609 = vunpack.c.l.b16 %v153
  %v610 = vunpack.c.h.b16 %v153
  %v611 = vunpack.c.l.b16 %v154
  %v612 = vunpack.c.h.b16 %v154
  %v613 = vunpack.c.l.b16 %v155
  %v614 = vunpack.c.h.b16 %v155
  %v615 = vunpack.c.l.b16 %v156
  %v616 = vunpack.c.h.b16 %v156
  %v617 = vunpack.c.l.b16 %v157
  %v618 = vunpack.c.h.b16 %v157
  %v619 = vunpack.c.l.b16 %v158
  %v620 = vunpack.c.h.b16 %v158
  %v621 = vunpack.c.l.b16 %v159
  %v622 = vunpack.c.h.b16 %v159
  %v623 = vunpack.c.l.b16 %v160
  %v624 = vunpack.c.h.b16 %v160
  %v625 = vpack.c.b16 %v371, %v369
  %v626 = vpack.c.b16 %v372, %v370
  %v627 = vpack.c.b16 %v375, %v373
  %v628 = vpack.c.b16 %v376, %v374
  %v629 = vpack.c.b16 %v379, %v377
  %v630 = vpack.c.b16 %v380, %v378
  %v631 = vpack.c.b16 %v383, %v381
  %v632 = vpack.c.b16 %v384, %v382
  %v633 = vpack.c.b16 %v387, %v385
  %v634 = vpack.c.b16 %v388, %v386
  %v635 = vpack.c.b16 %v391, %v389
  %v636 = vpack.c.b16 %v392, %v390
  %v637 = vpack.c.b16 %v395, %v393
  %v638 = vpack.c.b16 %v396, %v394
  %v639 = vpack.c.b16 %v399, %v397
  %v640 = vpack.c.b16 %v400, %v398
  %v641 = vpack.c.b16 %v403, %v401
  %v642 = vpack.c.b16 %v404, %v402
  %v643 = vpack.c.b16 %v407, %v405
  %v644 = vpack.c.b16 %v408, %v406
  %v645 = vpack.c.b16 %v411, %v409
  %v646 = vpack.c.b16 %v412, %v410
  %v647 = vpack.c.b16 %v415, %v413
  %v648 = vpack.c.b16 %v416, %v414
  %v649 = vpack.c.b16 %v419, %v417
  %v650 = vpack.c.b16 %v420, %v418
  %v651 = vpack.c.b16 %v423, %v421
  %v652 = vpack.c.b16 %v424, %v422
  %v653 = vpack.c.b16 %v427, %v425
  %v654 = vpack.c.b16 %v428, %v426
  %v655 = vpack.c.b16 %v431, %v429
  %v656 = vpack.c.b16 %v432, %v430
  %v657 = vpack.c.b16 %v435, %v433
  %v658 = vpack.c.b16 %v436, %v434
  %v659 = vpack.c.b16 %v439, %v437
  %v660 = vpack.c.b16 %v440, %v438
  %v661 = vpack.c.b16 %v443, %v441
  %v662 = vpack.c.b16 %v444, %v442
  %v663 = vpack.c.b16 %v447, %v445
  %v664 = vpack.c.b16 %v448, %v446
  %v665 = vpack.c.b16 %v451, %v449
  %v666 = vpack.c.b16 %v452, %v450
  %v667 = vpack.c.b16 %v455, %v453
  %v668 = vpack.c.b16 %v456, %v454
  %v669 = vpack.c.b16 %v459, %v457
  %v670 = vpack.c.b16 %v460, %v458
  %v671 = vpack.c.b16 %v463, %v461
  %v672 = vpack.c.b16 %v464, %v462
  %v673 = vpack.c.b16 %v467, %v465
  %v674 = vpack.c.b16 %v468, %v466
  %v675 = vpack.c.b16 %v471, %v469
  %v676 = vpack.c.b16 %v472, %v470
  %v677 = vpack.c.b16 %v475, %v473
  %v678 = vpack.c.b16 %v476, %v474
  %v679 = vpack.c.b16 %v479, %v477
  %v680 = vpack.c.b16 %v480, %v478
  %v681 = vpack.c.b16 %v483, %v481
  %v682 = vpack.c.b16 %v484, %v482
  %v683 = vpack.c.b16 %v487, %v485
  %v684 = vpack.c.b16 %v488, %v486
  %v685 = vpack.c.b16 %v491, %v489
  %v686 = vpack.c.b16 %v492, %v490
  %v687 = vpack.c.b16 %v495, %v493
  %v688 = vpack.c.b16 %v496, %v494
  %v689 = vpack.c.b16 %v499, %v497
  %v690 = vpack.c.b16 %v500, %v498
  %v691 = vpack.c.b16 %v503, %v501
  %v692 = vpack.c.b16 %v504, %v502
  %v693 = vpack.c.b16 %v507, %v505
  %v694 = vpack.c.b16 %v508, %v506
  %v695 = vpack.c.b16 %v511, %v509
  %v696 = vpack.c.b16 %v512, %v510
  %v697 = vpack.c.b16 %v515, %v513
  %v698 = vpack.c.b16 %v516, %v514
  %v699 = vpack.c.b16 %v519, %v517
  %v700 = vpack.c.b16 %v520, %v518
  %v701 = vpack.c.b16 %v523, %v521
  %v702 = vpack.c.b16 %v524, %v522
  %v703 = vpack.c.b16 %v527, %v525
  %v704 = vpack.c.b16 %v528, %v526
  %v705 = vpack.c.b16 %v531, %v529
  %v706 = vpack.c.b16 %v532, %v530
  %v707 = vpack.c.b16 %v535, %v533
  %v708 = vpack.c.b16 %v536, %v534
  %v709 = vpack.c.b16 %v539, %v537
  %v710 = vpack.c.b16 %v540, %v538
  %v711 = vpack.c.b16 %v543, %v541
  %v712 = vpack.c.b16 %v544, %v542
  %v713 = vpack.c.b16 %v547, %v545
  %v714 = vpack.c.b16 %v548, %v546
  %v715 = vpack.c.b16 %v551, %v549
  %v716 = vpack.c.b16 %v552, %v550
  %v717 = vpack.c.b16 %v555, %v553
  %v718 = vpack.c.b16 %v556, %v554
  %v719 = vpack.c.b16 %v559, %v557
  %v720 = vpack.c.b16 %v560, %v558
  %v721 = vpack.c.b16 %v563, %v561
  %v722 = vpack.c.b16 %v564, %v562
  %v723 = vpack.c.b16 %v567, %v565
  %v724 = vpack.c.b16 %v568, %v566
  %v725 = vpack.c.b16 %v571, %v569
  %v726 = vpack.c.b16 %v572, %v570
  %v727 = vpack.c.b16 %v575, %v573
  %v728 = vpack.c.b16 %v576, %v574
  %v729 = vpack.c.b16 %v579, %v577
  %v730 = vpack.c.b16 %v580, %v578
  %v731 = vpack.c.b16 %v583, %v581
  %v732 = vpack.c.b16 %v584, %v582
  %v733 = vpack.c.b16 %v587, %v585
  %v734 = vpack.c.b16 %v588, %v586
  %v735 = vpack.c.b16 %v591, %v589
  %v736 = vpack.c.b16 %v592, %v590
  %v737 = vpack.c.b16 %v595, %v593
  %v738 = vpack.c.b16 %v596, %v594
  %v739 = vpack.c.b16 %v599, %v597
  %v740 = vpack.c.b16 %v600, %v598
  %v741 = vpack.c.b16 %v603, %v601
  %v742 = vpack.c.b16 %v604, %v602
  %v743 = vpack.c.b16 %v607, %v605
  %v744 = vpack.c.b16 %v608, %v606
  %v745 = vpack.c.b16 %v611, %v609
  %v746 = vpack.c.b16 %v612, %v610
  %v747 = vpack.c.b16 %v615, %v613
  %v748 = vpack.c.b16 %v616, %v614
  %v749 = vpack.c.b16 %v619, %v617
  %v750 = vpack.c.b16 %v620, %v618
  %v751 = vpack.c.b16 %v623, %v621
  %v752 = vpack.c.b16 %v624, %v622
  %881 = vmatprep.subr.bf16.mxu0 %v640
  %882 = vmatpush1.bf16.msra.mxu0 %v639
  %883 = vmatprep.subr.bf16.mxu0 %v638
  %884 = vmatpush1.bf16.msra.mxu0 %v637
  %885 = vmatprep.subr.bf16.mxu0 %v636
  %886 = vmatpush1.bf16.msra.mxu0 %v635
  %887 = vmatprep.subr.bf16.mxu0 %v634
  %888 = vmatpush1.bf16.msra.mxu0 %v633
  %889 = vmatprep.subr.bf16.mxu0 %v632
  %890 = vmatpush1.bf16.msra.mxu0 %v631
  %891 = vmatprep.subr.bf16.mxu0 %v630
  %892 = vmatpush1.bf16.msra.mxu0 %v629
  %893 = vmatprep.subr.bf16.mxu0 %v628
  %894 = vmatpush1.bf16.msra.mxu0 %v627
  %895 = vmatprep.subr.bf16.mxu0 %v626
  %896 = vmatpush1.bf16.msra.mxu0 %v625
  %897 = vmatprep.subr.bf16.mxu0 %v656
  %898 = vmatpush2.bf16.msra.mxu0 %v655
  %899 = vmatprep.subr.bf16.mxu0 %v654
  %900 = vmatpush2.bf16.msra.mxu0 %v653
  %901 = vmatprep.subr.bf16.mxu0 %v652
  %902 = vmatpush2.bf16.msra.mxu0 %v651
  %903 = vmatprep.subr.bf16.mxu0 %v650
  %904 = vmatpush2.bf16.msra.mxu0 %v649
  %905 = vmatprep.subr.bf16.mxu0 %v648
  %906 = vmatpush2.bf16.msra.mxu0 %v647
  %907 = vmatprep.subr.bf16.mxu0 %v646
  %908 = vmatpush2.bf16.msra.mxu0 %v645
  %909 = vmatprep.subr.bf16.mxu0 %v644
  %910 = vmatpush2.bf16.msra.mxu0 %v643
  %911 = vmatprep.subr.bf16.mxu0 %v642
  %912 = vmatpush2.bf16.msra.mxu0 %v641
  %913 = vmatprep.mubr.bf16.mxu0 %v210
  %914 = vmatmul.mubr.bf16.gmra.mxu0 %v209
  %v915 = vpop.f32.mrf.mxu0
  %v916 = vadd.f32 0.0, %v915
  %v917 = vpop.f32.mrf.mxu0
  %v918 = vadd.f32 0.0, %v917
  %v919 = vpop.f32.mrf.mxu0
  %v920 = vadd.f32 0.0, %v919
  %v921 = vpop.f32.mrf.mxu0
  %v922 = vadd.f32 0.0, %v921
  %923 = vmatprep.mubr.bf16.mxu0 %v218
  %924 = vmatmul.mubr.bf16.gmra.mxu0 %v217
  %v925 = vpop.f32.mrf.mxu0
  %v926 = vadd.f32 0.0, %v925
  %v927 = vpop.f32.mrf.mxu0
  %v928 = vadd.f32 0.0, %v927
  %v929 = vpop.f32.mrf.mxu0
  %v930 = vadd.f32 0.0, %v929
  %v931 = vpop.f32.mrf.mxu0
  %v932 = vadd.f32 0.0, %v931
  %933 = vdwg.mxu0
  %934 = vmatprep.subr.bf16.mxu0 %v672
  %935 = vmatpush1.bf16.msra.mxu0 %v671
  %936 = vmatprep.subr.bf16.mxu0 %v670
  %937 = vmatpush1.bf16.msra.mxu0 %v669
  %938 = vmatprep.subr.bf16.mxu0 %v668
  %939 = vmatpush1.bf16.msra.mxu0 %v667
  %940 = vmatprep.subr.bf16.mxu0 %v666
  %941 = vmatpush1.bf16.msra.mxu0 %v665
  %942 = vmatprep.subr.bf16.mxu0 %v664
  %943 = vmatpush1.bf16.msra.mxu0 %v663
  %944 = vmatprep.subr.bf16.mxu0 %v662
  %945 = vmatpush1.bf16.msra.mxu0 %v661
  %946 = vmatprep.subr.bf16.mxu0 %v660
  %947 = vmatpush1.bf16.msra.mxu0 %v659
  %948 = vmatprep.subr.bf16.mxu0 %v658
  %949 = vmatpush1.bf16.msra.mxu0 %v657
  %950 = vmatprep.subr.bf16.mxu0 %v688
  %951 = vmatpush2.bf16.msra.mxu0 %v687
  %952 = vmatprep.subr.bf16.mxu0 %v686
  %953 = vmatpush2.bf16.msra.mxu0 %v685
  %954 = vmatprep.subr.bf16.mxu0 %v684
  %955 = vmatpush2.bf16.msra.mxu0 %v683
  %956 = vmatprep.subr.bf16.mxu0 %v682
  %957 = vmatpush2.bf16.msra.mxu0 %v681
  %958 = vmatprep.subr.bf16.mxu0 %v680
  %959 = vmatpush2.bf16.msra.mxu0 %v679
  %960 = vmatprep.subr.bf16.mxu0 %v678
  %961 = vmatpush2.bf16.msra.mxu0 %v677
  %962 = vmatprep.subr.bf16.mxu0 %v676
  %963 = vmatpush2.bf16.msra.mxu0 %v675
  %964 = vmatprep.subr.bf16.mxu0 %v674
  %965 = vmatpush2.bf16.msra.mxu0 %v673
  %966 = vmatprep.mubr.bf16.mxu0 %v212
  %967 = vmatmul.mubr.bf16.gmra.mxu0 %v211
  %v968 = vpop.f32.mrf.mxu0
  %v969 = vadd.f32 %v916, %v968
  %v970 = vpop.f32.mrf.mxu0
  %v971 = vadd.f32 %v918, %v970
  %v972 = vpop.f32.mrf.mxu0
  %v973 = vadd.f32 %v920, %v972
  %v974 = vpop.f32.mrf.mxu0
  %v975 = vadd.f32 %v922, %v974
  %976 = vmatprep.mubr.bf16.mxu0 %v220
  %977 = vmatmul.mubr.bf16.gmra.mxu0 %v219
  %v978 = vpop.f32.mrf.mxu0
  %v979 = vadd.f32 %v926, %v978
  %v980 = vpop.f32.mrf.mxu0
  %v981 = vadd.f32 %v928, %v980
  %v982 = vpop.f32.mrf.mxu0
  %v983 = vadd.f32 %v930, %v982
  %v984 = vpop.f32.mrf.mxu0
  %v985 = vadd.f32 %v932, %v984
  %986 = vdwg.mxu0
  %987 = vmatprep.subr.bf16.mxu0 %v704
  %988 = vmatpush1.bf16.msra.mxu0 %v703
  %989 = vmatprep.subr.bf16.mxu0 %v702
  %990 = vmatpush1.bf16.msra.mxu0 %v701
  %991 = vmatprep.subr.bf16.mxu0 %v700
  %992 = vmatpush1.bf16.msra.mxu0 %v699
  %993 = vmatprep.subr.bf16.mxu0 %v698
  %994 = vmatpush1.bf16.msra.mxu0 %v697
  %995 = vmatprep.subr.bf16.mxu0 %v696
  %996 = vmatpush1.bf16.msra.mxu0 %v695
  %997 = vmatprep.subr.bf16.mxu0 %v694
  %998 = vmatpush1.bf16.msra.mxu0 %v693
  %999 = vmatprep.subr.bf16.mxu0 %v692
  %1000 = vmatpush1.bf16.msra.mxu0 %v691
  %1001 = vmatprep.subr.bf16.mxu0 %v690
  %1002 = vmatpush1.bf16.msra.mxu0 %v689
  %1003 = vmatprep.subr.bf16.mxu0 %v720
  %1004 = vmatpush2.bf16.msra.mxu0 %v719
  %1005 = vmatprep.subr.bf16.mxu0 %v718
  %1006 = vmatpush2.bf16.msra.mxu0 %v717
  %1007 = vmatprep.subr.bf16.mxu0 %v716
  %1008 = vmatpush2.bf16.msra.mxu0 %v715
  %1009 = vmatprep.subr.bf16.mxu0 %v714
  %1010 = vmatpush2.bf16.msra.mxu0 %v713
  %1011 = vmatprep.subr.bf16.mxu0 %v712
  %1012 = vmatpush2.bf16.msra.mxu0 %v711
  %1013 = vmatprep.subr.bf16.mxu0 %v710
  %1014 = vmatpush2.bf16.msra.mxu0 %v709
  %1015 = vmatprep.subr.bf16.mxu0 %v708
  %1016 = vmatpush2.bf16.msra.mxu0 %v707
  %1017 = vmatprep.subr.bf16.mxu0 %v706
  %1018 = vmatpush2.bf16.msra.mxu0 %v705
  %1019 = vmatprep.mubr.bf16.mxu0 %v214
  %1020 = vmatmul.mubr.bf16.gmra.mxu0 %v213
  %v1021 = vpop.f32.mrf.mxu0
  %v1022 = vadd.f32 %v969, %v1021
  %v1023 = vpop.f32.mrf.mxu0
  %v1024 = vadd.f32 %v971, %v1023
  %v1025 = vpop.f32.mrf.mxu0
  %v1026 = vadd.f32 %v973, %v1025
  %v1027 = vpop.f32.mrf.mxu0
  %v1028 = vadd.f32 %v975, %v1027
  %1029 = vmatprep.mubr.bf16.mxu0 %v222
  %1030 = vmatmul.mubr.bf16.gmra.mxu0 %v221
  %v1031 = vpop.f32.mrf.mxu0
  %v1032 = vadd.f32 %v979, %v1031
  %v1033 = vpop.f32.mrf.mxu0
  %v1034 = vadd.f32 %v981, %v1033
  %v1035 = vpop.f32.mrf.mxu0
  %v1036 = vadd.f32 %v983, %v1035
  %v1037 = vpop.f32.mrf.mxu0
  %v1038 = vadd.f32 %v985, %v1037
  %1039 = vdwg.mxu0
  %1040 = vmatprep.subr.bf16.mxu0 %v736
  %1041 = vmatpush1.bf16.msra.mxu0 %v735
  %1042 = vmatprep.subr.bf16.mxu0 %v734
  %1043 = vmatpush1.bf16.msra.mxu0 %v733
  %1044 = vmatprep.subr.bf16.mxu0 %v732
  %1045 = vmatpush1.bf16.msra.mxu0 %v731
  %1046 = vmatprep.subr.bf16.mxu0 %v730
  %1047 = vmatpush1.bf16.msra.mxu0 %v729
  %1048 = vmatprep.subr.bf16.mxu0 %v728
  %1049 = vmatpush1.bf16.msra.mxu0 %v727
  %1050 = vmatprep.subr.bf16.mxu0 %v726
  %1051 = vmatpush1.bf16.msra.mxu0 %v725
  %1052 = vmatprep.subr.bf16.mxu0 %v724
  %1053 = vmatpush1.bf16.msra.mxu0 %v723
  %1054 = vmatprep.subr.bf16.mxu0 %v722
  %1055 = vmatpush1.bf16.msra.mxu0 %v721
  %1056 = vmatprep.subr.bf16.mxu0 %v752
  %1057 = vmatpush2.bf16.msra.mxu0 %v751
  %1058 = vmatprep.subr.bf16.mxu0 %v750
  %1059 = vmatpush2.bf16.msra.mxu0 %v749
  %1060 = vmatprep.subr.bf16.mxu0 %v748
  %1061 = vmatpush2.bf16.msra.mxu0 %v747
  %1062 = vmatprep.subr.bf16.mxu0 %v746
  %1063 = vmatpush2.bf16.msra.mxu0 %v745
  %1064 = vmatprep.subr.bf16.mxu0 %v744
  %1065 = vmatpush2.bf16.msra.mxu0 %v743
  %1066 = vmatprep.subr.bf16.mxu0 %v742
  %1067 = vmatpush2.bf16.msra.mxu0 %v741
  %1068 = vmatprep.subr.bf16.mxu0 %v740
  %1069 = vmatpush2.bf16.msra.mxu0 %v739
  %1070 = vmatprep.subr.bf16.mxu0 %v738
  %1071 = vmatpush2.bf16.msra.mxu0 %v737
  %1072 = vmatprep.mubr.bf16.mxu0 %v216
  %1073 = vmatmul.mubr.bf16.gmra.mxu0 %v215
  %v1074 = vpop.f32.mrf.mxu0
  %v1075 = vadd.f32 %v1022, %v1074
  %v1076 = vpop.f32.mrf.mxu0
  %v1077 = vadd.f32 %v1024, %v1076
  %v1078 = vpop.f32.mrf.mxu0
  %v1079 = vadd.f32 %v1026, %v1078
  %v1080 = vpop.f32.mrf.mxu0
  %v1081 = vadd.f32 %v1028, %v1080
  %1082 = vmatprep.mubr.bf16.mxu0 %v224
  %1083 = vmatmul.mubr.bf16.gmra.mxu0 %v223
  %v1084 = vpop.f32.mrf.mxu0
  %v1085 = vadd.f32 %v1032, %v1084
  %v1086 = vpop.f32.mrf.mxu0
  %v1087 = vadd.f32 %v1034, %v1086
  %v1088 = vpop.f32.mrf.mxu0
  %v1089 = vadd.f32 %v1036, %v1088
  %v1090 = vpop.f32.mrf.mxu0
  %v1091 = vadd.f32 %v1038, %v1090
  %1092 = vdwg.mxu0
  %v1093 = vadd.f32 %v1075, %v1077
  %1094 = vadd.xlane.f32.xlu0 %v1093
  %v1095 = vpop.xlane.xlu0 %1094
  %v1096 = vadd.f32 %v1079, %v1081
  %1097 = vadd.xlane.f32.xlu0 %v1096
  %v1098 = vpop.xlane.xlu0 %1097
  %v1099 = vadd.f32 %v1085, %v1087
  %1100 = vadd.xlane.f32.xlu0 %v1099
  %v1101 = vpop.xlane.xlu0 %1100
  %v1102 = vadd.f32 %v1089, %v1091
  %1103 = vadd.xlane.f32.xlu0 %v1102
  %v1104 = vpop.xlane.xlu0 %1103
  %v1105 = vmul.f32 %v1075, %v1075
  %v1106 = vmul.f32 %v1077, %v1077
  %v1107 = vmul.f32 %v1079, %v1079
  %v1108 = vmul.f32 %v1081, %v1081
  %v1109 = vmul.f32 %v1085, %v1085
  %v1110 = vmul.f32 %v1087, %v1087
  %v1111 = vmul.f32 %v1089, %v1089
  %v1112 = vmul.f32 %v1091, %v1091
  %v1113 = vadd.f32 %v1105, %v1106
  %1114 = vadd.xlane.f32.xlu0 %v1113
  %v1115 = vpop.xlane.xlu0 %1114
  %v1116 = vadd.f32 %v1107, %v1108
  %1117 = vadd.xlane.f32.xlu0 %v1116
  %v1118 = vpop.xlane.xlu0 %1117
  %v1119 = vadd.f32 %v1109, %v1110
  %1120 = vadd.xlane.f32.xlu0 %v1119
  %v1121 = vpop.xlane.xlu0 %1120
  %v1122 = vadd.f32 %v1111, %v1112
  %1123 = vadd.xlane.f32.xlu0 %v1122
  %v1124 = vpop.xlane.xlu0 %1123
  %v1125 = vmul.f32 %v1095, 0.00390625
  %v1126 = vmul.f32 %v1098, 0.00390625
  %v1127 = vmul.f32 %v1101, 0.00390625
  %v1128 = vmul.f32 %v1104, 0.00390625
  %v1129 = vmul.f32 %v1115, 0.00390625
  %v1130 = vmul.f32 %v1118, 0.00390625
  %v1131 = vmul.f32 %v1121, 0.00390625
  %v1132 = vmul.f32 %v1124, 0.00390625
  %v1133 = vmul.f32 %v1125, %v1125
  %v1134 = vmul.f32 %v1126, %v1126
  %v1135 = vmul.f32 %v1127, %v1127
  %v1136 = vmul.f32 %v1128, %v1128
  %v1137 = vsub.f32 %v1129, %v1133
  %v1138 = vsub.f32 %v1130, %v1134
  %v1139 = vsub.f32 %v1131, %v1135
  %v1140 = vsub.f32 %v1132, %v1136
  %v1141 = vmax.f32 %v1137, 0.0
  %v1142 = vmax.f32 %v1138, 0.0
  %v1143 = vmax.f32 %v1139, 0.0
  %v1144 = vmax.f32 %v1140, 0.0
  %v1145 = vld [vmem:[%s2] sm:$0xff]
  %v1146 = vld [vmem:[%s2 + $0x8] sm:$0xff]
  %v1147 = vld [vmem:[%s2 + $0x10] sm:$0xff]
  %v1148 = vld [vmem:[%s2 + $0x18] sm:$0xff]
  %v1149 = vadd.f32 %v1141, 1e-05
  %v1150 = vadd.f32 %v1142, 1e-05
  %v1151 = vadd.f32 %v1143, 1e-05
  %v1152 = vadd.f32 %v1144, 1e-05
  %v1153 = vrsqrt.pop %v1149
  %v1154 = vrsqrt.pop %v1150
  %v1155 = vrsqrt.pop %v1151
  %v1156 = vrsqrt.pop %v1152
  %v1157 = vmul.f32 %v1145, %v1153
  %v1158 = vmul.f32 %v1146, %v1154
  %v1159 = vmul.f32 %v1147, %v1155
  %v1160 = vmul.f32 %v1148, %v1156
  %v1161 = vld [vmem:[%s3] sm:$0xff]
  %v1162 = vld [vmem:[%s3 + $0x8] sm:$0xff]
  %v1163 = vld [vmem:[%s3 + $0x10] sm:$0xff]
  %v1164 = vld [vmem:[%s3 + $0x18] sm:$0xff]
  %v1165 = vmul.f32 %v1125, %v1157
  %v1166 = vmul.f32 %v1126, %v1158
  %v1167 = vmul.f32 %v1127, %v1159
  %v1168 = vmul.f32 %v1128, %v1160
  %v1169 = vsub.f32 %v1161, %v1165
  %v1170 = vsub.f32 %v1162, %v1166
  %v1171 = vsub.f32 %v1163, %v1167
  %v1172 = vsub.f32 %v1164, %v1168
  %1174 = vset.pattern.permute.xlu0 0
  %1175 = vperm.xlu0 %1174, %v1157
  %v1176 = vpop.permute.xlu0 %1175
  %1179 = vset.pattern.permute.xlu0 0
  %1180 = vperm.xlu0 %1179, %v1158
  %v1181 = vpop.permute.xlu0 %1180
  %1184 = vset.pattern.permute.xlu0 0
  %1185 = vperm.xlu0 %1184, %v1159
  %v1186 = vpop.permute.xlu0 %1185
  %1189 = vset.pattern.permute.xlu0 0
  %1190 = vperm.xlu0 %1189, %v1160
  %v1191 = vpop.permute.xlu0 %1190
  %v1193 = vmul.f32 %v1075, %v1176
  %v1194 = vmul.f32 %v1077, %v1176
  %v1195 = vmul.f32 %v1079, %v1181
  %v1196 = vmul.f32 %v1081, %v1181
  %v1197 = vmul.f32 %v1085, %v1186
  %v1198 = vmul.f32 %v1087, %v1186
  %v1199 = vmul.f32 %v1089, %v1191
  %v1200 = vmul.f32 %v1091, %v1191
  %1202 = vset.pattern.permute.xlu0 0
  %1203 = vperm.xlu0 %1202, %v1169
  %v1204 = vpop.permute.xlu0 %1203
  %1207 = vset.pattern.permute.xlu0 0
  %1208 = vperm.xlu0 %1207, %v1170
  %v1209 = vpop.permute.xlu0 %1208
  %1212 = vset.pattern.permute.xlu0 0
  %1213 = vperm.xlu0 %1212, %v1171
  %v1214 = vpop.permute.xlu0 %1213
  %1217 = vset.pattern.permute.xlu0 0
  %1218 = vperm.xlu0 %1217, %v1172
  %v1219 = vpop.permute.xlu0 %1218
  %v1221 = vadd.f32 %v1193, %v1204
  %v1222 = vadd.f32 %v1194, %v1204
  %v1223 = vadd.f32 %v1195, %v1209
  %v1224 = vadd.f32 %v1196, %v1209
  %v1225 = vadd.f32 %v1197, %v1214
  %v1226 = vadd.f32 %v1198, %v1214
  %v1227 = vadd.f32 %v1199, %v1219
  %v1228 = vadd.f32 %v1200, %v1219
  %v1229 = vmax.f32 %v1221, 0.0
  %v1230 = vmax.f32 %v1222, 0.0
  %v1231 = vmax.f32 %v1223, 0.0
  %v1232 = vmax.f32 %v1224, 0.0
  %v1233 = vmax.f32 %v1225, 0.0
  %v1234 = vmax.f32 %v1226, 0.0
  %v1235 = vmax.f32 %v1227, 0.0
  %v1236 = vmax.f32 %v1228, 0.0
  %1237 = vst [vmem:[%s4] sm:$0xff] %v1229
  %1238 = vst [vmem:[%s4 + $0x8] sm:$0xff] %v1230
  %1239 = vst [vmem:[%s4 + $0x10] sm:$0xff] %v1231
  %1240 = vst [vmem:[%s4 + $0x18] sm:$0xff] %v1232
  %1241 = vst [vmem:[%s4 + $0x20] sm:$0xff] %v1233
  %1242 = vst [vmem:[%s4 + $0x28] sm:$0xff] %v1234
  %1243 = vst [vmem:[%s4 + $0x30] sm:$0xff] %v1235
  %1244 = vst [vmem:[%s4 + $0x38] sm:$0xff] %v1236
  // Predicated region
  $region18: #{generator2_forward.8} parent=0 // pred_check
    _
  $region19: #{generator2_forward.8} parent=0 // pred_check_branch
    %1246 = sbr.rel (0) target = $region21
  $region20: #{generator2_forward.8} parent=0 // pred_region
    _
  $region21: #{generator2_forward.8} parent=0 // pred_fallthru
    _
  // Predicated region
  $region22: #{generator2_forward.8} parent=0 // pred_check
    _
  $region23: #{generator2_forward.8} parent=0 // pred_check_branch
    %1248 = sbr.rel (0) target = $region25
  $region24: #{generator2_forward.8} parent=0 // pred_region
    _
  $region25: #{generator2_forward.8} parent=0 // pred_fallthru
    _

// kernel: generator2_forward.9
$region0: #{generator2_forward.9}
  #allocation0 [shape = 'u32[]', space=smem, size = 0x4, offset = 0x4, fixed_abs, tag = 'smem constant byte address 0x4 - core index']
  #allocation1 [shape = 'u32[144,128]{1,0:T(1,128)}', space=vmem, size = 0x12000, scoped, tag = 'internal scratch']
  %s0 = inlined_call_operand.vmem [shape: bf16[16,512], index: 0, kind: input, shape index: {}]
  %s1 = inlined_call_operand.vmem [shape: bf16[512,640], index: 1, kind: input, shape index: {}]
  %s2 = inlined_call_operand.vmem [shape: f32[16,1], index: 2, kind: input, shape index: {}]
  %s3 = inlined_call_operand.vmem [shape: f32[16,1], index: 3, kind: input, shape index: {}]
  %s4 = inlined_call_operand.vmem [shape: f32[16,640], index: 4, kind: output, shape index: {}]
  %s5 = sld [smem:[#allocation0]]
  $region26: #{generator2_forward.9} parent=0
    _
  %s7 = ssub.s32 1, %s5
  %s8 = scalar_select 0, %s7, %s5
  // Predicated region
  $region2: #{generator2_forward.9} parent=0 // pred_check
    _
  $region3: #{generator2_forward.9} parent=0 // pred_check_branch
    %10 = sbr.rel (0) target = $region5
  $region4: #{generator2_forward.9} parent=0 // pred_region
    _
  $region5: #{generator2_forward.9} parent=0 // pred_fallthru
    _
  // Predicated region
  $region6: #{generator2_forward.9} parent=0 // pred_check
    _
  $region7: #{generator2_forward.9} parent=0 // pred_check_branch
    %12 = sbr.rel (0) target = $region9
  $region8: #{generator2_forward.9} parent=0 // pred_region
    _
  $region9: #{generator2_forward.9} parent=0 // pred_fallthru
    _
  // Predicated region
  $region10: #{generator2_forward.9} parent=0 // pred_check
    _
  $region11: #{generator2_forward.9} parent=0 // pred_check_branch
    %14 = sbr.rel (0) target = $region13
  $region12: #{generator2_forward.9} parent=0 // pred_region
    _
  $region13: #{generator2_forward.9} parent=0 // pred_fallthru
    _
  // Predicated region
  $region14: #{generator2_forward.9} parent=0 // pred_check
    _
  $region15: #{generator2_forward.9} parent=0 // pred_check_branch
    %16 = sbr.rel (0) target = $region17
  $region16: #{generator2_forward.9} parent=0 // pred_region
    _
  $region17: #{generator2_forward.9} parent=0 // pred_fallthru
    _
  %v18 = vld [vmem:[%s0] sm:$0xff]
  %v19 = vld [vmem:[%s0 + $0x8] sm:$0xff]
  %v20 = vld [vmem:[%s0 + $0x10] sm:$0xff]
  %v21 = vld [vmem:[%s0 + $0x18] sm:$0xff]
  %v22 = vld [vmem:[%s1] sm:$0xff]
  %v23 = vld [vmem:[%s1 + $0x8] sm:$0xff]
  %v24 = vld [vmem:[%s1 + $0x10] sm:$0xf]
  %v25 = vld [vmem:[%s1 + $0x14] sm:$0xff]
  %v26 = vld [vmem:[%s1 + $0x1c] sm:$0xff]
  %v27 = vld [vmem:[%s1 + $0x24] sm:$0xf]
  %v28 = vld [vmem:[%s1 + $0x28] sm:$0xff]
  %v29 = vld [vmem:[%s1 + $0x30] sm:$0xff]
  %v30 = vld [vmem:[%s1 + $0x38] sm:$0xf]
  %v31 = vld [vmem:[%s1 + $0x3c] sm:$0xff]
  %v32 = vld [vmem:[%s1 + $0x44] sm:$0xff]
  %v33 = vld [vmem:[%s1 + $0x4c] sm:$0xf]
  %v34 = vld [vmem:[%s1 + $0x50] sm:$0xff]
  %v35 = vld [vmem:[%s1 + $0x58] sm:$0xff]
  %v36 = vld [vmem:[%s1 + $0x60] sm:$0xf]
  %v37 = vld [vmem:[%s1 + $0x64] sm:$0xff]
  %v38 = vld [vmem:[%s1 + $0x6c] sm:$0xff]
  %v39 = vld [vmem:[%s1 + $0x74] sm:$0xf]
  %v40 = vld [vmem:[%s1 + $0x78] sm:$0xff]
  %v41 = vld [vmem:[%s1 + $0x80] sm:$0xff]
  %v42 = vld [vmem:[%s1 + $0x88] sm:$0xf]
  %v43 = vld [vmem:[%s1 + $0x8c] sm:$0xff]
  %v44 = vld [vmem:[%s1 + $0x94] sm:$0xff]
  %v45 = vld [vmem:[%s1 + $0x9c] sm:$0xf]
  %v46 = vld [vmem:[%s1 + $0xa0] sm:$0xff]
  %v47 = vld [vmem:[%s1 + $0xa8] sm:$0xff]
  %v48 = vld [vmem:[%s1 + $0xb0] sm:$0xf]
  %v49 = vld [vmem:[%s1 + $0xb4] sm:$0xff]
  %v50 = vld [vmem:[%s1 + $0xbc] sm:$0xff]
  %v51 = vld [vmem:[%s1 + $0xc4] sm:$0xf]
  %v52 = vld [vmem:[%s1 + $0xc8] sm:$0xff]
  %v53 = vld [vmem:[%s1 + $0xd0] sm:$0xff]
  %v54 = vld [vmem:[%s1 + $0xd8] sm:$0xf]
  %v55 = vld [vmem:[%s1 + $0xdc] sm:$0xff]
  %v56 = vld [vmem:[%s1 + $0xe4] sm:$0xff]
  %v57 = vld [vmem:[%s1 + $0xec] sm:$0xf]
  %v58 = vld [vmem:[%s1 + $0xf0] sm:$0xff]
  %v59 = vld [vmem:[%s1 + $0xf8] sm:$0xff]
  %v60 = vld [vmem:[%s1 + $0x100] sm:$0xf]
  %v61 = vld [vmem:[%s1 + $0x104] sm:$0xff]
  %v62 = vld [vmem:[%s1 + $0x10c] sm:$0xff]
  %v63 = vld [vmem:[%s1 + $0x114] sm:$0xf]
  %v64 = vld [vmem:[%s1 + $0x118] sm:$0xff]
  %v65 = vld [vmem:[%s1 + $0x120] sm:$0xff]
  %v66 = vld [vmem:[%s1 + $0x128] sm:$0xf]
  %v67 = vld [vmem:[%s1 + $0x12c] sm:$0xff]
  %v68 = vld [vmem:[%s1 + $0x134] sm:$0xff]
  %v69 = vld [vmem:[%s1 + $0x13c] sm:$0xf]
  %v70 = vld [vmem:[%s1 + $0x140] sm:$0xff]
  %v71 = vld [vmem:[%s1 + $0x148] sm:$0xff]
  %v72 = vld [vmem:[%s1 + $0x150] sm:$0xf]
  %v73 = vld [vmem:[%s1 + $0x154] sm:$0xff]
  %v74 = vld [vmem:[%s1 + $0x15c] sm:$0xff]
  %v75 = vld [vmem:[%s1 + $0x164] sm:$0xf]
  %v76 = vld [vmem:[%s1 + $0x168] sm:$0xff]
  %v77 = vld [vmem:[%s1 + $0x170] sm:$0xff]
  %v78 = vld [vmem:[%s1 + $0x178] sm:$0xf]
  %v79 = vld [vmem:[%s1 + $0x17c] sm:$0xff]
  %v80 = vld [vmem:[%s1 + $0x184] sm:$0xff]
  %v81 = vld [vmem:[%s1 + $0x18c] sm:$0xf]
  %v82 = vld [vmem:[%s1 + $0x190] sm:$0xff]
  %v83 = vld [vmem:[%s1 + $0x198] sm:$0xff]
  %v84 = vld [vmem:[%s1 + $0x1a0] sm:$0xf]
  %v85 = vld [vmem:[%s1 + $0x1a4] sm:$0xff]
  %v86 = vld [vmem:[%s1 + $0x1ac] sm:$0xff]
  %v87 = vld [vmem:[%s1 + $0x1b4] sm:$0xf]
  %v88 = vld [vmem:[%s1 + $0x1b8] sm:$0xff]
  %v89 = vld [vmem:[%s1 + $0x1c0] sm:$0xff]
  %v90 = vld [vmem:[%s1 + $0x1c8] sm:$0xf]
  %v91 = vld [vmem:[%s1 + $0x1cc] sm:$0xff]
  %v92 = vld [vmem:[%s1 + $0x1d4] sm:$0xff]
  %v93 = vld [vmem:[%s1 + $0x1dc] sm:$0xf]
  %v94 = vld [vmem:[%s1 + $0x1e0] sm:$0xff]
  %v95 = vld [vmem:[%s1 + $0x1e8] sm:$0xff]
  %v96 = vld [vmem:[%s1 + $0x1f0] sm:$0xf]
  %v97 = vld [vmem:[%s1 + $0x1f4] sm:$0xff]
  %v98 = vld [vmem:[%s1 + $0x1fc] sm:$0xff]
  %v99 = vld [vmem:[%s1 + $0x204] sm:$0xf]
  %v100 = vld [vmem:[%s1 + $0x208] sm:$0xff]
  %v101 = vld [vmem:[%s1 + $0x210] sm:$0xff]
  %v102 = vld [vmem:[%s1 + $0x218] sm:$0xf]
  %v103 = vld [vmem:[%s1 + $0x21c] sm:$0xff]
  %v104 = vld [vmem:[%s1 + $0x224] sm:$0xff]
  %v105 = vld [vmem:[%s1 + $0x22c] sm:$0xf]
  %v106 = vld [vmem:[%s1 + $0x230] sm:$0xff]
  %v107 = vld [vmem:[%s1 + $0x238] sm:$0xff]
  %v108 = vld [vmem:[%s1 + $0x240] sm:$0xf]
  %v109 = vld [vmem:[%s1 + $0x244] sm:$0xff]
  %v110 = vld [vmem:[%s1 + $0x24c] sm:$0xff]
  %v111 = vld [vmem:[%s1 + $0x254] sm:$0xf]
  %v112 = vld [vmem:[%s1 + $0x258] sm:$0xff]
  %v113 = vld [vmem:[%s1 + $0x260] sm:$0xff]
  %v114 = vld [vmem:[%s1 + $0x268] sm:$0xf]
  %v115 = vld [vmem:[%s1 + $0x26c] sm:$0xff]
  %v116 = vld [vmem:[%s1 + $0x274] sm:$0xff]
  %v117 = vld [vmem:[%s1 + $0x27c] sm:$0xf]
  %v118 = vld [vmem:[%s1 + $0x280] sm:$0xff]
  %v119 = vld [vmem:[%s1 + $0x288] sm:$0xff]
  %v120 = vld [vmem:[%s1 + $0x290] sm:$0xf]
  %v121 = vld [vmem:[%s1 + $0x294] sm:$0xff]
  %v122 = vld [vmem:[%s1 + $0x29c] sm:$0xff]
  %v123 = vld [vmem:[%s1 + $0x2a4] sm:$0xf]
  %v124 = vld [vmem:[%s1 + $0x2a8] sm:$0xff]
  %v125 = vld [vmem:[%s1 + $0x2b0] sm:$0xff]
  %v126 = vld [vmem:[%s1 + $0x2b8] sm:$0xf]
  %v127 = vld [vmem:[%s1 + $0x2bc] sm:$0xff]
  %v128 = vld [vmem:[%s1 + $0x2c4] sm:$0xff]
  %v129 = vld [vmem:[%s1 + $0x2cc] sm:$0xf]
  %v130 = vld [vmem:[%s1 + $0x2d0] sm:$0xff]
  %v131 = vld [vmem:[%s1 + $0x2d8] sm:$0xff]
  %v132 = vld [vmem:[%s1 + $0x2e0] sm:$0xf]
  %v133 = vld [vmem:[%s1 + $0x2e4] sm:$0xff]
  %v134 = vld [vmem:[%s1 + $0x2ec] sm:$0xff]
  %v135 = vld [vmem:[%s1 + $0x2f4] sm:$0xf]
  %v136 = vld [vmem:[%s1 + $0x2f8] sm:$0xff]
  %v137 = vld [vmem:[%s1 + $0x300] sm:$0xff]
  %v138 = vld [vmem:[%s1 + $0x308] sm:$0xf]
  %v139 = vld [vmem:[%s1 + $0x30c] sm:$0xff]
  %v140 = vld [vmem:[%s1 + $0x314] sm:$0xff]
  %v141 = vld [vmem:[%s1 + $0x31c] sm:$0xf]
  %v142 = vld [vmem:[%s1 + $0x320] sm:$0xff]
  %v143 = vld [vmem:[%s1 + $0x328] sm:$0xff]
  %v144 = vld [vmem:[%s1 + $0x330] sm:$0xf]
  %v145 = vld [vmem:[%s1 + $0x334] sm:$0xff]
  %v146 = vld [vmem:[%s1 + $0x33c] sm:$0xff]
  %v147 = vld [vmem:[%s1 + $0x344] sm:$0xf]
  %v148 = vld [vmem:[%s1 + $0x348] sm:$0xff]
  %v149 = vld [vmem:[%s1 + $0x350] sm:$0xff]
  %v150 = vld [vmem:[%s1 + $0x358] sm:$0xf]
  %v151 = vld [vmem:[%s1 + $0x35c] sm:$0xff]
  %v152 = vld [vmem:[%s1 + $0x364] sm:$0xff]
  %v153 = vld [vmem:[%s1 + $0x36c] sm:$0xf]
  %v154 = vld [vmem:[%s1 + $0x370] sm:$0xff]
  %v155 = vld [vmem:[%s1 + $0x378] sm:$0xff]
  %v156 = vld [vmem:[%s1 + $0x380] sm:$0xf]
  %v157 = vld [vmem:[%s1 + $0x384] sm:$0xff]
  %v158 = vld [vmem:[%s1 + $0x38c] sm:$0xff]
  %v159 = vld [vmem:[%s1 + $0x394] sm:$0xf]
  %v160 = vld [vmem:[%s1 + $0x398] sm:$0xff]
  %v161 = vld [vmem:[%s1 + $0x3a0] sm:$0xff]
  %v162 = vld [vmem:[%s1 + $0x3a8] sm:$0xf]
  %v163 = vld [vmem:[%s1 + $0x3ac] sm:$0xff]
  %v164 = vld [vmem:[%s1 + $0x3b4] sm:$0xff]
  %v165 = vld [vmem:[%s1 + $0x3bc] sm:$0xf]
  %v166 = vld [vmem:[%s1 + $0x3c0] sm:$0xff]
  %v167 = vld [vmem:[%s1 + $0x3c8] sm:$0xff]
  %v168 = vld [vmem:[%s1 + $0x3d0] sm:$0xf]
  %v169 = vld [vmem:[%s1 + $0x3d4] sm:$0xff]
  %v170 = vld [vmem:[%s1 + $0x3dc] sm:$0xff]
  %v171 = vld [vmem:[%s1 + $0x3e4] sm:$0xf]
  %v172 = vld [vmem:[%s1 + $0x3e8] sm:$0xff]
  %v173 = vld [vmem:[%s1 + $0x3f0] sm:$0xff]
  %v174 = vld [vmem:[%s1 + $0x3f8] sm:$0xf]
  %v175 = vld [vmem:[%s1 + $0x3fc] sm:$0xff]
  %v176 = vld [vmem:[%s1 + $0x404] sm:$0xff]
  %v177 = vld [vmem:[%s1 + $0x40c] sm:$0xf]
  %v178 = vld [vmem:[%s1 + $0x410] sm:$0xff]
  %v179 = vld [vmem:[%s1 + $0x418] sm:$0xff]
  %v180 = vld [vmem:[%s1 + $0x420] sm:$0xf]
  %v181 = vld [vmem:[%s1 + $0x424] sm:$0xff]
  %v182 = vld [vmem:[%s1 + $0x42c] sm:$0xff]
  %v183 = vld [vmem:[%s1 + $0x434] sm:$0xf]
  %v184 = vld [vmem:[%s1 + $0x438] sm:$0xff]
  %v185 = vld [vmem:[%s1 + $0x440] sm:$0xff]
  %v186 = vld [vmem:[%s1 + $0x448] sm:$0xf]
  %v187 = vld [vmem:[%s1 + $0x44c] sm:$0xff]
  %v188 = vld [vmem:[%s1 + $0x454] sm:$0xff]
  %v189 = vld [vmem:[%s1 + $0x45c] sm:$0xf]
  %v190 = vld [vmem:[%s1 + $0x460] sm:$0xff]
  %v191 = vld [vmem:[%s1 + $0x468] sm:$0xff]
  %v192 = vld [vmem:[%s1 + $0x470] sm:$0xf]
  %v193 = vld [vmem:[%s1 + $0x474] sm:$0xff]
  %v194 = vld [vmem:[%s1 + $0x47c] sm:$0xff]
  %v195 = vld [vmem:[%s1 + $0x484] sm:$0xf]
  %v196 = vld [vmem:[%s1 + $0x488] sm:$0xff]
  %v197 = vld [vmem:[%s1 + $0x490] sm:$0xff]
  %v198 = vld [vmem:[%s1 + $0x498] sm:$0xf]
  %v199 = vld [vmem:[%s1 + $0x49c] sm:$0xff]
  %v200 = vld [vmem:[%s1 + $0x4a4] sm:$0xff]
  %v201 = vld [vmem:[%s1 + $0x4ac] sm:$0xf]
  %v202 = vld [vmem:[%s1 + $0x4b0] sm:$0xff]
  %v203 = vld [vmem:[%s1 + $0x4b8] sm:$0xff]
  %v204 = vld [vmem:[%s1 + $0x4c0] sm:$0xf]
  %v205 = vld [vmem:[%s1 + $0x4c4] sm:$0xff]
  %v206 = vld [vmem:[%s1 + $0x4cc] sm:$0xff]
  %v207 = vld [vmem:[%s1 + $0x4d4] sm:$0xf]
  %v208 = vld [vmem:[%s1 + $0x4d8] sm:$0xff]
  %v209 = vld [vmem:[%s1 + $0x4e0] sm:$0xff]
  %v210 = vld [vmem:[%s1 + $0x4e8] sm:$0xf]
  %v211 = vld [vmem:[%s1 + $0x4ec] sm:$0xff]
  %v212 = vld [vmem:[%s1 + $0x4f4] sm:$0xff]
  %v213 = vld [vmem:[%s1 + $0x4fc] sm:$0xf]
  %v218 = vunpack.c.l.b16 %v18
  %v219 = vunpack.c.h.b16 %v18
  %v220 = vunpack.c.l.b16 %v19
  %v221 = vunpack.c.h.b16 %v19
  %v222 = vunpack.c.l.b16 %v20
  %v223 = vunpack.c.h.b16 %v20
  %v224 = vunpack.c.l.b16 %v21
  %v225 = vunpack.c.h.b16 %v21
  %v226 = vpack.c.b16 %v222, %v218
  %v227 = vpack.c.b16 %v223, %v219
  %v228 = vpack.c.b16 %v224, %v220
  %v229 = vpack.c.b16 %v225, %v221
  %v426 = vunpack.c.l.b16 %v22
  %v427 = vunpack.c.h.b16 %v22
  %v428 = vunpack.c.l.b16 %v23
  %v429 = vunpack.c.h.b16 %v23
  %v430 = vunpack.c.l.b16 %v24
  %v431 = vunpack.c.l.b16 %v25
  %v432 = vunpack.c.h.b16 %v25
  %v433 = vunpack.c.l.b16 %v26
  %v434 = vunpack.c.h.b16 %v26
  %v435 = vunpack.c.l.b16 %v27
  %v436 = vunpack.c.l.b16 %v28
  %v437 = vunpack.c.h.b16 %v28
  %v438 = vunpack.c.l.b16 %v29
  %v439 = vunpack.c.h.b16 %v29
  %v440 = vunpack.c.l.b16 %v30
  %v441 = vunpack.c.l.b16 %v31
  %v442 = vunpack.c.h.b16 %v31
  %v443 = vunpack.c.l.b16 %v32
  %v444 = vunpack.c.h.b16 %v32
  %v445 = vunpack.c.l.b16 %v33
  %v446 = vunpack.c.l.b16 %v34
  %v447 = vunpack.c.h.b16 %v34
  %v448 = vunpack.c.l.b16 %v35
  %v449 = vunpack.c.h.b16 %v35
  %v450 = vunpack.c.l.b16 %v36
  %v451 = vunpack.c.l.b16 %v37
  %v452 = vunpack.c.h.b16 %v37
  %v453 = vunpack.c.l.b16 %v38
  %v454 = vunpack.c.h.b16 %v38
  %v455 = vunpack.c.l.b16 %v39
  %v456 = vunpack.c.l.b16 %v40
  %v457 = vunpack.c.h.b16 %v40
  %v458 = vunpack.c.l.b16 %v41
  %v459 = vunpack.c.h.b16 %v41
  %v460 = vunpack.c.l.b16 %v42
  %v461 = vunpack.c.l.b16 %v43
  %v462 = vunpack.c.h.b16 %v43
  %v463 = vunpack.c.l.b16 %v44
  %v464 = vunpack.c.h.b16 %v44
  %v465 = vunpack.c.l.b16 %v45
  %v466 = vunpack.c.l.b16 %v46
  %v467 = vunpack.c.h.b16 %v46
  %v468 = vunpack.c.l.b16 %v47
  %v469 = vunpack.c.h.b16 %v47
  %v470 = vunpack.c.l.b16 %v48
  %v471 = vunpack.c.l.b16 %v49
  %v472 = vunpack.c.h.b16 %v49
  %v473 = vunpack.c.l.b16 %v50
  %v474 = vunpack.c.h.b16 %v50
  %v475 = vunpack.c.l.b16 %v51
  %v476 = vunpack.c.l.b16 %v52
  %v477 = vunpack.c.h.b16 %v52
  %v478 = vunpack.c.l.b16 %v53
  %v479 = vunpack.c.h.b16 %v53
  %v480 = vunpack.c.l.b16 %v54
  %v481 = vunpack.c.l.b16 %v55
  %v482 = vunpack.c.h.b16 %v55
  %v483 = vunpack.c.l.b16 %v56
  %v484 = vunpack.c.h.b16 %v56
  %v485 = vunpack.c.l.b16 %v57
  %v486 = vunpack.c.l.b16 %v58
  %v487 = vunpack.c.h.b16 %v58
  %v488 = vunpack.c.l.b16 %v59
  %v489 = vunpack.c.h.b16 %v59
  %v490 = vunpack.c.l.b16 %v60
  %v491 = vunpack.c.l.b16 %v61
  %v492 = vunpack.c.h.b16 %v61
  %v493 = vunpack.c.l.b16 %v62
  %v494 = vunpack.c.h.b16 %v62
  %v495 = vunpack.c.l.b16 %v63
  %v496 = vunpack.c.l.b16 %v64
  %v497 = vunpack.c.h.b16 %v64
  %v498 = vunpack.c.l.b16 %v65
  %v499 = vunpack.c.h.b16 %v65
  %v500 = vunpack.c.l.b16 %v66
  %v501 = vunpack.c.l.b16 %v67
  %v502 = vunpack.c.h.b16 %v67
  %v503 = vunpack.c.l.b16 %v68
  %v504 = vunpack.c.h.b16 %v68
  %v505 = vunpack.c.l.b16 %v69
  %v506 = vunpack.c.l.b16 %v70
  %v507 = vunpack.c.h.b16 %v70
  %v508 = vunpack.c.l.b16 %v71
  %v509 = vunpack.c.h.b16 %v71
  %v510 = vunpack.c.l.b16 %v72
  %v511 = vunpack.c.l.b16 %v73
  %v512 = vunpack.c.h.b16 %v73
  %v513 = vunpack.c.l.b16 %v74
  %v514 = vunpack.c.h.b16 %v74
  %v515 = vunpack.c.l.b16 %v75
  %v516 = vunpack.c.l.b16 %v76
  %v517 = vunpack.c.h.b16 %v76
  %v518 = vunpack.c.l.b16 %v77
  %v519 = vunpack.c.h.b16 %v77
  %v520 = vunpack.c.l.b16 %v78
  %v521 = vunpack.c.l.b16 %v79
  %v522 = vunpack.c.h.b16 %v79
  %v523 = vunpack.c.l.b16 %v80
  %v524 = vunpack.c.h.b16 %v80
  %v525 = vunpack.c.l.b16 %v81
  %v526 = vunpack.c.l.b16 %v82
  %v527 = vunpack.c.h.b16 %v82
  %v528 = vunpack.c.l.b16 %v83
  %v529 = vunpack.c.h.b16 %v83
  %v530 = vunpack.c.l.b16 %v84
  %v531 = vunpack.c.l.b16 %v85
  %v532 = vunpack.c.h.b16 %v85
  %v533 = vunpack.c.l.b16 %v86
  %v534 = vunpack.c.h.b16 %v86
  %v535 = vunpack.c.l.b16 %v87
  %v536 = vunpack.c.l.b16 %v88
  %v537 = vunpack.c.h.b16 %v88
  %v538 = vunpack.c.l.b16 %v89
  %v539 = vunpack.c.h.b16 %v89
  %v540 = vunpack.c.l.b16 %v90
  %v541 = vunpack.c.l.b16 %v91
  %v542 = vunpack.c.h.b16 %v91
  %v543 = vunpack.c.l.b16 %v92
  %v544 = vunpack.c.h.b16 %v92
  %v545 = vunpack.c.l.b16 %v93
  %v546 = vunpack.c.l.b16 %v94
  %v547 = vunpack.c.h.b16 %v94
  %v548 = vunpack.c.l.b16 %v95
  %v549 = vunpack.c.h.b16 %v95
  %v550 = vunpack.c.l.b16 %v96
  %v551 = vunpack.c.l.b16 %v97
  %v552 = vunpack.c.h.b16 %v97
  %v553 = vunpack.c.l.b16 %v98
  %v554 = vunpack.c.h.b16 %v98
  %v555 = vunpack.c.l.b16 %v99
  %v556 = vunpack.c.l.b16 %v100
  %v557 = vunpack.c.h.b16 %v100
  %v558 = vunpack.c.l.b16 %v101
  %v559 = vunpack.c.h.b16 %v101
  %v560 = vunpack.c.l.b16 %v102
  %v561 = vunpack.c.l.b16 %v103
  %v562 = vunpack.c.h.b16 %v103
  %v563 = vunpack.c.l.b16 %v104
  %v564 = vunpack.c.h.b16 %v104
  %v565 = vunpack.c.l.b16 %v105
  %v566 = vunpack.c.l.b16 %v106
  %v567 = vunpack.c.h.b16 %v106
  %v568 = vunpack.c.l.b16 %v107
  %v569 = vunpack.c.h.b16 %v107
  %v570 = vunpack.c.l.b16 %v108
  %v571 = vunpack.c.l.b16 %v109
  %v572 = vunpack.c.h.b16 %v109
  %v573 = vunpack.c.l.b16 %v110
  %v574 = vunpack.c.h.b16 %v110
  %v575 = vunpack.c.l.b16 %v111
  %v576 = vunpack.c.l.b16 %v112
  %v577 = vunpack.c.h.b16 %v112
  %v578 = vunpack.c.l.b16 %v113
  %v579 = vunpack.c.h.b16 %v113
  %v580 = vunpack.c.l.b16 %v114
  %v581 = vunpack.c.l.b16 %v115
  %v582 = vunpack.c.h.b16 %v115
  %v583 = vunpack.c.l.b16 %v116
  %v584 = vunpack.c.h.b16 %v116
  %v585 = vunpack.c.l.b16 %v117
  %v586 = vunpack.c.l.b16 %v118
  %v587 = vunpack.c.h.b16 %v118
  %v588 = vunpack.c.l.b16 %v119
  %v589 = vunpack.c.h.b16 %v119
  %v590 = vunpack.c.l.b16 %v120
  %v591 = vunpack.c.l.b16 %v121
  %v592 = vunpack.c.h.b16 %v121
  %v593 = vunpack.c.l.b16 %v122
  %v594 = vunpack.c.h.b16 %v122
  %v595 = vunpack.c.l.b16 %v123
  %v596 = vunpack.c.l.b16 %v124
  %v597 = vunpack.c.h.b16 %v124
  %v598 = vunpack.c.l.b16 %v125
  %v599 = vunpack.c.h.b16 %v125
  %v600 = vunpack.c.l.b16 %v126
  %v601 = vunpack.c.l.b16 %v127
  %v602 = vunpack.c.h.b16 %v127
  %v603 = vunpack.c.l.b16 %v128
  %v604 = vunpack.c.h.b16 %v128
  %v605 = vunpack.c.l.b16 %v129
  %v606 = vunpack.c.l.b16 %v130
  %v607 = vunpack.c.h.b16 %v130
  %v608 = vunpack.c.l.b16 %v131
  %v609 = vunpack.c.h.b16 %v131
  %v610 = vunpack.c.l.b16 %v132
  %v611 = vunpack.c.l.b16 %v133
  %v612 = vunpack.c.h.b16 %v133
  %v613 = vunpack.c.l.b16 %v134
  %v614 = vunpack.c.h.b16 %v134
  %v615 = vunpack.c.l.b16 %v135
  %v616 = vunpack.c.l.b16 %v136
  %v617 = vunpack.c.h.b16 %v136
  %v618 = vunpack.c.l.b16 %v137
  %v619 = vunpack.c.h.b16 %v137
  %v620 = vunpack.c.l.b16 %v138
  %v621 = vunpack.c.l.b16 %v139
  %v622 = vunpack.c.h.b16 %v139
  %v623 = vunpack.c.l.b16 %v140
  %v624 = vunpack.c.h.b16 %v140
  %v625 = vunpack.c.l.b16 %v141
  %v626 = vunpack.c.l.b16 %v142
  %v627 = vunpack.c.h.b16 %v142
  %v628 = vunpack.c.l.b16 %v143
  %v629 = vunpack.c.h.b16 %v143
  %v630 = vunpack.c.l.b16 %v144
  %v631 = vunpack.c.l.b16 %v145
  %v632 = vunpack.c.h.b16 %v145
  %v633 = vunpack.c.l.b16 %v146
  %v634 = vunpack.c.h.b16 %v146
  %v635 = vunpack.c.l.b16 %v147
  %v636 = vunpack.c.l.b16 %v148
  %v637 = vunpack.c.h.b16 %v148
  %v638 = vunpack.c.l.b16 %v149
  %v639 = vunpack.c.h.b16 %v149
  %v640 = vunpack.c.l.b16 %v150
  %v641 = vunpack.c.l.b16 %v151
  %v642 = vunpack.c.h.b16 %v151
  %v643 = vunpack.c.l.b16 %v152
  %v644 = vunpack.c.h.b16 %v152
  %v645 = vunpack.c.l.b16 %v153
  %v646 = vunpack.c.l.b16 %v154
  %v647 = vunpack.c.h.b16 %v154
  %v648 = vunpack.c.l.b16 %v155
  %v649 = vunpack.c.h.b16 %v155
  %v650 = vunpack.c.l.b16 %v156
  %v651 = vunpack.c.l.b16 %v157
  %v652 = vunpack.c.h.b16 %v157
  %v653 = vunpack.c.l.b16 %v158
  %v654 = vunpack.c.h.b16 %v158
  %v655 = vunpack.c.l.b16 %v159
  %v656 = vunpack.c.l.b16 %v160
  %v657 = vunpack.c.h.b16 %v160
  %v658 = vunpack.c.l.b16 %v161
  %v659 = vunpack.c.h.b16 %v161
  %v660 = vunpack.c.l.b16 %v162
  %v661 = vunpack.c.l.b16 %v163
  %v662 = vunpack.c.h.b16 %v163
  %v663 = vunpack.c.l.b16 %v164
  %v664 = vunpack.c.h.b16 %v164
  %v665 = vunpack.c.l.b16 %v165
  %v666 = vunpack.c.l.b16 %v166
  %v667 = vunpack.c.h.b16 %v166
  %v668 = vunpack.c.l.b16 %v167
  %v669 = vunpack.c.h.b16 %v167
  %v670 = vunpack.c.l.b16 %v168
  %v671 = vunpack.c.l.b16 %v169
  %v672 = vunpack.c.h.b16 %v169
  %v673 = vunpack.c.l.b16 %v170
  %v674 = vunpack.c.h.b16 %v170
  %v675 = vunpack.c.l.b16 %v171
  %v676 = vunpack.c.l.b16 %v172
  %v677 = vunpack.c.h.b16 %v172
  %v678 = vunpack.c.l.b16 %v173
  %v679 = vunpack.c.h.b16 %v173
  %v680 = vunpack.c.l.b16 %v174
  %v681 = vunpack.c.l.b16 %v175
  %v682 = vunpack.c.h.b16 %v175
  %v683 = vunpack.c.l.b16 %v176
  %v684 = vunpack.c.h.b16 %v176
  %v685 = vunpack.c.l.b16 %v177
  %v686 = vunpack.c.l.b16 %v178
  %v687 = vunpack.c.h.b16 %v178
  %v688 = vunpack.c.l.b16 %v179
  %v689 = vunpack.c.h.b16 %v179
  %v690 = vunpack.c.l.b16 %v180
  %v691 = vunpack.c.l.b16 %v181
  %v692 = vunpack.c.h.b16 %v181
  %v693 = vunpack.c.l.b16 %v182
  %v694 = vunpack.c.h.b16 %v182
  %v695 = vunpack.c.l.b16 %v183
  %v696 = vunpack.c.l.b16 %v184
  %v697 = vunpack.c.h.b16 %v184
  %v698 = vunpack.c.l.b16 %v185
  %v699 = vunpack.c.h.b16 %v185
  %v700 = vunpack.c.l.b16 %v186
  %v701 = vunpack.c.l.b16 %v187
  %v702 = vunpack.c.h.b16 %v187
  %v703 = vunpack.c.l.b16 %v188
  %v704 = vunpack.c.h.b16 %v188
  %v705 = vunpack.c.l.b16 %v189
  %v706 = vunpack.c.l.b16 %v190
  %v707 = vunpack.c.h.b16 %v190
  %v708 = vunpack.c.l.b16 %v191
  %v709 = vunpack.c.h.b16 %v191
  %v710 = vunpack.c.l.b16 %v192
  %v711 = vunpack.c.l.b16 %v193
  %v712 = vunpack.c.h.b16 %v193
  %v713 = vunpack.c.l.b16 %v194
  %v714 = vunpack.c.h.b16 %v194
  %v715 = vunpack.c.l.b16 %v195
  %v716 = vunpack.c.l.b16 %v196
  %v717 = vunpack.c.h.b16 %v196
  %v718 = vunpack.c.l.b16 %v197
  %v719 = vunpack.c.h.b16 %v197
  %v720 = vunpack.c.l.b16 %v198
  %v721 = vunpack.c.l.b16 %v199
  %v722 = vunpack.c.h.b16 %v199
  %v723 = vunpack.c.l.b16 %v200
  %v724 = vunpack.c.h.b16 %v200
  %v725 = vunpack.c.l.b16 %v201
  %v726 = vunpack.c.l.b16 %v202
  %v727 = vunpack.c.h.b16 %v202
  %v728 = vunpack.c.l.b16 %v203
  %v729 = vunpack.c.h.b16 %v203
  %v730 = vunpack.c.l.b16 %v204
  %v731 = vunpack.c.l.b16 %v205
  %v732 = vunpack.c.h.b16 %v205
  %v733 = vunpack.c.l.b16 %v206
  %v734 = vunpack.c.h.b16 %v206
  %v735 = vunpack.c.l.b16 %v207
  %v736 = vunpack.c.l.b16 %v208
  %v737 = vunpack.c.h.b16 %v208
  %v738 = vunpack.c.l.b16 %v209
  %v739 = vunpack.c.h.b16 %v209
  %v740 = vunpack.c.l.b16 %v210
  %v741 = vunpack.c.l.b16 %v211
  %v742 = vunpack.c.h.b16 %v211
  %v743 = vunpack.c.l.b16 %v212
  %v744 = vunpack.c.h.b16 %v212
  %v745 = vunpack.c.l.b16 %v213
  %v746 = vpack.c.b16 %v431, %v426
  %v747 = vpack.c.b16 %v432, %v427
  %v748 = vpack.c.b16 %v433, %v428
  %v749 = vpack.c.b16 %v434, %v429
  %v750 = vpack.c.b16 %v435, %v430
  %v751 = vpack.c.b16 %v441, %v436
  %v752 = vpack.c.b16 %v442, %v437
  %v753 = vpack.c.b16 %v443, %v438
  %v754 = vpack.c.b16 %v444, %v439
  %v755 = vpack.c.b16 %v445, %v440
  %v756 = vpack.c.b16 %v451, %v446
  %v757 = vpack.c.b16 %v452, %v447
  %v758 = vpack.c.b16 %v453, %v448
  %v759 = vpack.c.b16 %v454, %v449
  %v760 = vpack.c.b16 %v455, %v450
  %v761 = vpack.c.b16 %v461, %v456
  %v762 = vpack.c.b16 %v462, %v457
  %v763 = vpack.c.b16 %v463, %v458
  %v764 = vpack.c.b16 %v464, %v459
  %v765 = vpack.c.b16 %v465, %v460
  %v766 = vpack.c.b16 %v471, %v466
  %v767 = vpack.c.b16 %v472, %v467
  %v768 = vpack.c.b16 %v473, %v468
  %v769 = vpack.c.b16 %v474, %v469
  %v770 = vpack.c.b16 %v475, %v470
  %v771 = vpack.c.b16 %v481, %v476
  %v772 = vpack.c.b16 %v482, %v477
  %v773 = vpack.c.b16 %v483, %v478
  %v774 = vpack.c.b16 %v484, %v479
  %v775 = vpack.c.b16 %v485, %v480
  %v776 = vpack.c.b16 %v491, %v486
  %v777 = vpack.c.b16 %v492, %v487
  %v778 = vpack.c.b16 %v493, %v488
  %v779 = vpack.c.b16 %v494, %v489
  %v780 = vpack.c.b16 %v495, %v490
  %v781 = vpack.c.b16 %v501, %v496
  %v782 = vpack.c.b16 %v502, %v497
  %v783 = vpack.c.b16 %v503, %v498
  %v784 = vpack.c.b16 %v504, %v499
  %v785 = vpack.c.b16 %v505, %v500
  %v786 = vpack.c.b16 %v511, %v506
  %v787 = vpack.c.b16 %v512, %v507
  %v788 = vpack.c.b16 %v513, %v508
  %v789 = vpack.c.b16 %v514, %v509
  %v790 = vpack.c.b16 %v515, %v510
  %v791 = vpack.c.b16 %v521, %v516
  %v792 = vpack.c.b16 %v522, %v517
  %v793 = vpack.c.b16 %v523, %v518
  %v794 = vpack.c.b16 %v524, %v519
  %v795 = vpack.c.b16 %v525, %v520
  %v796 = vpack.c.b16 %v531, %v526
  %v797 = vpack.c.b16 %v532, %v527
  %v798 = vpack.c.b16 %v533, %v528
  %v799 = vpack.c.b16 %v534, %v529
  %v800 = vpack.c.b16 %v535, %v530
  %v801 = vpack.c.b16 %v541, %v536
  %v802 = vpack.c.b16 %v542, %v537
  %v803 = vpack.c.b16 %v543, %v538
  %v804 = vpack.c.b16 %v544, %v539
  %v805 = vpack.c.b16 %v545, %v540
  %v806 = vpack.c.b16 %v551, %v546
  %v807 = vpack.c.b16 %v552, %v547
  %v808 = vpack.c.b16 %v553, %v548
  %v809 = vpack.c.b16 %v554, %v549
  %v810 = vpack.c.b16 %v555, %v550
  %v811 = vpack.c.b16 %v561, %v556
  %v812 = vpack.c.b16 %v562, %v557
  %v813 = vpack.c.b16 %v563, %v558
  %v814 = vpack.c.b16 %v564, %v559
  %v815 = vpack.c.b16 %v565, %v560
  %v816 = vpack.c.b16 %v571, %v566
  %v817 = vpack.c.b16 %v572, %v567
  %v818 = vpack.c.b16 %v573, %v568
  %v819 = vpack.c.b16 %v574, %v569
  %v820 = vpack.c.b16 %v575, %v570
  %v821 = vpack.c.b16 %v581, %v576
  %v822 = vpack.c.b16 %v582, %v577
  %v823 = vpack.c.b16 %v583, %v578
  %v824 = vpack.c.b16 %v584, %v579
  %v825 = vpack.c.b16 %v585, %v580
  %v826 = vpack.c.b16 %v591, %v586
  %v827 = vpack.c.b16 %v592, %v587
  %v828 = vpack.c.b16 %v593, %v588
  %v829 = vpack.c.b16 %v594, %v589
  %v830 = vpack.c.b16 %v595, %v590
  %v831 = vpack.c.b16 %v601, %v596
  %v832 = vpack.c.b16 %v602, %v597
  %v833 = vpack.c.b16 %v603, %v598
  %v834 = vpack.c.b16 %v604, %v599
  %v835 = vpack.c.b16 %v605, %v600
  %v836 = vpack.c.b16 %v611, %v606
  %v837 = vpack.c.b16 %v612, %v607
  %v838 = vpack.c.b16 %v613, %v608
  %v839 = vpack.c.b16 %v614, %v609
  %v840 = vpack.c.b16 %v615, %v610
  %v841 = vpack.c.b16 %v621, %v616
  %v842 = vpack.c.b16 %v622, %v617
  %v843 = vpack.c.b16 %v623, %v618
  %v844 = vpack.c.b16 %v624, %v619
  %v845 = vpack.c.b16 %v625, %v620
  %v846 = vpack.c.b16 %v631, %v626
  %v847 = vpack.c.b16 %v632, %v627
  %v848 = vpack.c.b16 %v633, %v628
  %v849 = vpack.c.b16 %v634, %v629
  %v850 = vpack.c.b16 %v635, %v630
  %v851 = vpack.c.b16 %v641, %v636
  %v852 = vpack.c.b16 %v642, %v637
  %v853 = vpack.c.b16 %v643, %v638
  %v854 = vpack.c.b16 %v644, %v639
  %v855 = vpack.c.b16 %v645, %v640
  %v856 = vpack.c.b16 %v651, %v646
  %v857 = vpack.c.b16 %v652, %v647
  %v858 = vpack.c.b16 %v653, %v648
  %v859 = vpack.c.b16 %v654, %v649
  %v860 = vpack.c.b16 %v655, %v650
  %v861 = vpack.c.b16 %v661, %v656
  %v862 = vpack.c.b16 %v662, %v657
  %v863 = vpack.c.b16 %v663, %v658
  %v864 = vpack.c.b16 %v664, %v659
  %v865 = vpack.c.b16 %v665, %v660
  %v866 = vpack.c.b16 %v671, %v666
  %v867 = vpack.c.b16 %v672, %v667
  %v868 = vpack.c.b16 %v673, %v668
  %v869 = vpack.c.b16 %v674, %v669
  %v870 = vpack.c.b16 %v675, %v670
  %v871 = vpack.c.b16 %v681, %v676
  %v872 = vpack.c.b16 %v682, %v677
  %v873 = vpack.c.b16 %v683, %v678
  %v874 = vpack.c.b16 %v684, %v679
  %v875 = vpack.c.b16 %v685, %v680
  %v876 = vpack.c.b16 %v691, %v686
  %v877 = vpack.c.b16 %v692, %v687
  %v878 = vpack.c.b16 %v693, %v688
  %v879 = vpack.c.b16 %v694, %v689
  %v880 = vpack.c.b16 %v695, %v690
  %v881 = vpack.c.b16 %v701, %v696
  %v882 = vpack.c.b16 %v702, %v697
  %v883 = vpack.c.b16 %v703, %v698
  %v884 = vpack.c.b16 %v704, %v699
  %v885 = vpack.c.b16 %v705, %v700
  %v886 = vpack.c.b16 %v711, %v706
  %v887 = vpack.c.b16 %v712, %v707
  %v888 = vpack.c.b16 %v713, %v708
  %v889 = vpack.c.b16 %v714, %v709
  %v890 = vpack.c.b16 %v715, %v710
  %v891 = vpack.c.b16 %v721, %v716
  %v892 = vpack.c.b16 %v722, %v717
  %v893 = vpack.c.b16 %v723, %v718
  %v894 = vpack.c.b16 %v724, %v719
  %v895 = vpack.c.b16 %v725, %v720
  %v896 = vpack.c.b16 %v731, %v726
  %v897 = vpack.c.b16 %v732, %v727
  %v898 = vpack.c.b16 %v733, %v728
  %v899 = vpack.c.b16 %v734, %v729
  %v900 = vpack.c.b16 %v735, %v730
  %v901 = vpack.c.b16 %v741, %v736
  %v902 = vpack.c.b16 %v742, %v737
  %v903 = vpack.c.b16 %v743, %v738
  %v904 = vpack.c.b16 %v744, %v739
  %v905 = vpack.c.b16 %v745, %v740
  %1066 = vmatprep.subr.bf16.mxu0 %v782
  %1067 = vmatpush1.bf16.msra.mxu0 %v781
  %1068 = vmatprep.subr.bf16.mxu0 %v777
  %1069 = vmatpush1.bf16.msra.mxu0 %v776
  %1070 = vmatprep.subr.bf16.mxu0 %v772
  %1071 = vmatpush1.bf16.msra.mxu0 %v771
  %1072 = vmatprep.subr.bf16.mxu0 %v767
  %1073 = vmatpush1.bf16.msra.mxu0 %v766
  %1074 = vmatprep.subr.bf16.mxu0 %v762
  %1075 = vmatpush1.bf16.msra.mxu0 %v761
  %1076 = vmatprep.subr.bf16.mxu0 %v757
  %1077 = vmatpush1.bf16.msra.mxu0 %v756
  %1078 = vmatprep.subr.bf16.mxu0 %v752
  %1079 = vmatpush1.bf16.msra.mxu0 %v751
  %1080 = vmatprep.subr.bf16.mxu0 %v747
  %1081 = vmatpush1.bf16.msra.mxu0 %v746
  %1082 = vmatprep.subr.bf16.mxu0 %v822
  %1083 = vmatpush2.bf16.msra.mxu0 %v821
  %1084 = vmatprep.subr.bf16.mxu0 %v817
  %1085 = vmatpush2.bf16.msra.mxu0 %v816
  %1086 = vmatprep.subr.bf16.mxu0 %v812
  %1087 = vmatpush2.bf16.msra.mxu0 %v811
  %1088 = vmatprep.subr.bf16.mxu0 %v807
  %1089 = vmatpush2.bf16.msra.mxu0 %v806
  %1090 = vmatprep.subr.bf16.mxu0 %v802
  %1091 = vmatpush2.bf16.msra.mxu0 %v801
  %1092 = vmatprep.subr.bf16.mxu0 %v797
  %1093 = vmatpush2.bf16.msra.mxu0 %v796
  %1094 = vmatprep.subr.bf16.mxu0 %v792
  %1095 = vmatpush2.bf16.msra.mxu0 %v791
  %1096 = vmatprep.subr.bf16.mxu0 %v787
  %1097 = vmatpush2.bf16.msra.mxu0 %v786
  %1098 = vmatprep.mubr.bf16.mxu0 %v227
  %1099 = vmatmul.mubr.bf16.gmra.mxu0 %v226
  %v1100 = vpop.f32.mrf.mxu0
  %v1101 = vadd.f32 0.0, %v1100
  %v1102 = vpop.f32.mrf.mxu0
  %v1103 = vadd.f32 0.0, %v1102
  %v1104 = vpop.f32.mrf.mxu0
  %v1105 = vadd.f32 0.0, %v1104
  %v1106 = vpop.f32.mrf.mxu0
  %v1107 = vadd.f32 0.0, %v1106
  %1108 = vdwg.mxu0
  %1109 = vmatprep.subr.bf16.mxu0 %v862
  %1110 = vmatpush1.bf16.msra.mxu0 %v861
  %1111 = vmatprep.subr.bf16.mxu0 %v857
  %1112 = vmatpush1.bf16.msra.mxu0 %v856
  %1113 = vmatprep.subr.bf16.mxu0 %v852
  %1114 = vmatpush1.bf16.msra.mxu0 %v851
  %1115 = vmatprep.subr.bf16.mxu0 %v847
  %1116 = vmatpush1.bf16.msra.mxu0 %v846
  %1117 = vmatprep.subr.bf16.mxu0 %v842
  %1118 = vmatpush1.bf16.msra.mxu0 %v841
  %1119 = vmatprep.subr.bf16.mxu0 %v837
  %1120 = vmatpush1.bf16.msra.mxu0 %v836
  %1121 = vmatprep.subr.bf16.mxu0 %v832
  %1122 = vmatpush1.bf16.msra.mxu0 %v831
  %1123 = vmatprep.subr.bf16.mxu0 %v827
  %1124 = vmatpush1.bf16.msra.mxu0 %v826
  %1125 = vmatprep.subr.bf16.mxu0 %v902
  %1126 = vmatpush2.bf16.msra.mxu0 %v901
  %1127 = vmatprep.subr.bf16.mxu0 %v897
  %1128 = vmatpush2.bf16.msra.mxu0 %v896
  %1129 = vmatprep.subr.bf16.mxu0 %v892
  %1130 = vmatpush2.bf16.msra.mxu0 %v891
  %1131 = vmatprep.subr.bf16.mxu0 %v887
  %1132 = vmatpush2.bf16.msra.mxu0 %v886
  %1133 = vmatprep.subr.bf16.mxu0 %v882
  %1134 = vmatpush2.bf16.msra.mxu0 %v881
  %1135 = vmatprep.subr.bf16.mxu0 %v877
  %1136 = vmatpush2.bf16.msra.mxu0 %v876
  %1137 = vmatprep.subr.bf16.mxu0 %v872
  %1138 = vmatpush2.bf16.msra.mxu0 %v871
  %1139 = vmatprep.subr.bf16.mxu0 %v867
  %1140 = vmatpush2.bf16.msra.mxu0 %v866
  %1141 = vmatprep.mubr.bf16.mxu0 %v229
  %1142 = vmatmul.mubr.bf16.gmra.mxu0 %v228
  %v1143 = vpop.f32.mrf.mxu0
  %v1144 = vadd.f32 %v1101, %v1143
  %v1145 = vpop.f32.mrf.mxu0
  %v1146 = vadd.f32 %v1103, %v1145
  %v1147 = vpop.f32.mrf.mxu0
  %v1148 = vadd.f32 %v1105, %v1147
  %v1149 = vpop.f32.mrf.mxu0
  %v1150 = vadd.f32 %v1107, %v1149
  %1151 = vdwg.mxu0
  %1152 = vmatprep.subr.bf16.mxu0 %v784
  %1153 = vmatpush1.bf16.msra.mxu0 %v783
  %1154 = vmatprep.subr.bf16.mxu0 %v779
  %1155 = vmatpush1.bf16.msra.mxu0 %v778
  %1156 = vmatprep.subr.bf16.mxu0 %v774
  %1157 = vmatpush1.bf16.msra.mxu0 %v773
  %1158 = vmatprep.subr.bf16.mxu0 %v769
  %1159 = vmatpush1.bf16.msra.mxu0 %v768
  %1160 = vmatprep.subr.bf16.mxu0 %v764
  %1161 = vmatpush1.bf16.msra.mxu0 %v763
  %1162 = vmatprep.subr.bf16.mxu0 %v759
  %1163 = vmatpush1.bf16.msra.mxu0 %v758
  %1164 = vmatprep.subr.bf16.mxu0 %v754
  %1165 = vmatpush1.bf16.msra.mxu0 %v753
  %1166 = vmatprep.subr.bf16.mxu0 %v749
  %1167 = vmatpush1.bf16.msra.mxu0 %v748
  %1168 = vmatprep.subr.bf16.mxu0 %v824
  %1169 = vmatpush2.bf16.msra.mxu0 %v823
  %1170 = vmatprep.subr.bf16.mxu0 %v819
  %1171 = vmatpush2.bf16.msra.mxu0 %v818
  %1172 = vmatprep.subr.bf16.mxu0 %v814
  %1173 = vmatpush2.bf16.msra.mxu0 %v813
  %1174 = vmatprep.subr.bf16.mxu0 %v809
  %1175 = vmatpush2.bf16.msra.mxu0 %v808
  %1176 = vmatprep.subr.bf16.mxu0 %v804
  %1177 = vmatpush2.bf16.msra.mxu0 %v803
  %1178 = vmatprep.subr.bf16.mxu0 %v799
  %1179 = vmatpush2.bf16.msra.mxu0 %v798
  %1180 = vmatprep.subr.bf16.mxu0 %v794
  %1181 = vmatpush2.bf16.msra.mxu0 %v793
  %1182 = vmatprep.subr.bf16.mxu0 %v789
  %1183 = vmatpush2.bf16.msra.mxu0 %v788
  %1184 = vmatprep.mubr.bf16.mxu0 %v227
  %1185 = vmatmul.mubr.bf16.gmra.mxu0 %v226
  %v1186 = vpop.f32.mrf.mxu0
  %v1187 = vadd.f32 0.0, %v1186
  %v1188 = vpop.f32.mrf.mxu0
  %v1189 = vadd.f32 0.0, %v1188
  %v1190 = vpop.f32.mrf.mxu0
  %v1191 = vadd.f32 0.0, %v1190
  %v1192 = vpop.f32.mrf.mxu0
  %v1193 = vadd.f32 0.0, %v1192
  %1194 = vdwg.mxu0
  %1195 = vmatprep.subr.bf16.mxu0 %v864
  %1196 = vmatpush1.bf16.msra.mxu0 %v863
  %1197 = vmatprep.subr.bf16.mxu0 %v859
  %1198 = vmatpush1.bf16.msra.mxu0 %v858
  %1199 = vmatprep.subr.bf16.mxu0 %v854
  %1200 = vmatpush1.bf16.msra.mxu0 %v853
  %1201 = vmatprep.subr.bf16.mxu0 %v849
  %1202 = vmatpush1.bf16.msra.mxu0 %v848
  %1203 = vmatprep.subr.bf16.mxu0 %v844
  %1204 = vmatpush1.bf16.msra.mxu0 %v843
  %1205 = vmatprep.subr.bf16.mxu0 %v839
  %1206 = vmatpush1.bf16.msra.mxu0 %v838
  %1207 = vmatprep.subr.bf16.mxu0 %v834
  %1208 = vmatpush1.bf16.msra.mxu0 %v833
  %1209 = vmatprep.subr.bf16.mxu0 %v829
  %1210 = vmatpush1.bf16.msra.mxu0 %v828
  %1211 = vmatprep.subr.bf16.mxu0 %v904
  %1212 = vmatpush2.bf16.msra.mxu0 %v903
  %1213 = vmatprep.subr.bf16.mxu0 %v899
  %1214 = vmatpush2.bf16.msra.mxu0 %v898
  %1215 = vmatprep.subr.bf16.mxu0 %v894
  %1216 = vmatpush2.bf16.msra.mxu0 %v893
  %1217 = vmatprep.subr.bf16.mxu0 %v889
  %1218 = vmatpush2.bf16.msra.mxu0 %v888
  %1219 = vmatprep.subr.bf16.mxu0 %v884
  %1220 = vmatpush2.bf16.msra.mxu0 %v883
  %1221 = vmatprep.subr.bf16.mxu0 %v879
  %1222 = vmatpush2.bf16.msra.mxu0 %v878
  %1223 = vmatprep.subr.bf16.mxu0 %v874
  %1224 = vmatpush2.bf16.msra.mxu0 %v873
  %1225 = vmatprep.subr.bf16.mxu0 %v869
  %1226 = vmatpush2.bf16.msra.mxu0 %v868
  %1227 = vmatprep.mubr.bf16.mxu0 %v229
  %1228 = vmatmul.mubr.bf16.gmra.mxu0 %v228
  %v1229 = vpop.f32.mrf.mxu0
  %v1230 = vadd.f32 %v1187, %v1229
  %v1231 = vpop.f32.mrf.mxu0
  %v1232 = vadd.f32 %v1189, %v1231
  %v1233 = vpop.f32.mrf.mxu0
  %v1234 = vadd.f32 %v1191, %v1233
  %v1235 = vpop.f32.mrf.mxu0
  %v1236 = vadd.f32 %v1193, %v1235
  %1237 = vdwg.mxu0
  %1238 = vmatprep.subr.bf16.mxu0 0
  %1239 = vmatpush1.bf16.msra.mxu0 %v785
  %1240 = vmatprep.subr.bf16.mxu0 0
  %1241 = vmatpush1.bf16.msra.mxu0 %v780
  %1242 = vmatprep.subr.bf16.mxu0 0
  %1243 = vmatpush1.bf16.msra.mxu0 %v775
  %1244 = vmatprep.subr.bf16.mxu0 0
  %1245 = vmatpush1.bf16.msra.mxu0 %v770
  %1246 = vmatprep.subr.bf16.mxu0 0
  %1247 = vmatpush1.bf16.msra.mxu0 %v765
  %1248 = vmatprep.subr.bf16.mxu0 0
  %1249 = vmatpush1.bf16.msra.mxu0 %v760
  %1250 = vmatprep.subr.bf16.mxu0 0
  %1251 = vmatpush1.bf16.msra.mxu0 %v755
  %1252 = vmatprep.subr.bf16.mxu0 0
  %1253 = vmatpush1.bf16.msra.mxu0 %v750
  %1254 = vmatprep.subr.bf16.mxu0 0
  %1255 = vmatpush2.bf16.msra.mxu0 %v825
  %1256 = vmatprep.subr.bf16.mxu0 0
  %1257 = vmatpush2.bf16.msra.mxu0 %v820
  %1258 = vmatprep.subr.bf16.mxu0 0
  %1259 = vmatpush2.bf16.msra.mxu0 %v815
  %1260 = vmatprep.subr.bf16.mxu0 0
  %1261 = vmatpush2.bf16.msra.mxu0 %v810
  %1262 = vmatprep.subr.bf16.mxu0 0
  %1263 = vmatpush2.bf16.msra.mxu0 %v805
  %1264 = vmatprep.subr.bf16.mxu0 0
  %1265 = vmatpush2.bf16.msra.mxu0 %v800
  %1266 = vmatprep.subr.bf16.mxu0 0
  %1267 = vmatpush2.bf16.msra.mxu0 %v795
  %1268 = vmatprep.subr.bf16.mxu0 0
  %1269 = vmatpush2.bf16.msra.mxu0 %v790
  %1270 = vmatprep.mubr.bf16.mxu0 %v227
  %1271 = vmatmul.mubr.bf16.gmra.mxu0 %v226
  %v1272 = vpop.f32.mrf.mxu0
  %v1273 = vadd.f32 0.0, %v1272
  %v1274 = vpop.f32.mrf.mxu0
  %v1275 = vpop.f32.mrf.mxu0
  %v1276 = vadd.f32 0.0, %v1275
  %v1277 = vpop.f32.mrf.mxu0
  %1278 = vdwg.mxu0
  %1279 = vmatprep.subr.bf16.mxu0 0
  %1280 = vmatpush1.bf16.msra.mxu0 %v865
  %1281 = vmatprep.subr.bf16.mxu0 0
  %1282 = vmatpush1.bf16.msra.mxu0 %v860
  %1283 = vmatprep.subr.bf16.mxu0 0
  %1284 = vmatpush1.bf16.msra.mxu0 %v855
  %1285 = vmatprep.subr.bf16.mxu0 0
  %1286 = vmatpush1.bf16.msra.mxu0 %v850
  %1287 = vmatprep.subr.bf16.mxu0 0
  %1288 = vmatpush1.bf16.msra.mxu0 %v845
  %1289 = vmatprep.subr.bf16.mxu0 0
  %1290 = vmatpush1.bf16.msra.mxu0 %v840
  %1291 = vmatprep.subr.bf16.mxu0 0
  %1292 = vmatpush1.bf16.msra.mxu0 %v835
  %1293 = vmatprep.subr.bf16.mxu0 0
  %1294 = vmatpush1.bf16.msra.mxu0 %v830
  %1295 = vmatprep.subr.bf16.mxu0 0
  %1296 = vmatpush2.bf16.msra.mxu0 %v905
  %1297 = vmatprep.subr.bf16.mxu0 0
  %1298 = vmatpush2.bf16.msra.mxu0 %v900
  %1299 = vmatprep.subr.bf16.mxu0 0
  %1300 = vmatpush2.bf16.msra.mxu0 %v895
  %1301 = vmatprep.subr.bf16.mxu0 0
  %1302 = vmatpush2.bf16.msra.mxu0 %v890
  %1303 = vmatprep.subr.bf16.mxu0 0
  %1304 = vmatpush2.bf16.msra.mxu0 %v885
  %1305 = vmatprep.subr.bf16.mxu0 0
  %1306 = vmatpush2.bf16.msra.mxu0 %v880
  %1307 = vmatprep.subr.bf16.mxu0 0
  %1308 = vmatpush2.bf16.msra.mxu0 %v875
  %1309 = vmatprep.subr.bf16.mxu0 0
  %1310 = vmatpush2.bf16.msra.mxu0 %v870
  %1311 = vmatprep.mubr.bf16.mxu0 %v229
  %1312 = vmatmul.mubr.bf16.gmra.mxu0 %v228
  %v1313 = vpop.f32.mrf.mxu0
  %v1314 = vadd.f32 %v1273, %v1313
  %v1315 = vpop.f32.mrf.mxu0
  %v1316 = vpop.f32.mrf.mxu0
  %v1317 = vadd.f32 %v1276, %v1316
  %v1318 = vpop.f32.mrf.mxu0
  %1319 = vdwg.mxu0
  %v1320 = vadd.f32 %v1144, %v1146
  %v1321 = vadd.f32 %v1320, %v1230
  %v1322 = vadd.f32 %v1321, %v1232
  %v1323 = vadd.f32 %v1322, %v1314
  %1324 = vadd.xlane.f32.xlu0 %v1323
  %v1325 = vpop.xlane.xlu0 %1324
  %v1326 = vadd.f32 %v1148, %v1150
  %v1327 = vadd.f32 %v1326, %v1234
  %v1328 = vadd.f32 %v1327, %v1236
  %v1329 = vadd.f32 %v1328, %v1317
  %1330 = vadd.xlane.f32.xlu0 %v1329
  %v1331 = vpop.xlane.xlu0 %1330
  %v1332 = vmul.f32 %v1144, %v1144
  %v1333 = vmul.f32 %v1146, %v1146
  %v1334 = vmul.f32 %v1230, %v1230
  %v1335 = vmul.f32 %v1232, %v1232
  %v1336 = vmul.f32 %v1314, %v1314
  %v1337 = vmul.f32 %v1148, %v1148
  %v1338 = vmul.f32 %v1150, %v1150
  %v1339 = vmul.f32 %v1234, %v1234
  %v1340 = vmul.f32 %v1236, %v1236
  %v1341 = vmul.f32 %v1317, %v1317
  %v1342 = vadd.f32 %v1332, %v1333
  %v1343 = vadd.f32 %v1342, %v1334
  %v1344 = vadd.f32 %v1343, %v1335
  %v1345 = vadd.f32 %v1344, %v1336
  %1346 = vadd.xlane.f32.xlu0 %v1345
  %v1347 = vpop.xlane.xlu0 %1346
  %v1348 = vadd.f32 %v1337, %v1338
  %v1349 = vadd.f32 %v1348, %v1339
  %v1350 = vadd.f32 %v1349, %v1340
  %v1351 = vadd.f32 %v1350, %v1341
  %1352 = vadd.xlane.f32.xlu0 %v1351
  %v1353 = vpop.xlane.xlu0 %1352
  %v1354 = vmul.f32 %v1325, 0.0017361111
  %v1355 = vmul.f32 %v1331, 0.0017361111
  %v1356 = vmul.f32 %v1347, 0.0017361111
  %v1357 = vmul.f32 %v1353, 0.0017361111
  %v1358 = vmul.f32 %v1354, %v1354
  %v1359 = vmul.f32 %v1355, %v1355
  %v1360 = vsub.f32 %v1356, %v1358
  %v1361 = vsub.f32 %v1357, %v1359
  %v1362 = vmax.f32 %v1360, 0.0
  %v1363 = vmax.f32 %v1361, 0.0
  %v1364 = vld [vmem:[%s2] sm:$0xff]
  %v1365 = vld [vmem:[%s2 + $0x8] sm:$0xff]
  %v1366 = vadd.f32 %v1362, 1e-05
  %v1367 = vadd.f32 %v1363, 1e-05
  %v1368 = vrsqrt.pop %v1366
  %v1369 = vrsqrt.pop %v1367
  %v1370 = vmul.f32 %v1364, %v1368
  %v1371 = vmul.f32 %v1365, %v1369
  %v1372 = vld [vmem:[%s3] sm:$0xff]
  %v1373 = vld [vmem:[%s3 + $0x8] sm:$0xff]
  %v1374 = vmul.f32 %v1354, %v1370
  %v1375 = vmul.f32 %v1355, %v1371
  %v1376 = vsub.f32 %v1372, %v1374
  %v1377 = vsub.f32 %v1373, %v1375
  %1379 = vset.pattern.permute.xlu0 0
  %1380 = vperm.xlu0 %1379, %v1370
  %v1381 = vpop.permute.xlu0 %1380
  %1384 = vset.pattern.permute.xlu0 0
  %1385 = vperm.xlu0 %1384, %v1371
  %v1386 = vpop.permute.xlu0 %1385
  %v1388 = vmul.f32 %v1144, %v1381
  %v1389 = vmul.f32 %v1146, %v1381
  %v1390 = vmul.f32 %v1230, %v1381
  %v1391 = vmul.f32 %v1232, %v1381
  %v1392 = vmul.f32 %v1314, %v1381
  %v1393 = vmul.f32 %v1148, %v1386
  %v1394 = vmul.f32 %v1150, %v1386
  %v1395 = vmul.f32 %v1234, %v1386
  %v1396 = vmul.f32 %v1236, %v1386
  %v1397 = vmul.f32 %v1317, %v1386
  %1399 = vset.pattern.permute.xlu0 0
  %1400 = vperm.xlu0 %1399, %v1376
  %v1401 = vpop.permute.xlu0 %1400
  %1404 = vset.pattern.permute.xlu0 0
  %1405 = vperm.xlu0 %1404, %v1377
  %v1406 = vpop.permute.xlu0 %1405
  %v1408 = vadd.f32 %v1388, %v1401
  %v1409 = vadd.f32 %v1389, %v1401
  %v1410 = vadd.f32 %v1390, %v1401
  %v1411 = vadd.f32 %v1391, %v1401
  %v1412 = vadd.f32 %v1392, %v1401
  %v1413 = vadd.f32 %v1393, %v1406
  %v1414 = vadd.f32 %v1394, %v1406
  %v1415 = vadd.f32 %v1395, %v1406
  %v1416 = vadd.f32 %v1396, %v1406
  %v1417 = vadd.f32 %v1397, %v1406
  %v1418 = vmax.f32 %v1408, 0.0
  %v1419 = vmax.f32 %v1409, 0.0
  %v1420 = vmax.f32 %v1410, 0.0
  %v1421 = vmax.f32 %v1411, 0.0
  %v1422 = vmax.f32 %v1412, 0.0
  %v1423 = vmax.f32 %v1413, 0.0
  %v1424 = vmax.f32 %v1414, 0.0
  %v1425 = vmax.f32 %v1415, 0.0
  %v1426 = vmax.f32 %v1416, 0.0
  %v1427 = vmax.f32 %v1417, 0.0
  %1428 = vst [vmem:[%s4] sm:$0xff] %v1418
  %1429 = vst [vmem:[%s4 + $0x8] sm:$0xff] %v1419
  %1430 = vst [vmem:[%s4 + $0x10] sm:$0xff] %v1420
  %1431 = vst [vmem:[%s4 + $0x18] sm:$0xff] %v1421
  %1432 = vst [vmem:[%s4 + $0x20] sm:$0xff] %v1422
  %1433 = vst [vmem:[%s4 + $0x28] sm:$0xff] %v1423
  %1434 = vst [vmem:[%s4 + $0x30] sm:$0xff] %v1424
  %1435 = vst [vmem:[%s4 + $0x38] sm:$0xff] %v1425
  %1436 = vst [vmem:[%s4 + $0x40] sm:$0xff] %v1426
  %1437 = vst [vmem:[%s4 + $0x48] sm:$0xff] %v1427
  // Predicated region
  $region18: #{generator2_forward.9} parent=0 // pred_check
    _
  $region19: #{generator2_forward.9} parent=0 // pred_check_branch
    %1439 = sbr.rel (0) target = $region21
  $region20: #{generator2_forward.9} parent=0 // pred_region
    _
  $region21: #{generator2_forward.9} parent=0 // pred_fallthru
    _
  // Predicated region
  $region22: #{generator2_forward.9} parent=0 // pred_check
    _
  $region23: #{generator2_forward.9} parent=0 // pred_check_branch
    %1441 = sbr.rel (0) target = $region25
  $region24: #{generator2_forward.9} parent=0 // pred_region
    _
  $region25: #{generator2_forward.9} parent=0 // pred_fallthru
    _

// kernel: generator2_forward.10
$region0: #{generator2_forward.10}
  #allocation0 [shape = 'u32[]', space=smem, size = 0x4, offset = 0x4, fixed_abs, tag = 'smem constant byte address 0x4 - core index']
  #allocation1 [shape = 'u32[144,128]{1,0:T(1,128)}', space=vmem, size = 0x12000, scoped, tag = 'internal scratch']
  %s0 = inlined_call_operand.vmem [shape: bf16[8,256], index: 0, kind: input, shape index: {}]
  %s1 = inlined_call_operand.vmem [shape: bf16[256,1280], index: 1, kind: input, shape index: {}]
  %s2 = inlined_call_operand.vmem [shape: f32[8,1], index: 2, kind: input, shape index: {}]
  %s3 = inlined_call_operand.vmem [shape: f32[8,1], index: 3, kind: input, shape index: {}]
  %s4 = inlined_call_operand.vmem [shape: f32[8,1280], index: 4, kind: output, shape index: {}]
  %s5 = sld [smem:[#allocation0]]
  $region26: #{generator2_forward.10} parent=0
    _
  %s7 = ssub.s32 1, %s5
  %s8 = scalar_select 0, %s7, %s5
  // Predicated region
  $region2: #{generator2_forward.10} parent=0 // pred_check
    _
  $region3: #{generator2_forward.10} parent=0 // pred_check_branch
    %10 = sbr.rel (0) target = $region5
  $region4: #{generator2_forward.10} parent=0 // pred_region
    _
  $region5: #{generator2_forward.10} parent=0 // pred_fallthru
    _
  // Predicated region
  $region6: #{generator2_forward.10} parent=0 // pred_check
    _
  $region7: #{generator2_forward.10} parent=0 // pred_check_branch
    %12 = sbr.rel (0) target = $region9
  $region8: #{generator2_forward.10} parent=0 // pred_region
    _
  $region9: #{generator2_forward.10} parent=0 // pred_fallthru
    _
  // Predicated region
  $region10: #{generator2_forward.10} parent=0 // pred_check
    _
  $region11: #{generator2_forward.10} parent=0 // pred_check_branch
    %14 = sbr.rel (0) target = $region13
  $region12: #{generator2_forward.10} parent=0 // pred_region
    _
  $region13: #{generator2_forward.10} parent=0 // pred_fallthru
    _
  // Predicated region
  $region14: #{generator2_forward.10} parent=0 // pred_check
    _
  $region15: #{generator2_forward.10} parent=0 // pred_check_branch
    %16 = sbr.rel (0) target = $region17
  $region16: #{generator2_forward.10} parent=0 // pred_region
    _
  $region17: #{generator2_forward.10} parent=0 // pred_fallthru
    _
  %v17 = vld [vmem:[%s0] sm:$0xff]
  %v18 = vld [vmem:[%s1] sm:$0xff]
  %v19 = vld [vmem:[%s1 + $0x8] sm:$0xff]
  %v20 = vld [vmem:[%s1 + $0x10] sm:$0xff]
  %v21 = vld [vmem:[%s1 + $0x18] sm:$0xff]
  %v22 = vld [vmem:[%s1 + $0x20] sm:$0xff]
  %v23 = vld [vmem:[%s1 + $0x28] sm:$0xff]
  %v24 = vld [vmem:[%s1 + $0x30] sm:$0xff]
  %v25 = vld [vmem:[%s1 + $0x38] sm:$0xff]
  %v26 = vld [vmem:[%s1 + $0x40] sm:$0xff]
  %v27 = vld [vmem:[%s1 + $0x48] sm:$0xff]
  %v28 = vld [vmem:[%s1 + $0x50] sm:$0xff]
  %v29 = vld [vmem:[%s1 + $0x58] sm:$0xff]
  %v30 = vld [vmem:[%s1 + $0x60] sm:$0xff]
  %v31 = vld [vmem:[%s1 + $0x68] sm:$0xff]
  %v32 = vld [vmem:[%s1 + $0x70] sm:$0xff]
  %v33 = vld [vmem:[%s1 + $0x78] sm:$0xff]
  %v34 = vld [vmem:[%s1 + $0x80] sm:$0xff]
  %v35 = vld [vmem:[%s1 + $0x88] sm:$0xff]
  %v36 = vld [vmem:[%s1 + $0x90] sm:$0xff]
  %v37 = vld [vmem:[%s1 + $0x98] sm:$0xff]
  %v38 = vld [vmem:[%s1 + $0xa0] sm:$0xff]
  %v39 = vld [vmem:[%s1 + $0xa8] sm:$0xff]
  %v40 = vld [vmem:[%s1 + $0xb0] sm:$0xff]
  %v41 = vld [vmem:[%s1 + $0xb8] sm:$0xff]
  %v42 = vld [vmem:[%s1 + $0xc0] sm:$0xff]
  %v43 = vld [vmem:[%s1 + $0xc8] sm:$0xff]
  %v44 = vld [vmem:[%s1 + $0xd0] sm:$0xff]
  %v45 = vld [vmem:[%s1 + $0xd8] sm:$0xff]
  %v46 = vld [vmem:[%s1 + $0xe0] sm:$0xff]
  %v47 = vld [vmem:[%s1 + $0xe8] sm:$0xff]
  %v48 = vld [vmem:[%s1 + $0xf0] sm:$0xff]
  %v49 = vld [vmem:[%s1 + $0xf8] sm:$0xff]
  %v50 = vld [vmem:[%s1 + $0x100] sm:$0xff]
  %v51 = vld [vmem:[%s1 + $0x108] sm:$0xff]
  %v52 = vld [vmem:[%s1 + $0x110] sm:$0xff]
  %v53 = vld [vmem:[%s1 + $0x118] sm:$0xff]
  %v54 = vld [vmem:[%s1 + $0x120] sm:$0xff]
  %v55 = vld [vmem:[%s1 + $0x128] sm:$0xff]
  %v56 = vld [vmem:[%s1 + $0x130] sm:$0xff]
  %v57 = vld [vmem:[%s1 + $0x138] sm:$0xff]
  %v58 = vld [vmem:[%s1 + $0x140] sm:$0xff]
  %v59 = vld [vmem:[%s1 + $0x148] sm:$0xff]
  %v60 = vld [vmem:[%s1 + $0x150] sm:$0xff]
  %v61 = vld [vmem:[%s1 + $0x158] sm:$0xff]
  %v62 = vld [vmem:[%s1 + $0x160] sm:$0xff]
  %v63 = vld [vmem:[%s1 + $0x168] sm:$0xff]
  %v64 = vld [vmem:[%s1 + $0x170] sm:$0xff]
  %v65 = vld [vmem:[%s1 + $0x178] sm:$0xff]
  %v66 = vld [vmem:[%s1 + $0x180] sm:$0xff]
  %v67 = vld [vmem:[%s1 + $0x188] sm:$0xff]
  %v68 = vld [vmem:[%s1 + $0x190] sm:$0xff]
  %v69 = vld [vmem:[%s1 + $0x198] sm:$0xff]
  %v70 = vld [vmem:[%s1 + $0x1a0] sm:$0xff]
  %v71 = vld [vmem:[%s1 + $0x1a8] sm:$0xff]
  %v72 = vld [vmem:[%s1 + $0x1b0] sm:$0xff]
  %v73 = vld [vmem:[%s1 + $0x1b8] sm:$0xff]
  %v74 = vld [vmem:[%s1 + $0x1c0] sm:$0xff]
  %v75 = vld [vmem:[%s1 + $0x1c8] sm:$0xff]
  %v76 = vld [vmem:[%s1 + $0x1d0] sm:$0xff]
  %v77 = vld [vmem:[%s1 + $0x1d8] sm:$0xff]
  %v78 = vld [vmem:[%s1 + $0x1e0] sm:$0xff]
  %v79 = vld [vmem:[%s1 + $0x1e8] sm:$0xff]
  %v80 = vld [vmem:[%s1 + $0x1f0] sm:$0xff]
  %v81 = vld [vmem:[%s1 + $0x1f8] sm:$0xff]
  %v82 = vld [vmem:[%s1 + $0x200] sm:$0xff]
  %v83 = vld [vmem:[%s1 + $0x208] sm:$0xff]
  %v84 = vld [vmem:[%s1 + $0x210] sm:$0xff]
  %v85 = vld [vmem:[%s1 + $0x218] sm:$0xff]
  %v86 = vld [vmem:[%s1 + $0x220] sm:$0xff]
  %v87 = vld [vmem:[%s1 + $0x228] sm:$0xff]
  %v88 = vld [vmem:[%s1 + $0x230] sm:$0xff]
  %v89 = vld [vmem:[%s1 + $0x238] sm:$0xff]
  %v90 = vld [vmem:[%s1 + $0x240] sm:$0xff]
  %v91 = vld [vmem:[%s1 + $0x248] sm:$0xff]
  %v92 = vld [vmem:[%s1 + $0x250] sm:$0xff]
  %v93 = vld [vmem:[%s1 + $0x258] sm:$0xff]
  %v94 = vld [vmem:[%s1 + $0x260] sm:$0xff]
  %v95 = vld [vmem:[%s1 + $0x268] sm:$0xff]
  %v96 = vld [vmem:[%s1 + $0x270] sm:$0xff]
  %v97 = vld [vmem:[%s1 + $0x278] sm:$0xff]
  %v98 = vld [vmem:[%s1 + $0x280] sm:$0xff]
  %v99 = vld [vmem:[%s1 + $0x288] sm:$0xff]
  %v100 = vld [vmem:[%s1 + $0x290] sm:$0xff]
  %v101 = vld [vmem:[%s1 + $0x298] sm:$0xff]
  %v102 = vld [vmem:[%s1 + $0x2a0] sm:$0xff]
  %v103 = vld [vmem:[%s1 + $0x2a8] sm:$0xff]
  %v104 = vld [vmem:[%s1 + $0x2b0] sm:$0xff]
  %v105 = vld [vmem:[%s1 + $0x2b8] sm:$0xff]
  %v106 = vld [vmem:[%s1 + $0x2c0] sm:$0xff]
  %v107 = vld [vmem:[%s1 + $0x2c8] sm:$0xff]
  %v108 = vld [vmem:[%s1 + $0x2d0] sm:$0xff]
  %v109 = vld [vmem:[%s1 + $0x2d8] sm:$0xff]
  %v110 = vld [vmem:[%s1 + $0x2e0] sm:$0xff]
  %v111 = vld [vmem:[%s1 + $0x2e8] sm:$0xff]
  %v112 = vld [vmem:[%s1 + $0x2f0] sm:$0xff]
  %v113 = vld [vmem:[%s1 + $0x2f8] sm:$0xff]
  %v114 = vld [vmem:[%s1 + $0x300] sm:$0xff]
  %v115 = vld [vmem:[%s1 + $0x308] sm:$0xff]
  %v116 = vld [vmem:[%s1 + $0x310] sm:$0xff]
  %v117 = vld [vmem:[%s1 + $0x318] sm:$0xff]
  %v118 = vld [vmem:[%s1 + $0x320] sm:$0xff]
  %v119 = vld [vmem:[%s1 + $0x328] sm:$0xff]
  %v120 = vld [vmem:[%s1 + $0x330] sm:$0xff]
  %v121 = vld [vmem:[%s1 + $0x338] sm:$0xff]
  %v122 = vld [vmem:[%s1 + $0x340] sm:$0xff]
  %v123 = vld [vmem:[%s1 + $0x348] sm:$0xff]
  %v124 = vld [vmem:[%s1 + $0x350] sm:$0xff]
  %v125 = vld [vmem:[%s1 + $0x358] sm:$0xff]
  %v126 = vld [vmem:[%s1 + $0x360] sm:$0xff]
  %v127 = vld [vmem:[%s1 + $0x368] sm:$0xff]
  %v128 = vld [vmem:[%s1 + $0x370] sm:$0xff]
  %v129 = vld [vmem:[%s1 + $0x378] sm:$0xff]
  %v130 = vld [vmem:[%s1 + $0x380] sm:$0xff]
  %v131 = vld [vmem:[%s1 + $0x388] sm:$0xff]
  %v132 = vld [vmem:[%s1 + $0x390] sm:$0xff]
  %v133 = vld [vmem:[%s1 + $0x398] sm:$0xff]
  %v134 = vld [vmem:[%s1 + $0x3a0] sm:$0xff]
  %v135 = vld [vmem:[%s1 + $0x3a8] sm:$0xff]
  %v136 = vld [vmem:[%s1 + $0x3b0] sm:$0xff]
  %v137 = vld [vmem:[%s1 + $0x3b8] sm:$0xff]
  %v138 = vld [vmem:[%s1 + $0x3c0] sm:$0xff]
  %v139 = vld [vmem:[%s1 + $0x3c8] sm:$0xff]
  %v140 = vld [vmem:[%s1 + $0x3d0] sm:$0xff]
  %v141 = vld [vmem:[%s1 + $0x3d8] sm:$0xff]
  %v142 = vld [vmem:[%s1 + $0x3e0] sm:$0xff]
  %v143 = vld [vmem:[%s1 + $0x3e8] sm:$0xff]
  %v144 = vld [vmem:[%s1 + $0x3f0] sm:$0xff]
  %v145 = vld [vmem:[%s1 + $0x3f8] sm:$0xff]
  %v146 = vld [vmem:[%s1 + $0x400] sm:$0xff]
  %v147 = vld [vmem:[%s1 + $0x408] sm:$0xff]
  %v148 = vld [vmem:[%s1 + $0x410] sm:$0xff]
  %v149 = vld [vmem:[%s1 + $0x418] sm:$0xff]
  %v150 = vld [vmem:[%s1 + $0x420] sm:$0xff]
  %v151 = vld [vmem:[%s1 + $0x428] sm:$0xff]
  %v152 = vld [vmem:[%s1 + $0x430] sm:$0xff]
  %v153 = vld [vmem:[%s1 + $0x438] sm:$0xff]
  %v154 = vld [vmem:[%s1 + $0x440] sm:$0xff]
  %v155 = vld [vmem:[%s1 + $0x448] sm:$0xff]
  %v156 = vld [vmem:[%s1 + $0x450] sm:$0xff]
  %v157 = vld [vmem:[%s1 + $0x458] sm:$0xff]
  %v158 = vld [vmem:[%s1 + $0x460] sm:$0xff]
  %v159 = vld [vmem:[%s1 + $0x468] sm:$0xff]
  %v160 = vld [vmem:[%s1 + $0x470] sm:$0xff]
  %v161 = vld [vmem:[%s1 + $0x478] sm:$0xff]
  %v162 = vld [vmem:[%s1 + $0x480] sm:$0xff]
  %v163 = vld [vmem:[%s1 + $0x488] sm:$0xff]
  %v164 = vld [vmem:[%s1 + $0x490] sm:$0xff]
  %v165 = vld [vmem:[%s1 + $0x498] sm:$0xff]
  %v166 = vld [vmem:[%s1 + $0x4a0] sm:$0xff]
  %v167 = vld [vmem:[%s1 + $0x4a8] sm:$0xff]
  %v168 = vld [vmem:[%s1 + $0x4b0] sm:$0xff]
  %v169 = vld [vmem:[%s1 + $0x4b8] sm:$0xff]
  %v170 = vld [vmem:[%s1 + $0x4c0] sm:$0xff]
  %v171 = vld [vmem:[%s1 + $0x4c8] sm:$0xff]
  %v172 = vld [vmem:[%s1 + $0x4d0] sm:$0xff]
  %v173 = vld [vmem:[%s1 + $0x4d8] sm:$0xff]
  %v174 = vld [vmem:[%s1 + $0x4e0] sm:$0xff]
  %v175 = vld [vmem:[%s1 + $0x4e8] sm:$0xff]
  %v176 = vld [vmem:[%s1 + $0x4f0] sm:$0xff]
  %v177 = vld [vmem:[%s1 + $0x4f8] sm:$0xff]
  %v179 = vunpack.c.l.b16 %v17
  %v180 = vunpack.c.h.b16 %v17
  %v181 = vpack.c.b16 %v179, %v179
  %v182 = vpack.c.b16 %v180, %v180
  %v345 = vunpack.c.l.b16 %v18
  %v346 = vunpack.c.h.b16 %v18
  %v347 = vunpack.c.l.b16 %v19
  %v348 = vunpack.c.h.b16 %v19
  %v349 = vunpack.c.l.b16 %v20
  %v350 = vunpack.c.h.b16 %v20
  %v351 = vunpack.c.l.b16 %v21
  %v352 = vunpack.c.h.b16 %v21
  %v353 = vunpack.c.l.b16 %v22
  %v354 = vunpack.c.h.b16 %v22
  %v355 = vunpack.c.l.b16 %v23
  %v356 = vunpack.c.h.b16 %v23
  %v357 = vunpack.c.l.b16 %v24
  %v358 = vunpack.c.h.b16 %v24
  %v359 = vunpack.c.l.b16 %v25
  %v360 = vunpack.c.h.b16 %v25
  %v361 = vunpack.c.l.b16 %v26
  %v362 = vunpack.c.h.b16 %v26
  %v363 = vunpack.c.l.b16 %v27
  %v364 = vunpack.c.h.b16 %v27
  %v365 = vunpack.c.l.b16 %v28
  %v366 = vunpack.c.h.b16 %v28
  %v367 = vunpack.c.l.b16 %v29
  %v368 = vunpack.c.h.b16 %v29
  %v369 = vunpack.c.l.b16 %v30
  %v370 = vunpack.c.h.b16 %v30
  %v371 = vunpack.c.l.b16 %v31
  %v372 = vunpack.c.h.b16 %v31
  %v373 = vunpack.c.l.b16 %v32
  %v374 = vunpack.c.h.b16 %v32
  %v375 = vunpack.c.l.b16 %v33
  %v376 = vunpack.c.h.b16 %v33
  %v377 = vunpack.c.l.b16 %v34
  %v378 = vunpack.c.h.b16 %v34
  %v379 = vunpack.c.l.b16 %v35
  %v380 = vunpack.c.h.b16 %v35
  %v381 = vunpack.c.l.b16 %v36
  %v382 = vunpack.c.h.b16 %v36
  %v383 = vunpack.c.l.b16 %v37
  %v384 = vunpack.c.h.b16 %v37
  %v385 = vunpack.c.l.b16 %v38
  %v386 = vunpack.c.h.b16 %v38
  %v387 = vunpack.c.l.b16 %v39
  %v388 = vunpack.c.h.b16 %v39
  %v389 = vunpack.c.l.b16 %v40
  %v390 = vunpack.c.h.b16 %v40
  %v391 = vunpack.c.l.b16 %v41
  %v392 = vunpack.c.h.b16 %v41
  %v393 = vunpack.c.l.b16 %v42
  %v394 = vunpack.c.h.b16 %v42
  %v395 = vunpack.c.l.b16 %v43
  %v396 = vunpack.c.h.b16 %v43
  %v397 = vunpack.c.l.b16 %v44
  %v398 = vunpack.c.h.b16 %v44
  %v399 = vunpack.c.l.b16 %v45
  %v400 = vunpack.c.h.b16 %v45
  %v401 = vunpack.c.l.b16 %v46
  %v402 = vunpack.c.h.b16 %v46
  %v403 = vunpack.c.l.b16 %v47
  %v404 = vunpack.c.h.b16 %v47
  %v405 = vunpack.c.l.b16 %v48
  %v406 = vunpack.c.h.b16 %v48
  %v407 = vunpack.c.l.b16 %v49
  %v408 = vunpack.c.h.b16 %v49
  %v409 = vunpack.c.l.b16 %v50
  %v410 = vunpack.c.h.b16 %v50
  %v411 = vunpack.c.l.b16 %v51
  %v412 = vunpack.c.h.b16 %v51
  %v413 = vunpack.c.l.b16 %v52
  %v414 = vunpack.c.h.b16 %v52
  %v415 = vunpack.c.l.b16 %v53
  %v416 = vunpack.c.h.b16 %v53
  %v417 = vunpack.c.l.b16 %v54
  %v418 = vunpack.c.h.b16 %v54
  %v419 = vunpack.c.l.b16 %v55
  %v420 = vunpack.c.h.b16 %v55
  %v421 = vunpack.c.l.b16 %v56
  %v422 = vunpack.c.h.b16 %v56
  %v423 = vunpack.c.l.b16 %v57
  %v424 = vunpack.c.h.b16 %v57
  %v425 = vunpack.c.l.b16 %v58
  %v426 = vunpack.c.h.b16 %v58
  %v427 = vunpack.c.l.b16 %v59
  %v428 = vunpack.c.h.b16 %v59
  %v429 = vunpack.c.l.b16 %v60
  %v430 = vunpack.c.h.b16 %v60
  %v431 = vunpack.c.l.b16 %v61
  %v432 = vunpack.c.h.b16 %v61
  %v433 = vunpack.c.l.b16 %v62
  %v434 = vunpack.c.h.b16 %v62
  %v435 = vunpack.c.l.b16 %v63
  %v436 = vunpack.c.h.b16 %v63
  %v437 = vunpack.c.l.b16 %v64
  %v438 = vunpack.c.h.b16 %v64
  %v439 = vunpack.c.l.b16 %v65
  %v440 = vunpack.c.h.b16 %v65
  %v441 = vunpack.c.l.b16 %v66
  %v442 = vunpack.c.h.b16 %v66
  %v443 = vunpack.c.l.b16 %v67
  %v444 = vunpack.c.h.b16 %v67
  %v445 = vunpack.c.l.b16 %v68
  %v446 = vunpack.c.h.b16 %v68
  %v447 = vunpack.c.l.b16 %v69
  %v448 = vunpack.c.h.b16 %v69
  %v449 = vunpack.c.l.b16 %v70
  %v450 = vunpack.c.h.b16 %v70
  %v451 = vunpack.c.l.b16 %v71
  %v452 = vunpack.c.h.b16 %v71
  %v453 = vunpack.c.l.b16 %v72
  %v454 = vunpack.c.h.b16 %v72
  %v455 = vunpack.c.l.b16 %v73
  %v456 = vunpack.c.h.b16 %v73
  %v457 = vunpack.c.l.b16 %v74
  %v458 = vunpack.c.h.b16 %v74
  %v459 = vunpack.c.l.b16 %v75
  %v460 = vunpack.c.h.b16 %v75
  %v461 = vunpack.c.l.b16 %v76
  %v462 = vunpack.c.h.b16 %v76
  %v463 = vunpack.c.l.b16 %v77
  %v464 = vunpack.c.h.b16 %v77
  %v465 = vunpack.c.l.b16 %v78
  %v466 = vunpack.c.h.b16 %v78
  %v467 = vunpack.c.l.b16 %v79
  %v468 = vunpack.c.h.b16 %v79
  %v469 = vunpack.c.l.b16 %v80
  %v470 = vunpack.c.h.b16 %v80
  %v471 = vunpack.c.l.b16 %v81
  %v472 = vunpack.c.h.b16 %v81
  %v473 = vunpack.c.l.b16 %v82
  %v474 = vunpack.c.h.b16 %v82
  %v475 = vunpack.c.l.b16 %v83
  %v476 = vunpack.c.h.b16 %v83
  %v477 = vunpack.c.l.b16 %v84
  %v478 = vunpack.c.h.b16 %v84
  %v479 = vunpack.c.l.b16 %v85
  %v480 = vunpack.c.h.b16 %v85
  %v481 = vunpack.c.l.b16 %v86
  %v482 = vunpack.c.h.b16 %v86
  %v483 = vunpack.c.l.b16 %v87
  %v484 = vunpack.c.h.b16 %v87
  %v485 = vunpack.c.l.b16 %v88
  %v486 = vunpack.c.h.b16 %v88
  %v487 = vunpack.c.l.b16 %v89
  %v488 = vunpack.c.h.b16 %v89
  %v489 = vunpack.c.l.b16 %v90
  %v490 = vunpack.c.h.b16 %v90
  %v491 = vunpack.c.l.b16 %v91
  %v492 = vunpack.c.h.b16 %v91
  %v493 = vunpack.c.l.b16 %v92
  %v494 = vunpack.c.h.b16 %v92
  %v495 = vunpack.c.l.b16 %v93
  %v496 = vunpack.c.h.b16 %v93
  %v497 = vunpack.c.l.b16 %v94
  %v498 = vunpack.c.h.b16 %v94
  %v499 = vunpack.c.l.b16 %v95
  %v500 = vunpack.c.h.b16 %v95
  %v501 = vunpack.c.l.b16 %v96
  %v502 = vunpack.c.h.b16 %v96
  %v503 = vunpack.c.l.b16 %v97
  %v504 = vunpack.c.h.b16 %v97
  %v505 = vunpack.c.l.b16 %v98
  %v506 = vunpack.c.h.b16 %v98
  %v507 = vunpack.c.l.b16 %v99
  %v508 = vunpack.c.h.b16 %v99
  %v509 = vunpack.c.l.b16 %v100
  %v510 = vunpack.c.h.b16 %v100
  %v511 = vunpack.c.l.b16 %v101
  %v512 = vunpack.c.h.b16 %v101
  %v513 = vunpack.c.l.b16 %v102
  %v514 = vunpack.c.h.b16 %v102
  %v515 = vunpack.c.l.b16 %v103
  %v516 = vunpack.c.h.b16 %v103
  %v517 = vunpack.c.l.b16 %v104
  %v518 = vunpack.c.h.b16 %v104
  %v519 = vunpack.c.l.b16 %v105
  %v520 = vunpack.c.h.b16 %v105
  %v521 = vunpack.c.l.b16 %v106
  %v522 = vunpack.c.h.b16 %v106
  %v523 = vunpack.c.l.b16 %v107
  %v524 = vunpack.c.h.b16 %v107
  %v525 = vunpack.c.l.b16 %v108
  %v526 = vunpack.c.h.b16 %v108
  %v527 = vunpack.c.l.b16 %v109
  %v528 = vunpack.c.h.b16 %v109
  %v529 = vunpack.c.l.b16 %v110
  %v530 = vunpack.c.h.b16 %v110
  %v531 = vunpack.c.l.b16 %v111
  %v532 = vunpack.c.h.b16 %v111
  %v533 = vunpack.c.l.b16 %v112
  %v534 = vunpack.c.h.b16 %v112
  %v535 = vunpack.c.l.b16 %v113
  %v536 = vunpack.c.h.b16 %v113
  %v537 = vunpack.c.l.b16 %v114
  %v538 = vunpack.c.h.b16 %v114
  %v539 = vunpack.c.l.b16 %v115
  %v540 = vunpack.c.h.b16 %v115
  %v541 = vunpack.c.l.b16 %v116
  %v542 = vunpack.c.h.b16 %v116
  %v543 = vunpack.c.l.b16 %v117
  %v544 = vunpack.c.h.b16 %v117
  %v545 = vunpack.c.l.b16 %v118
  %v546 = vunpack.c.h.b16 %v118
  %v547 = vunpack.c.l.b16 %v119
  %v548 = vunpack.c.h.b16 %v119
  %v549 = vunpack.c.l.b16 %v120
  %v550 = vunpack.c.h.b16 %v120
  %v551 = vunpack.c.l.b16 %v121
  %v552 = vunpack.c.h.b16 %v121
  %v553 = vunpack.c.l.b16 %v122
  %v554 = vunpack.c.h.b16 %v122
  %v555 = vunpack.c.l.b16 %v123
  %v556 = vunpack.c.h.b16 %v123
  %v557 = vunpack.c.l.b16 %v124
  %v558 = vunpack.c.h.b16 %v124
  %v559 = vunpack.c.l.b16 %v125
  %v560 = vunpack.c.h.b16 %v125
  %v561 = vunpack.c.l.b16 %v126
  %v562 = vunpack.c.h.b16 %v126
  %v563 = vunpack.c.l.b16 %v127
  %v564 = vunpack.c.h.b16 %v127
  %v565 = vunpack.c.l.b16 %v128
  %v566 = vunpack.c.h.b16 %v128
  %v567 = vunpack.c.l.b16 %v129
  %v568 = vunpack.c.h.b16 %v129
  %v569 = vunpack.c.l.b16 %v130
  %v570 = vunpack.c.h.b16 %v130
  %v571 = vunpack.c.l.b16 %v131
  %v572 = vunpack.c.h.b16 %v131
  %v573 = vunpack.c.l.b16 %v132
  %v574 = vunpack.c.h.b16 %v132
  %v575 = vunpack.c.l.b16 %v133
  %v576 = vunpack.c.h.b16 %v133
  %v577 = vunpack.c.l.b16 %v134
  %v578 = vunpack.c.h.b16 %v134
  %v579 = vunpack.c.l.b16 %v135
  %v580 = vunpack.c.h.b16 %v135
  %v581 = vunpack.c.l.b16 %v136
  %v582 = vunpack.c.h.b16 %v136
  %v583 = vunpack.c.l.b16 %v137
  %v584 = vunpack.c.h.b16 %v137
  %v585 = vunpack.c.l.b16 %v138
  %v586 = vunpack.c.h.b16 %v138
  %v587 = vunpack.c.l.b16 %v139
  %v588 = vunpack.c.h.b16 %v139
  %v589 = vunpack.c.l.b16 %v140
  %v590 = vunpack.c.h.b16 %v140
  %v591 = vunpack.c.l.b16 %v141
  %v592 = vunpack.c.h.b16 %v141
  %v593 = vunpack.c.l.b16 %v142
  %v594 = vunpack.c.h.b16 %v142
  %v595 = vunpack.c.l.b16 %v143
  %v596 = vunpack.c.h.b16 %v143
  %v597 = vunpack.c.l.b16 %v144
  %v598 = vunpack.c.h.b16 %v144
  %v599 = vunpack.c.l.b16 %v145
  %v600 = vunpack.c.h.b16 %v145
  %v601 = vunpack.c.l.b16 %v146
  %v602 = vunpack.c.h.b16 %v146
  %v603 = vunpack.c.l.b16 %v147
  %v604 = vunpack.c.h.b16 %v147
  %v605 = vunpack.c.l.b16 %v148
  %v606 = vunpack.c.h.b16 %v148
  %v607 = vunpack.c.l.b16 %v149
  %v608 = vunpack.c.h.b16 %v149
  %v609 = vunpack.c.l.b16 %v150
  %v610 = vunpack.c.h.b16 %v150
  %v611 = vunpack.c.l.b16 %v151
  %v612 = vunpack.c.h.b16 %v151
  %v613 = vunpack.c.l.b16 %v152
  %v614 = vunpack.c.h.b16 %v152
  %v615 = vunpack.c.l.b16 %v153
  %v616 = vunpack.c.h.b16 %v153
  %v617 = vunpack.c.l.b16 %v154
  %v618 = vunpack.c.h.b16 %v154
  %v619 = vunpack.c.l.b16 %v155
  %v620 = vunpack.c.h.b16 %v155
  %v621 = vunpack.c.l.b16 %v156
  %v622 = vunpack.c.h.b16 %v156
  %v623 = vunpack.c.l.b16 %v157
  %v624 = vunpack.c.h.b16 %v157
  %v625 = vunpack.c.l.b16 %v158
  %v626 = vunpack.c.h.b16 %v158
  %v627 = vunpack.c.l.b16 %v159
  %v628 = vunpack.c.h.b16 %v159
  %v629 = vunpack.c.l.b16 %v160
  %v630 = vunpack.c.h.b16 %v160
  %v631 = vunpack.c.l.b16 %v161
  %v632 = vunpack.c.h.b16 %v161
  %v633 = vunpack.c.l.b16 %v162
  %v634 = vunpack.c.h.b16 %v162
  %v635 = vunpack.c.l.b16 %v163
  %v636 = vunpack.c.h.b16 %v163
  %v637 = vunpack.c.l.b16 %v164
  %v638 = vunpack.c.h.b16 %v164
  %v639 = vunpack.c.l.b16 %v165
  %v640 = vunpack.c.h.b16 %v165
  %v641 = vunpack.c.l.b16 %v166
  %v642 = vunpack.c.h.b16 %v166
  %v643 = vunpack.c.l.b16 %v167
  %v644 = vunpack.c.h.b16 %v167
  %v645 = vunpack.c.l.b16 %v168
  %v646 = vunpack.c.h.b16 %v168
  %v647 = vunpack.c.l.b16 %v169
  %v648 = vunpack.c.h.b16 %v169
  %v649 = vunpack.c.l.b16 %v170
  %v650 = vunpack.c.h.b16 %v170
  %v651 = vunpack.c.l.b16 %v171
  %v652 = vunpack.c.h.b16 %v171
  %v653 = vunpack.c.l.b16 %v172
  %v654 = vunpack.c.h.b16 %v172
  %v655 = vunpack.c.l.b16 %v173
  %v656 = vunpack.c.h.b16 %v173
  %v657 = vunpack.c.l.b16 %v174
  %v658 = vunpack.c.h.b16 %v174
  %v659 = vunpack.c.l.b16 %v175
  %v660 = vunpack.c.h.b16 %v175
  %v661 = vunpack.c.l.b16 %v176
  %v662 = vunpack.c.h.b16 %v176
  %v663 = vunpack.c.l.b16 %v177
  %v664 = vunpack.c.h.b16 %v177
  %v665 = vpack.c.b16 %v355, %v345
  %v666 = vpack.c.b16 %v356, %v346
  %v667 = vpack.c.b16 %v357, %v347
  %v668 = vpack.c.b16 %v358, %v348
  %v669 = vpack.c.b16 %v359, %v349
  %v670 = vpack.c.b16 %v360, %v350
  %v671 = vpack.c.b16 %v361, %v351
  %v672 = vpack.c.b16 %v362, %v352
  %v673 = vpack.c.b16 %v363, %v353
  %v674 = vpack.c.b16 %v364, %v354
  %v675 = vpack.c.b16 %v375, %v365
  %v676 = vpack.c.b16 %v376, %v366
  %v677 = vpack.c.b16 %v377, %v367
  %v678 = vpack.c.b16 %v378, %v368
  %v679 = vpack.c.b16 %v379, %v369
  %v680 = vpack.c.b16 %v380, %v370
  %v681 = vpack.c.b16 %v381, %v371
  %v682 = vpack.c.b16 %v382, %v372
  %v683 = vpack.c.b16 %v383, %v373
  %v684 = vpack.c.b16 %v384, %v374
  %v685 = vpack.c.b16 %v395, %v385
  %v686 = vpack.c.b16 %v396, %v386
  %v687 = vpack.c.b16 %v397, %v387
  %v688 = vpack.c.b16 %v398, %v388
  %v689 = vpack.c.b16 %v399, %v389
  %v690 = vpack.c.b16 %v400, %v390
  %v691 = vpack.c.b16 %v401, %v391
  %v692 = vpack.c.b16 %v402, %v392
  %v693 = vpack.c.b16 %v403, %v393
  %v694 = vpack.c.b16 %v404, %v394
  %v695 = vpack.c.b16 %v415, %v405
  %v696 = vpack.c.b16 %v416, %v406
  %v697 = vpack.c.b16 %v417, %v407
  %v698 = vpack.c.b16 %v418, %v408
  %v699 = vpack.c.b16 %v419, %v409
  %v700 = vpack.c.b16 %v420, %v410
  %v701 = vpack.c.b16 %v421, %v411
  %v702 = vpack.c.b16 %v422, %v412
  %v703 = vpack.c.b16 %v423, %v413
  %v704 = vpack.c.b16 %v424, %v414
  %v705 = vpack.c.b16 %v435, %v425
  %v706 = vpack.c.b16 %v436, %v426
  %v707 = vpack.c.b16 %v437, %v427
  %v708 = vpack.c.b16 %v438, %v428
  %v709 = vpack.c.b16 %v439, %v429
  %v710 = vpack.c.b16 %v440, %v430
  %v711 = vpack.c.b16 %v441, %v431
  %v712 = vpack.c.b16 %v442, %v432
  %v713 = vpack.c.b16 %v443, %v433
  %v714 = vpack.c.b16 %v444, %v434
  %v715 = vpack.c.b16 %v455, %v445
  %v716 = vpack.c.b16 %v456, %v446
  %v717 = vpack.c.b16 %v457, %v447
  %v718 = vpack.c.b16 %v458, %v448
  %v719 = vpack.c.b16 %v459, %v449
  %v720 = vpack.c.b16 %v460, %v450
  %v721 = vpack.c.b16 %v461, %v451
  %v722 = vpack.c.b16 %v462, %v452
  %v723 = vpack.c.b16 %v463, %v453
  %v724 = vpack.c.b16 %v464, %v454
  %v725 = vpack.c.b16 %v475, %v465
  %v726 = vpack.c.b16 %v476, %v466
  %v727 = vpack.c.b16 %v477, %v467
  %v728 = vpack.c.b16 %v478, %v468
  %v729 = vpack.c.b16 %v479, %v469
  %v730 = vpack.c.b16 %v480, %v470
  %v731 = vpack.c.b16 %v481, %v471
  %v732 = vpack.c.b16 %v482, %v472
  %v733 = vpack.c.b16 %v483, %v473
  %v734 = vpack.c.b16 %v484, %v474
  %v735 = vpack.c.b16 %v495, %v485
  %v736 = vpack.c.b16 %v496, %v486
  %v737 = vpack.c.b16 %v497, %v487
  %v738 = vpack.c.b16 %v498, %v488
  %v739 = vpack.c.b16 %v499, %v489
  %v740 = vpack.c.b16 %v500, %v490
  %v741 = vpack.c.b16 %v501, %v491
  %v742 = vpack.c.b16 %v502, %v492
  %v743 = vpack.c.b16 %v503, %v493
  %v744 = vpack.c.b16 %v504, %v494
  %v745 = vpack.c.b16 %v515, %v505
  %v746 = vpack.c.b16 %v516, %v506
  %v747 = vpack.c.b16 %v517, %v507
  %v748 = vpack.c.b16 %v518, %v508
  %v749 = vpack.c.b16 %v519, %v509
  %v750 = vpack.c.b16 %v520, %v510
  %v751 = vpack.c.b16 %v521, %v511
  %v752 = vpack.c.b16 %v522, %v512
  %v753 = vpack.c.b16 %v523, %v513
  %v754 = vpack.c.b16 %v524, %v514
  %v755 = vpack.c.b16 %v535, %v525
  %v756 = vpack.c.b16 %v536, %v526
  %v757 = vpack.c.b16 %v537, %v527
  %v758 = vpack.c.b16 %v538, %v528
  %v759 = vpack.c.b16 %v539, %v529
  %v760 = vpack.c.b16 %v540, %v530
  %v761 = vpack.c.b16 %v541, %v531
  %v762 = vpack.c.b16 %v542, %v532
  %v763 = vpack.c.b16 %v543, %v533
  %v764 = vpack.c.b16 %v544, %v534
  %v765 = vpack.c.b16 %v555, %v545
  %v766 = vpack.c.b16 %v556, %v546
  %v767 = vpack.c.b16 %v557, %v547
  %v768 = vpack.c.b16 %v558, %v548
  %v769 = vpack.c.b16 %v559, %v549
  %v770 = vpack.c.b16 %v560, %v550
  %v771 = vpack.c.b16 %v561, %v551
  %v772 = vpack.c.b16 %v562, %v552
  %v773 = vpack.c.b16 %v563, %v553
  %v774 = vpack.c.b16 %v564, %v554
  %v775 = vpack.c.b16 %v575, %v565
  %v776 = vpack.c.b16 %v576, %v566
  %v777 = vpack.c.b16 %v577, %v567
  %v778 = vpack.c.b16 %v578, %v568
  %v779 = vpack.c.b16 %v579, %v569
  %v780 = vpack.c.b16 %v580, %v570
  %v781 = vpack.c.b16 %v581, %v571
  %v782 = vpack.c.b16 %v582, %v572
  %v783 = vpack.c.b16 %v583, %v573
  %v784 = vpack.c.b16 %v584, %v574
  %v785 = vpack.c.b16 %v595, %v585
  %v786 = vpack.c.b16 %v596, %v586
  %v787 = vpack.c.b16 %v597, %v587
  %v788 = vpack.c.b16 %v598, %v588
  %v789 = vpack.c.b16 %v599, %v589
  %v790 = vpack.c.b16 %v600, %v590
  %v791 = vpack.c.b16 %v601, %v591
  %v792 = vpack.c.b16 %v602, %v592
  %v793 = vpack.c.b16 %v603, %v593
  %v794 = vpack.c.b16 %v604, %v594
  %v795 = vpack.c.b16 %v615, %v605
  %v796 = vpack.c.b16 %v616, %v606
  %v797 = vpack.c.b16 %v617, %v607
  %v798 = vpack.c.b16 %v618, %v608
  %v799 = vpack.c.b16 %v619, %v609
  %v800 = vpack.c.b16 %v620, %v610
  %v801 = vpack.c.b16 %v621, %v611
  %v802 = vpack.c.b16 %v622, %v612
  %v803 = vpack.c.b16 %v623, %v613
  %v804 = vpack.c.b16 %v624, %v614
  %v805 = vpack.c.b16 %v635, %v625
  %v806 = vpack.c.b16 %v636, %v626
  %v807 = vpack.c.b16 %v637, %v627
  %v808 = vpack.c.b16 %v638, %v628
  %v809 = vpack.c.b16 %v639, %v629
  %v810 = vpack.c.b16 %v640, %v630
  %v811 = vpack.c.b16 %v641, %v631
  %v812 = vpack.c.b16 %v642, %v632
  %v813 = vpack.c.b16 %v643, %v633
  %v814 = vpack.c.b16 %v644, %v634
  %v815 = vpack.c.b16 %v655, %v645
  %v816 = vpack.c.b16 %v656, %v646
  %v817 = vpack.c.b16 %v657, %v647
  %v818 = vpack.c.b16 %v658, %v648
  %v819 = vpack.c.b16 %v659, %v649
  %v820 = vpack.c.b16 %v660, %v650
  %v821 = vpack.c.b16 %v661, %v651
  %v822 = vpack.c.b16 %v662, %v652
  %v823 = vpack.c.b16 %v663, %v653
  %v824 = vpack.c.b16 %v664, %v654
  %985 = vmatprep.subr.bf16.mxu0 %v736
  %986 = vmatpush1.bf16.msra.mxu0 %v735
  %987 = vmatprep.subr.bf16.mxu0 %v726
  %988 = vmatpush1.bf16.msra.mxu0 %v725
  %989 = vmatprep.subr.bf16.mxu0 %v716
  %990 = vmatpush1.bf16.msra.mxu0 %v715
  %991 = vmatprep.subr.bf16.mxu0 %v706
  %992 = vmatpush1.bf16.msra.mxu0 %v705
  %993 = vmatprep.subr.bf16.mxu0 %v696
  %994 = vmatpush1.bf16.msra.mxu0 %v695
  %995 = vmatprep.subr.bf16.mxu0 %v686
  %996 = vmatpush1.bf16.msra.mxu0 %v685
  %997 = vmatprep.subr.bf16.mxu0 %v676
  %998 = vmatpush1.bf16.msra.mxu0 %v675
  %999 = vmatprep.subr.bf16.mxu0 %v666
  %1000 = vmatpush1.bf16.msra.mxu0 %v665
  %1001 = vmatprep.subr.bf16.mxu0 %v816
  %1002 = vmatpush2.bf16.msra.mxu0 %v815
  %1003 = vmatprep.subr.bf16.mxu0 %v806
  %1004 = vmatpush2.bf16.msra.mxu0 %v805
  %1005 = vmatprep.subr.bf16.mxu0 %v796
  %1006 = vmatpush2.bf16.msra.mxu0 %v795
  %1007 = vmatprep.subr.bf16.mxu0 %v786
  %1008 = vmatpush2.bf16.msra.mxu0 %v785
  %1009 = vmatprep.subr.bf16.mxu0 %v776
  %1010 = vmatpush2.bf16.msra.mxu0 %v775
  %1011 = vmatprep.subr.bf16.mxu0 %v766
  %1012 = vmatpush2.bf16.msra.mxu0 %v765
  %1013 = vmatprep.subr.bf16.mxu0 %v756
  %1014 = vmatpush2.bf16.msra.mxu0 %v755
  %1015 = vmatprep.subr.bf16.mxu0 %v746
  %1016 = vmatpush2.bf16.msra.mxu0 %v745
  %1017 = vmatprep.mubr.bf16.mxu0 %v182
  %1018 = vmatmul.mubr.bf16.gmra.mxu0 %v181
  %v1019 = vpop.f32.mrf.mxu0
  %v1020 = vadd.f32 0.0, %v1019
  %v1021 = vpop.f32.mrf.mxu0
  %v1022 = vadd.f32 0.0, %v1021
  %v1023 = vpop.f32.mrf.mxu0
  %v1024 = vpop.f32.mrf.mxu0
  %1025 = vdwg.mxu0
  %1026 = vmatprep.subr.bf16.mxu0 %v738
  %1027 = vmatpush1.bf16.msra.mxu0 %v737
  %1028 = vmatprep.subr.bf16.mxu0 %v728
  %1029 = vmatpush1.bf16.msra.mxu0 %v727
  %1030 = vmatprep.subr.bf16.mxu0 %v718
  %1031 = vmatpush1.bf16.msra.mxu0 %v717
  %1032 = vmatprep.subr.bf16.mxu0 %v708
  %1033 = vmatpush1.bf16.msra.mxu0 %v707
  %1034 = vmatprep.subr.bf16.mxu0 %v698
  %1035 = vmatpush1.bf16.msra.mxu0 %v697
  %1036 = vmatprep.subr.bf16.mxu0 %v688
  %1037 = vmatpush1.bf16.msra.mxu0 %v687
  %1038 = vmatprep.subr.bf16.mxu0 %v678
  %1039 = vmatpush1.bf16.msra.mxu0 %v677
  %1040 = vmatprep.subr.bf16.mxu0 %v668
  %1041 = vmatpush1.bf16.msra.mxu0 %v667
  %1042 = vmatprep.subr.bf16.mxu0 %v818
  %1043 = vmatpush2.bf16.msra.mxu0 %v817
  %1044 = vmatprep.subr.bf16.mxu0 %v808
  %1045 = vmatpush2.bf16.msra.mxu0 %v807
  %1046 = vmatprep.subr.bf16.mxu0 %v798
  %1047 = vmatpush2.bf16.msra.mxu0 %v797
  %1048 = vmatprep.subr.bf16.mxu0 %v788
  %1049 = vmatpush2.bf16.msra.mxu0 %v787
  %1050 = vmatprep.subr.bf16.mxu0 %v778
  %1051 = vmatpush2.bf16.msra.mxu0 %v777
  %1052 = vmatprep.subr.bf16.mxu0 %v768
  %1053 = vmatpush2.bf16.msra.mxu0 %v767
  %1054 = vmatprep.subr.bf16.mxu0 %v758
  %1055 = vmatpush2.bf16.msra.mxu0 %v757
  %1056 = vmatprep.subr.bf16.mxu0 %v748
  %1057 = vmatpush2.bf16.msra.mxu0 %v747
  %1058 = vmatprep.mubr.bf16.mxu0 %v182
  %1059 = vmatmul.mubr.bf16.gmra.mxu0 %v181
  %v1060 = vpop.f32.mrf.mxu0
  %v1061 = vadd.f32 0.0, %v1060
  %v1062 = vpop.f32.mrf.mxu0
  %v1063 = vadd.f32 0.0, %v1062
  %v1064 = vpop.f32.mrf.mxu0
  %v1065 = vpop.f32.mrf.mxu0
  %1066 = vdwg.mxu0
  %1067 = vmatprep.subr.bf16.mxu0 %v740
  %1068 = vmatpush1.bf16.msra.mxu0 %v739
  %1069 = vmatprep.subr.bf16.mxu0 %v730
  %1070 = vmatpush1.bf16.msra.mxu0 %v729
  %1071 = vmatprep.subr.bf16.mxu0 %v720
  %1072 = vmatpush1.bf16.msra.mxu0 %v719
  %1073 = vmatprep.subr.bf16.mxu0 %v710
  %1074 = vmatpush1.bf16.msra.mxu0 %v709
  %1075 = vmatprep.subr.bf16.mxu0 %v700
  %1076 = vmatpush1.bf16.msra.mxu0 %v699
  %1077 = vmatprep.subr.bf16.mxu0 %v690
  %1078 = vmatpush1.bf16.msra.mxu0 %v689
  %1079 = vmatprep.subr.bf16.mxu0 %v680
  %1080 = vmatpush1.bf16.msra.mxu0 %v679
  %1081 = vmatprep.subr.bf16.mxu0 %v670
  %1082 = vmatpush1.bf16.msra.mxu0 %v669
  %1083 = vmatprep.subr.bf16.mxu0 %v820
  %1084 = vmatpush2.bf16.msra.mxu0 %v819
  %1085 = vmatprep.subr.bf16.mxu0 %v810
  %1086 = vmatpush2.bf16.msra.mxu0 %v809
  %1087 = vmatprep.subr.bf16.mxu0 %v800
  %1088 = vmatpush2.bf16.msra.mxu0 %v799
  %1089 = vmatprep.subr.bf16.mxu0 %v790
  %1090 = vmatpush2.bf16.msra.mxu0 %v789
  %1091 = vmatprep.subr.bf16.mxu0 %v780
  %1092 = vmatpush2.bf16.msra.mxu0 %v779
  %1093 = vmatprep.subr.bf16.mxu0 %v770
  %1094 = vmatpush2.bf16.msra.mxu0 %v769
  %1095 = vmatprep.subr.bf16.mxu0 %v760
  %1096 = vmatpush2.bf16.msra.mxu0 %v759
  %1097 = vmatprep.subr.bf16.mxu0 %v750
  %1098 = vmatpush2.bf16.msra.mxu0 %v749
  %1099 = vmatprep.mubr.bf16.mxu0 %v182
  %1100 = vmatmul.mubr.bf16.gmra.mxu0 %v181
  %v1101 = vpop.f32.mrf.mxu0
  %v1102 = vadd.f32 0.0, %v1101
  %v1103 = vpop.f32.mrf.mxu0
  %v1104 = vadd.f32 0.0, %v1103
  %v1105 = vpop.f32.mrf.mxu0
  %v1106 = vpop.f32.mrf.mxu0
  %1107 = vdwg.mxu0
  %1108 = vmatprep.subr.bf16.mxu0 %v742
  %1109 = vmatpush1.bf16.msra.mxu0 %v741
  %1110 = vmatprep.subr.bf16.mxu0 %v732
  %1111 = vmatpush1.bf16.msra.mxu0 %v731
  %1112 = vmatprep.subr.bf16.mxu0 %v722
  %1113 = vmatpush1.bf16.msra.mxu0 %v721
  %1114 = vmatprep.subr.bf16.mxu0 %v712
  %1115 = vmatpush1.bf16.msra.mxu0 %v711
  %1116 = vmatprep.subr.bf16.mxu0 %v702
  %1117 = vmatpush1.bf16.msra.mxu0 %v701
  %1118 = vmatprep.subr.bf16.mxu0 %v692
  %1119 = vmatpush1.bf16.msra.mxu0 %v691
  %1120 = vmatprep.subr.bf16.mxu0 %v682
  %1121 = vmatpush1.bf16.msra.mxu0 %v681
  %1122 = vmatprep.subr.bf16.mxu0 %v672
  %1123 = vmatpush1.bf16.msra.mxu0 %v671
  %1124 = vmatprep.subr.bf16.mxu0 %v822
  %1125 = vmatpush2.bf16.msra.mxu0 %v821
  %1126 = vmatprep.subr.bf16.mxu0 %v812
  %1127 = vmatpush2.bf16.msra.mxu0 %v811
  %1128 = vmatprep.subr.bf16.mxu0 %v802
  %1129 = vmatpush2.bf16.msra.mxu0 %v801
  %1130 = vmatprep.subr.bf16.mxu0 %v792
  %1131 = vmatpush2.bf16.msra.mxu0 %v791
  %1132 = vmatprep.subr.bf16.mxu0 %v782
  %1133 = vmatpush2.bf16.msra.mxu0 %v781
  %1134 = vmatprep.subr.bf16.mxu0 %v772
  %1135 = vmatpush2.bf16.msra.mxu0 %v771
  %1136 = vmatprep.subr.bf16.mxu0 %v762
  %1137 = vmatpush2.bf16.msra.mxu0 %v761
  %1138 = vmatprep.subr.bf16.mxu0 %v752
  %1139 = vmatpush2.bf16.msra.mxu0 %v751
  %1140 = vmatprep.mubr.bf16.mxu0 %v182
  %1141 = vmatmul.mubr.bf16.gmra.mxu0 %v181
  %v1142 = vpop.f32.mrf.mxu0
  %v1143 = vadd.f32 0.0, %v1142
  %v1144 = vpop.f32.mrf.mxu0
  %v1145 = vadd.f32 0.0, %v1144
  %v1146 = vpop.f32.mrf.mxu0
  %v1147 = vpop.f32.mrf.mxu0
  %1148 = vdwg.mxu0
  %1149 = vmatprep.subr.bf16.mxu0 %v744
  %1150 = vmatpush1.bf16.msra.mxu0 %v743
  %1151 = vmatprep.subr.bf16.mxu0 %v734
  %1152 = vmatpush1.bf16.msra.mxu0 %v733
  %1153 = vmatprep.subr.bf16.mxu0 %v724
  %1154 = vmatpush1.bf16.msra.mxu0 %v723
  %1155 = vmatprep.subr.bf16.mxu0 %v714
  %1156 = vmatpush1.bf16.msra.mxu0 %v713
  %1157 = vmatprep.subr.bf16.mxu0 %v704
  %1158 = vmatpush1.bf16.msra.mxu0 %v703
  %1159 = vmatprep.subr.bf16.mxu0 %v694
  %1160 = vmatpush1.bf16.msra.mxu0 %v693
  %1161 = vmatprep.subr.bf16.mxu0 %v684
  %1162 = vmatpush1.bf16.msra.mxu0 %v683
  %1163 = vmatprep.subr.bf16.mxu0 %v674
  %1164 = vmatpush1.bf16.msra.mxu0 %v673
  %1165 = vmatprep.subr.bf16.mxu0 %v824
  %1166 = vmatpush2.bf16.msra.mxu0 %v823
  %1167 = vmatprep.subr.bf16.mxu0 %v814
  %1168 = vmatpush2.bf16.msra.mxu0 %v813
  %1169 = vmatprep.subr.bf16.mxu0 %v804
  %1170 = vmatpush2.bf16.msra.mxu0 %v803
  %1171 = vmatprep.subr.bf16.mxu0 %v794
  %1172 = vmatpush2.bf16.msra.mxu0 %v793
  %1173 = vmatprep.subr.bf16.mxu0 %v784
  %1174 = vmatpush2.bf16.msra.mxu0 %v783
  %1175 = vmatprep.subr.bf16.mxu0 %v774
  %1176 = vmatpush2.bf16.msra.mxu0 %v773
  %1177 = vmatprep.subr.bf16.mxu0 %v764
  %1178 = vmatpush2.bf16.msra.mxu0 %v763
  %1179 = vmatprep.subr.bf16.mxu0 %v754
  %1180 = vmatpush2.bf16.msra.mxu0 %v753
  %1181 = vmatprep.mubr.bf16.mxu0 %v182
  %1182 = vmatmul.mubr.bf16.gmra.mxu0 %v181
  %v1183 = vpop.f32.mrf.mxu0
  %v1184 = vadd.f32 0.0, %v1183
  %v1185 = vpop.f32.mrf.mxu0
  %v1186 = vadd.f32 0.0, %v1185
  %v1187 = vpop.f32.mrf.mxu0
  %v1188 = vpop.f32.mrf.mxu0
  %1189 = vdwg.mxu0
  %v1190 = vadd.f32 %v1020, %v1022
  %v1191 = vadd.f32 %v1190, %v1061
  %v1192 = vadd.f32 %v1191, %v1063
  %v1193 = vadd.f32 %v1192, %v1102
  %v1194 = vadd.f32 %v1193, %v1104
  %v1195 = vadd.f32 %v1194, %v1143
  %v1196 = vadd.f32 %v1195, %v1145
  %v1197 = vadd.f32 %v1196, %v1184
  %v1198 = vadd.f32 %v1197, %v1186
  %1199 = vadd.xlane.f32.xlu0 %v1198
  %v1200 = vpop.xlane.xlu0 %1199
  %v1201 = vmul.f32 %v1020, %v1020
  %v1202 = vmul.f32 %v1022, %v1022
  %v1203 = vmul.f32 %v1061, %v1061
  %v1204 = vmul.f32 %v1063, %v1063
  %v1205 = vmul.f32 %v1102, %v1102
  %v1206 = vmul.f32 %v1104, %v1104
  %v1207 = vmul.f32 %v1143, %v1143
  %v1208 = vmul.f32 %v1145, %v1145
  %v1209 = vmul.f32 %v1184, %v1184
  %v1210 = vmul.f32 %v1186, %v1186
  %v1211 = vadd.f32 %v1201, %v1202
  %v1212 = vadd.f32 %v1211, %v1203
  %v1213 = vadd.f32 %v1212, %v1204
  %v1214 = vadd.f32 %v1213, %v1205
  %v1215 = vadd.f32 %v1214, %v1206
  %v1216 = vadd.f32 %v1215, %v1207
  %v1217 = vadd.f32 %v1216, %v1208
  %v1218 = vadd.f32 %v1217, %v1209
  %v1219 = vadd.f32 %v1218, %v1210
  %1220 = vadd.xlane.f32.xlu0 %v1219
  %v1221 = vpop.xlane.xlu0 %1220
  %v1222 = vmul.f32 %v1200, 0.00078125
  %v1223 = vmul.f32 %v1221, 0.00078125
  %v1224 = vmul.f32 %v1222, %v1222
  %v1225 = vsub.f32 %v1223, %v1224
  %v1226 = vmax.f32 %v1225, 0.0
  %v1227 = vld [vmem:[%s2] sm:$0xff]
  %v1228 = vadd.f32 %v1226, 1e-05
  %v1229 = vrsqrt.pop %v1228
  %v1230 = vmul.f32 %v1227, %v1229
  %v1231 = vld [vmem:[%s3] sm:$0xff]
  %v1232 = vmul.f32 %v1222, %v1230
  %v1233 = vsub.f32 %v1231, %v1232
  %1235 = vset.pattern.permute.xlu0 0
  %1236 = vperm.xlu0 %1235, %v1230
  %v1237 = vpop.permute.xlu0 %1236
  %v1239 = vmul.f32 %v1020, %v1237
  %v1240 = vmul.f32 %v1022, %v1237
  %v1241 = vmul.f32 %v1061, %v1237
  %v1242 = vmul.f32 %v1063, %v1237
  %v1243 = vmul.f32 %v1102, %v1237
  %v1244 = vmul.f32 %v1104, %v1237
  %v1245 = vmul.f32 %v1143, %v1237
  %v1246 = vmul.f32 %v1145, %v1237
  %v1247 = vmul.f32 %v1184, %v1237
  %v1248 = vmul.f32 %v1186, %v1237
  %1250 = vset.pattern.permute.xlu0 0
  %1251 = vperm.xlu0 %1250, %v1233
  %v1252 = vpop.permute.xlu0 %1251
  %v1254 = vadd.f32 %v1239, %v1252
  %v1255 = vadd.f32 %v1240, %v1252
  %v1256 = vadd.f32 %v1241, %v1252
  %v1257 = vadd.f32 %v1242, %v1252
  %v1258 = vadd.f32 %v1243, %v1252
  %v1259 = vadd.f32 %v1244, %v1252
  %v1260 = vadd.f32 %v1245, %v1252
  %v1261 = vadd.f32 %v1246, %v1252
  %v1262 = vadd.f32 %v1247, %v1252
  %v1263 = vadd.f32 %v1248, %v1252
  %v1264 = vmax.f32 %v1254, 0.0
  %v1265 = vmax.f32 %v1255, 0.0
  %v1266 = vmax.f32 %v1256, 0.0
  %v1267 = vmax.f32 %v1257, 0.0
  %v1268 = vmax.f32 %v1258, 0.0
  %v1269 = vmax.f32 %v1259, 0.0
  %v1270 = vmax.f32 %v1260, 0.0
  %v1271 = vmax.f32 %v1261, 0.0
  %v1272 = vmax.f32 %v1262, 0.0
  %v1273 = vmax.f32 %v1263, 0.0
  %1274 = vst [vmem:[%s4] sm:$0xff] %v1264
  %1275 = vst [vmem:[%s4 + $0x8] sm:$0xff] %v1265
  %1276 = vst [vmem:[%s4 + $0x10] sm:$0xff] %v1266
  %1277 = vst [vmem:[%s4 + $0x18] sm:$0xff] %v1267
  %1278 = vst [vmem:[%s4 + $0x20] sm:$0xff] %v1268
  %1279 = vst [vmem:[%s4 + $0x28] sm:$0xff] %v1269
  %1280 = vst [vmem:[%s4 + $0x30] sm:$0xff] %v1270
  %1281 = vst [vmem:[%s4 + $0x38] sm:$0xff] %v1271
  %1282 = vst [vmem:[%s4 + $0x40] sm:$0xff] %v1272
  %1283 = vst [vmem:[%s4 + $0x48] sm:$0xff] %v1273
  // Predicated region
  $region18: #{generator2_forward.10} parent=0 // pred_check
    _
  $region19: #{generator2_forward.10} parent=0 // pred_check_branch
    %1285 = sbr.rel (0) target = $region21
  $region20: #{generator2_forward.10} parent=0 // pred_region
    _
  $region21: #{generator2_forward.10} parent=0 // pred_fallthru
    _
  // Predicated region
  $region22: #{generator2_forward.10} parent=0 // pred_check
    _
  $region23: #{generator2_forward.10} parent=0 // pred_check_branch
    %1287 = sbr.rel (0) target = $region25
  $region24: #{generator2_forward.10} parent=0 // pred_region
    _
  $region25: #{generator2_forward.10} parent=0 // pred_fallthru
    _

// kernel: generator2_forward.11
$region0: #{generator2_forward.11}
  #allocation0 [shape = 'u32[]', space=smem, size = 0x4, offset = 0x4, fixed_abs, tag = 'smem constant byte address 0x4 - core index']
  #allocation1 [shape = 'u32[144,128]{1,0:T(1,128)}', space=vmem, size = 0x12000, scoped, tag = 'internal scratch']
  %s0 = inlined_call_operand.vmem [shape: bf16[8,256], index: 0, kind: input, shape index: {}]
  %s1 = inlined_call_operand.vmem [shape: bf16[256,1536], index: 1, kind: input, shape index: {}]
  %s2 = inlined_call_operand.vmem [shape: f32[8,1536], index: 2, kind: output, shape index: {}]
  %s3 = sld [smem:[#allocation0]]
  $region18: #{generator2_forward.11} parent=0
    _
  %s5 = ssub.s32 1, %s3
  %s6 = scalar_select 0, %s5, %s3
  // Predicated region
  $region2: #{generator2_forward.11} parent=0 // pred_check
    _
  $region3: #{generator2_forward.11} parent=0 // pred_check_branch
    %8 = sbr.rel (0) target = $region5
  $region4: #{generator2_forward.11} parent=0 // pred_region
    _
  $region5: #{generator2_forward.11} parent=0 // pred_fallthru
    _
  // Predicated region
  $region6: #{generator2_forward.11} parent=0 // pred_check
    _
  $region7: #{generator2_forward.11} parent=0 // pred_check_branch
    %10 = sbr.rel (0) target = $region9
  $region8: #{generator2_forward.11} parent=0 // pred_region
    _
  $region9: #{generator2_forward.11} parent=0 // pred_fallthru
    _
  %v11 = vld [vmem:[%s0] sm:$0xff]
  %v12 = vld [vmem:[%s1] sm:$0xff]
  %v13 = vld [vmem:[%s1 + $0x8] sm:$0xff]
  %v14 = vld [vmem:[%s1 + $0x10] sm:$0xff]
  %v15 = vld [vmem:[%s1 + $0x18] sm:$0xff]
  %v16 = vld [vmem:[%s1 + $0x20] sm:$0xff]
  %v17 = vld [vmem:[%s1 + $0x28] sm:$0xff]
  %v18 = vld [vmem:[%s1 + $0x30] sm:$0xff]
  %v19 = vld [vmem:[%s1 + $0x38] sm:$0xff]
  %v20 = vld [vmem:[%s1 + $0x40] sm:$0xff]
  %v21 = vld [vmem:[%s1 + $0x48] sm:$0xff]
  %v22 = vld [vmem:[%s1 + $0x50] sm:$0xff]
  %v23 = vld [vmem:[%s1 + $0x58] sm:$0xff]
  %v24 = vld [vmem:[%s1 + $0x60] sm:$0xff]
  %v25 = vld [vmem:[%s1 + $0x68] sm:$0xff]
  %v26 = vld [vmem:[%s1 + $0x70] sm:$0xff]
  %v27 = vld [vmem:[%s1 + $0x78] sm:$0xff]
  %v28 = vld [vmem:[%s1 + $0x80] sm:$0xff]
  %v29 = vld [vmem:[%s1 + $0x88] sm:$0xff]
  %v30 = vld [vmem:[%s1 + $0x90] sm:$0xff]
  %v31 = vld [vmem:[%s1 + $0x98] sm:$0xff]
  %v32 = vld [vmem:[%s1 + $0xa0] sm:$0xff]
  %v33 = vld [vmem:[%s1 + $0xa8] sm:$0xff]
  %v34 = vld [vmem:[%s1 + $0xb0] sm:$0xff]
  %v35 = vld [vmem:[%s1 + $0xb8] sm:$0xff]
  %v36 = vld [vmem:[%s1 + $0xc0] sm:$0xff]
  %v37 = vld [vmem:[%s1 + $0xc8] sm:$0xff]
  %v38 = vld [vmem:[%s1 + $0xd0] sm:$0xff]
  %v39 = vld [vmem:[%s1 + $0xd8] sm:$0xff]
  %v40 = vld [vmem:[%s1 + $0xe0] sm:$0xff]
  %v41 = vld [vmem:[%s1 + $0xe8] sm:$0xff]
  %v42 = vld [vmem:[%s1 + $0xf0] sm:$0xff]
  %v43 = vld [vmem:[%s1 + $0xf8] sm:$0xff]
  %v44 = vld [vmem:[%s1 + $0x100] sm:$0xff]
  %v45 = vld [vmem:[%s1 + $0x108] sm:$0xff]
  %v46 = vld [vmem:[%s1 + $0x110] sm:$0xff]
  %v47 = vld [vmem:[%s1 + $0x118] sm:$0xff]
  %v48 = vld [vmem:[%s1 + $0x120] sm:$0xff]
  %v49 = vld [vmem:[%s1 + $0x128] sm:$0xff]
  %v50 = vld [vmem:[%s1 + $0x130] sm:$0xff]
  %v51 = vld [vmem:[%s1 + $0x138] sm:$0xff]
  %v52 = vld [vmem:[%s1 + $0x140] sm:$0xff]
  %v53 = vld [vmem:[%s1 + $0x148] sm:$0xff]
  %v54 = vld [vmem:[%s1 + $0x150] sm:$0xff]
  %v55 = vld [vmem:[%s1 + $0x158] sm:$0xff]
  %v56 = vld [vmem:[%s1 + $0x160] sm:$0xff]
  %v57 = vld [vmem:[%s1 + $0x168] sm:$0xff]
  %v58 = vld [vmem:[%s1 + $0x170] sm:$0xff]
  %v59 = vld [vmem:[%s1 + $0x178] sm:$0xff]
  %v60 = vld [vmem:[%s1 + $0x180] sm:$0xff]
  %v61 = vld [vmem:[%s1 + $0x188] sm:$0xff]
  %v62 = vld [vmem:[%s1 + $0x190] sm:$0xff]
  %v63 = vld [vmem:[%s1 + $0x198] sm:$0xff]
  %v64 = vld [vmem:[%s1 + $0x1a0] sm:$0xff]
  %v65 = vld [vmem:[%s1 + $0x1a8] sm:$0xff]
  %v66 = vld [vmem:[%s1 + $0x1b0] sm:$0xff]
  %v67 = vld [vmem:[%s1 + $0x1b8] sm:$0xff]
  %v68 = vld [vmem:[%s1 + $0x1c0] sm:$0xff]
  %v69 = vld [vmem:[%s1 + $0x1c8] sm:$0xff]
  %v70 = vld [vmem:[%s1 + $0x1d0] sm:$0xff]
  %v71 = vld [vmem:[%s1 + $0x1d8] sm:$0xff]
  %v72 = vld [vmem:[%s1 + $0x1e0] sm:$0xff]
  %v73 = vld [vmem:[%s1 + $0x1e8] sm:$0xff]
  %v74 = vld [vmem:[%s1 + $0x1f0] sm:$0xff]
  %v75 = vld [vmem:[%s1 + $0x1f8] sm:$0xff]
  %v76 = vld [vmem:[%s1 + $0x200] sm:$0xff]
  %v77 = vld [vmem:[%s1 + $0x208] sm:$0xff]
  %v78 = vld [vmem:[%s1 + $0x210] sm:$0xff]
  %v79 = vld [vmem:[%s1 + $0x218] sm:$0xff]
  %v80 = vld [vmem:[%s1 + $0x220] sm:$0xff]
  %v81 = vld [vmem:[%s1 + $0x228] sm:$0xff]
  %v82 = vld [vmem:[%s1 + $0x230] sm:$0xff]
  %v83 = vld [vmem:[%s1 + $0x238] sm:$0xff]
  %v84 = vld [vmem:[%s1 + $0x240] sm:$0xff]
  %v85 = vld [vmem:[%s1 + $0x248] sm:$0xff]
  %v86 = vld [vmem:[%s1 + $0x250] sm:$0xff]
  %v87 = vld [vmem:[%s1 + $0x258] sm:$0xff]
  %v88 = vld [vmem:[%s1 + $0x260] sm:$0xff]
  %v89 = vld [vmem:[%s1 + $0x268] sm:$0xff]
  %v90 = vld [vmem:[%s1 + $0x270] sm:$0xff]
  %v91 = vld [vmem:[%s1 + $0x278] sm:$0xff]
  %v92 = vld [vmem:[%s1 + $0x280] sm:$0xff]
  %v93 = vld [vmem:[%s1 + $0x288] sm:$0xff]
  %v94 = vld [vmem:[%s1 + $0x290] sm:$0xff]
  %v95 = vld [vmem:[%s1 + $0x298] sm:$0xff]
  %v96 = vld [vmem:[%s1 + $0x2a0] sm:$0xff]
  %v97 = vld [vmem:[%s1 + $0x2a8] sm:$0xff]
  %v98 = vld [vmem:[%s1 + $0x2b0] sm:$0xff]
  %v99 = vld [vmem:[%s1 + $0x2b8] sm:$0xff]
  %v100 = vld [vmem:[%s1 + $0x2c0] sm:$0xff]
  %v101 = vld [vmem:[%s1 + $0x2c8] sm:$0xff]
  %v102 = vld [vmem:[%s1 + $0x2d0] sm:$0xff]
  %v103 = vld [vmem:[%s1 + $0x2d8] sm:$0xff]
  %v104 = vld [vmem:[%s1 + $0x2e0] sm:$0xff]
  %v105 = vld [vmem:[%s1 + $0x2e8] sm:$0xff]
  %v106 = vld [vmem:[%s1 + $0x2f0] sm:$0xff]
  %v107 = vld [vmem:[%s1 + $0x2f8] sm:$0xff]
  %v108 = vld [vmem:[%s1 + $0x300] sm:$0xff]
  %v109 = vld [vmem:[%s1 + $0x308] sm:$0xff]
  %v110 = vld [vmem:[%s1 + $0x310] sm:$0xff]
  %v111 = vld [vmem:[%s1 + $0x318] sm:$0xff]
  %v112 = vld [vmem:[%s1 + $0x320] sm:$0xff]
  %v113 = vld [vmem:[%s1 + $0x328] sm:$0xff]
  %v114 = vld [vmem:[%s1 + $0x330] sm:$0xff]
  %v115 = vld [vmem:[%s1 + $0x338] sm:$0xff]
  %v116 = vld [vmem:[%s1 + $0x340] sm:$0xff]
  %v117 = vld [vmem:[%s1 + $0x348] sm:$0xff]
  %v118 = vld [vmem:[%s1 + $0x350] sm:$0xff]
  %v119 = vld [vmem:[%s1 + $0x358] sm:$0xff]
  %v120 = vld [vmem:[%s1 + $0x360] sm:$0xff]
  %v121 = vld [vmem:[%s1 + $0x368] sm:$0xff]
  %v122 = vld [vmem:[%s1 + $0x370] sm:$0xff]
  %v123 = vld [vmem:[%s1 + $0x378] sm:$0xff]
  %v124 = vld [vmem:[%s1 + $0x380] sm:$0xff]
  %v125 = vld [vmem:[%s1 + $0x388] sm:$0xff]
  %v126 = vld [vmem:[%s1 + $0x390] sm:$0xff]
  %v127 = vld [vmem:[%s1 + $0x398] sm:$0xff]
  %v128 = vld [vmem:[%s1 + $0x3a0] sm:$0xff]
  %v129 = vld [vmem:[%s1 + $0x3a8] sm:$0xff]
  %v130 = vld [vmem:[%s1 + $0x3b0] sm:$0xff]
  %v131 = vld [vmem:[%s1 + $0x3b8] sm:$0xff]
  %v132 = vld [vmem:[%s1 + $0x3c0] sm:$0xff]
  %v133 = vld [vmem:[%s1 + $0x3c8] sm:$0xff]
  %v134 = vld [vmem:[%s1 + $0x3d0] sm:$0xff]
  %v135 = vld [vmem:[%s1 + $0x3d8] sm:$0xff]
  %v136 = vld [vmem:[%s1 + $0x3e0] sm:$0xff]
  %v137 = vld [vmem:[%s1 + $0x3e8] sm:$0xff]
  %v138 = vld [vmem:[%s1 + $0x3f0] sm:$0xff]
  %v139 = vld [vmem:[%s1 + $0x3f8] sm:$0xff]
  %v140 = vld [vmem:[%s1 + $0x400] sm:$0xff]
  %v141 = vld [vmem:[%s1 + $0x408] sm:$0xff]
  %v142 = vld [vmem:[%s1 + $0x410] sm:$0xff]
  %v143 = vld [vmem:[%s1 + $0x418] sm:$0xff]
  %v144 = vld [vmem:[%s1 + $0x420] sm:$0xff]
  %v145 = vld [vmem:[%s1 + $0x428] sm:$0xff]
  %v146 = vld [vmem:[%s1 + $0x430] sm:$0xff]
  %v147 = vld [vmem:[%s1 + $0x438] sm:$0xff]
  %v148 = vld [vmem:[%s1 + $0x440] sm:$0xff]
  %v149 = vld [vmem:[%s1 + $0x448] sm:$0xff]
  %v150 = vld [vmem:[%s1 + $0x450] sm:$0xff]
  %v151 = vld [vmem:[%s1 + $0x458] sm:$0xff]
  %v152 = vld [vmem:[%s1 + $0x460] sm:$0xff]
  %v153 = vld [vmem:[%s1 + $0x468] sm:$0xff]
  %v154 = vld [vmem:[%s1 + $0x470] sm:$0xff]
  %v155 = vld [vmem:[%s1 + $0x478] sm:$0xff]
  %v156 = vld [vmem:[%s1 + $0x480] sm:$0xff]
  %v157 = vld [vmem:[%s1 + $0x488] sm:$0xff]
  %v158 = vld [vmem:[%s1 + $0x490] sm:$0xff]
  %v159 = vld [vmem:[%s1 + $0x498] sm:$0xff]
  %v160 = vld [vmem:[%s1 + $0x4a0] sm:$0xff]
  %v161 = vld [vmem:[%s1 + $0x4a8] sm:$0xff]
  %v162 = vld [vmem:[%s1 + $0x4b0] sm:$0xff]
  %v163 = vld [vmem:[%s1 + $0x4b8] sm:$0xff]
  %v164 = vld [vmem:[%s1 + $0x4c0] sm:$0xff]
  %v165 = vld [vmem:[%s1 + $0x4c8] sm:$0xff]
  %v166 = vld [vmem:[%s1 + $0x4d0] sm:$0xff]
  %v167 = vld [vmem:[%s1 + $0x4d8] sm:$0xff]
  %v168 = vld [vmem:[%s1 + $0x4e0] sm:$0xff]
  %v169 = vld [vmem:[%s1 + $0x4e8] sm:$0xff]
  %v170 = vld [vmem:[%s1 + $0x4f0] sm:$0xff]
  %v171 = vld [vmem:[%s1 + $0x4f8] sm:$0xff]
  %v172 = vld [vmem:[%s1 + $0x500] sm:$0xff]
  %v173 = vld [vmem:[%s1 + $0x508] sm:$0xff]
  %v174 = vld [vmem:[%s1 + $0x510] sm:$0xff]
  %v175 = vld [vmem:[%s1 + $0x518] sm:$0xff]
  %v176 = vld [vmem:[%s1 + $0x520] sm:$0xff]
  %v177 = vld [vmem:[%s1 + $0x528] sm:$0xff]
  %v178 = vld [vmem:[%s1 + $0x530] sm:$0xff]
  %v179 = vld [vmem:[%s1 + $0x538] sm:$0xff]
  %v180 = vld [vmem:[%s1 + $0x540] sm:$0xff]
  %v181 = vld [vmem:[%s1 + $0x548] sm:$0xff]
  %v182 = vld [vmem:[%s1 + $0x550] sm:$0xff]
  %v183 = vld [vmem:[%s1 + $0x558] sm:$0xff]
  %v184 = vld [vmem:[%s1 + $0x560] sm:$0xff]
  %v185 = vld [vmem:[%s1 + $0x568] sm:$0xff]
  %v186 = vld [vmem:[%s1 + $0x570] sm:$0xff]
  %v187 = vld [vmem:[%s1 + $0x578] sm:$0xff]
  %v188 = vld [vmem:[%s1 + $0x580] sm:$0xff]
  %v189 = vld [vmem:[%s1 + $0x588] sm:$0xff]
  %v190 = vld [vmem:[%s1 + $0x590] sm:$0xff]
  %v191 = vld [vmem:[%s1 + $0x598] sm:$0xff]
  %v192 = vld [vmem:[%s1 + $0x5a0] sm:$0xff]
  %v193 = vld [vmem:[%s1 + $0x5a8] sm:$0xff]
  %v194 = vld [vmem:[%s1 + $0x5b0] sm:$0xff]
  %v195 = vld [vmem:[%s1 + $0x5b8] sm:$0xff]
  %v196 = vld [vmem:[%s1 + $0x5c0] sm:$0xff]
  %v197 = vld [vmem:[%s1 + $0x5c8] sm:$0xff]
  %v198 = vld [vmem:[%s1 + $0x5d0] sm:$0xff]
  %v199 = vld [vmem:[%s1 + $0x5d8] sm:$0xff]
  %v200 = vld [vmem:[%s1 + $0x5e0] sm:$0xff]
  %v201 = vld [vmem:[%s1 + $0x5e8] sm:$0xff]
  %v202 = vld [vmem:[%s1 + $0x5f0] sm:$0xff]
  %v203 = vld [vmem:[%s1 + $0x5f8] sm:$0xff]
  %v205 = vunpack.c.l.b16 %v11
  %v206 = vunpack.c.h.b16 %v11
  %v207 = vpack.c.b16 %v205, %v205
  %v208 = vpack.c.b16 %v206, %v206
  %v403 = vunpack.c.l.b16 %v12
  %v404 = vunpack.c.h.b16 %v12
  %v405 = vunpack.c.l.b16 %v13
  %v406 = vunpack.c.h.b16 %v13
  %v407 = vunpack.c.l.b16 %v14
  %v408 = vunpack.c.h.b16 %v14
  %v409 = vunpack.c.l.b16 %v15
  %v410 = vunpack.c.h.b16 %v15
  %v411 = vunpack.c.l.b16 %v16
  %v412 = vunpack.c.h.b16 %v16
  %v413 = vunpack.c.l.b16 %v17
  %v414 = vunpack.c.h.b16 %v17
  %v415 = vunpack.c.l.b16 %v18
  %v416 = vunpack.c.h.b16 %v18
  %v417 = vunpack.c.l.b16 %v19
  %v418 = vunpack.c.h.b16 %v19
  %v419 = vunpack.c.l.b16 %v20
  %v420 = vunpack.c.h.b16 %v20
  %v421 = vunpack.c.l.b16 %v21
  %v422 = vunpack.c.h.b16 %v21
  %v423 = vunpack.c.l.b16 %v22
  %v424 = vunpack.c.h.b16 %v22
  %v425 = vunpack.c.l.b16 %v23
  %v426 = vunpack.c.h.b16 %v23
  %v427 = vunpack.c.l.b16 %v24
  %v428 = vunpack.c.h.b16 %v24
  %v429 = vunpack.c.l.b16 %v25
  %v430 = vunpack.c.h.b16 %v25
  %v431 = vunpack.c.l.b16 %v26
  %v432 = vunpack.c.h.b16 %v26
  %v433 = vunpack.c.l.b16 %v27
  %v434 = vunpack.c.h.b16 %v27
  %v435 = vunpack.c.l.b16 %v28
  %v436 = vunpack.c.h.b16 %v28
  %v437 = vunpack.c.l.b16 %v29
  %v438 = vunpack.c.h.b16 %v29
  %v439 = vunpack.c.l.b16 %v30
  %v440 = vunpack.c.h.b16 %v30
  %v441 = vunpack.c.l.b16 %v31
  %v442 = vunpack.c.h.b16 %v31
  %v443 = vunpack.c.l.b16 %v32
  %v444 = vunpack.c.h.b16 %v32
  %v445 = vunpack.c.l.b16 %v33
  %v446 = vunpack.c.h.b16 %v33
  %v447 = vunpack.c.l.b16 %v34
  %v448 = vunpack.c.h.b16 %v34
  %v449 = vunpack.c.l.b16 %v35
  %v450 = vunpack.c.h.b16 %v35
  %v451 = vunpack.c.l.b16 %v36
  %v452 = vunpack.c.h.b16 %v36
  %v453 = vunpack.c.l.b16 %v37
  %v454 = vunpack.c.h.b16 %v37
  %v455 = vunpack.c.l.b16 %v38
  %v456 = vunpack.c.h.b16 %v38
  %v457 = vunpack.c.l.b16 %v39
  %v458 = vunpack.c.h.b16 %v39
  %v459 = vunpack.c.l.b16 %v40
  %v460 = vunpack.c.h.b16 %v40
  %v461 = vunpack.c.l.b16 %v41
  %v462 = vunpack.c.h.b16 %v41
  %v463 = vunpack.c.l.b16 %v42
  %v464 = vunpack.c.h.b16 %v42
  %v465 = vunpack.c.l.b16 %v43
  %v466 = vunpack.c.h.b16 %v43
  %v467 = vunpack.c.l.b16 %v44
  %v468 = vunpack.c.h.b16 %v44
  %v469 = vunpack.c.l.b16 %v45
  %v470 = vunpack.c.h.b16 %v45
  %v471 = vunpack.c.l.b16 %v46
  %v472 = vunpack.c.h.b16 %v46
  %v473 = vunpack.c.l.b16 %v47
  %v474 = vunpack.c.h.b16 %v47
  %v475 = vunpack.c.l.b16 %v48
  %v476 = vunpack.c.h.b16 %v48
  %v477 = vunpack.c.l.b16 %v49
  %v478 = vunpack.c.h.b16 %v49
  %v479 = vunpack.c.l.b16 %v50
  %v480 = vunpack.c.h.b16 %v50
  %v481 = vunpack.c.l.b16 %v51
  %v482 = vunpack.c.h.b16 %v51
  %v483 = vunpack.c.l.b16 %v52
  %v484 = vunpack.c.h.b16 %v52
  %v485 = vunpack.c.l.b16 %v53
  %v486 = vunpack.c.h.b16 %v53
  %v487 = vunpack.c.l.b16 %v54
  %v488 = vunpack.c.h.b16 %v54
  %v489 = vunpack.c.l.b16 %v55
  %v490 = vunpack.c.h.b16 %v55
  %v491 = vunpack.c.l.b16 %v56
  %v492 = vunpack.c.h.b16 %v56
  %v493 = vunpack.c.l.b16 %v57
  %v494 = vunpack.c.h.b16 %v57
  %v495 = vunpack.c.l.b16 %v58
  %v496 = vunpack.c.h.b16 %v58
  %v497 = vunpack.c.l.b16 %v59
  %v498 = vunpack.c.h.b16 %v59
  %v499 = vunpack.c.l.b16 %v60
  %v500 = vunpack.c.h.b16 %v60
  %v501 = vunpack.c.l.b16 %v61
  %v502 = vunpack.c.h.b16 %v61
  %v503 = vunpack.c.l.b16 %v62
  %v504 = vunpack.c.h.b16 %v62
  %v505 = vunpack.c.l.b16 %v63
  %v506 = vunpack.c.h.b16 %v63
  %v507 = vunpack.c.l.b16 %v64
  %v508 = vunpack.c.h.b16 %v64
  %v509 = vunpack.c.l.b16 %v65
  %v510 = vunpack.c.h.b16 %v65
  %v511 = vunpack.c.l.b16 %v66
  %v512 = vunpack.c.h.b16 %v66
  %v513 = vunpack.c.l.b16 %v67
  %v514 = vunpack.c.h.b16 %v67
  %v515 = vunpack.c.l.b16 %v68
  %v516 = vunpack.c.h.b16 %v68
  %v517 = vunpack.c.l.b16 %v69
  %v518 = vunpack.c.h.b16 %v69
  %v519 = vunpack.c.l.b16 %v70
  %v520 = vunpack.c.h.b16 %v70
  %v521 = vunpack.c.l.b16 %v71
  %v522 = vunpack.c.h.b16 %v71
  %v523 = vunpack.c.l.b16 %v72
  %v524 = vunpack.c.h.b16 %v72
  %v525 = vunpack.c.l.b16 %v73
  %v526 = vunpack.c.h.b16 %v73
  %v527 = vunpack.c.l.b16 %v74
  %v528 = vunpack.c.h.b16 %v74
  %v529 = vunpack.c.l.b16 %v75
  %v530 = vunpack.c.h.b16 %v75
  %v531 = vunpack.c.l.b16 %v76
  %v532 = vunpack.c.h.b16 %v76
  %v533 = vunpack.c.l.b16 %v77
  %v534 = vunpack.c.h.b16 %v77
  %v535 = vunpack.c.l.b16 %v78
  %v536 = vunpack.c.h.b16 %v78
  %v537 = vunpack.c.l.b16 %v79
  %v538 = vunpack.c.h.b16 %v79
  %v539 = vunpack.c.l.b16 %v80
  %v540 = vunpack.c.h.b16 %v80
  %v541 = vunpack.c.l.b16 %v81
  %v542 = vunpack.c.h.b16 %v81
  %v543 = vunpack.c.l.b16 %v82
  %v544 = vunpack.c.h.b16 %v82
  %v545 = vunpack.c.l.b16 %v83
  %v546 = vunpack.c.h.b16 %v83
  %v547 = vunpack.c.l.b16 %v84
  %v548 = vunpack.c.h.b16 %v84
  %v549 = vunpack.c.l.b16 %v85
  %v550 = vunpack.c.h.b16 %v85
  %v551 = vunpack.c.l.b16 %v86
  %v552 = vunpack.c.h.b16 %v86
  %v553 = vunpack.c.l.b16 %v87
  %v554 = vunpack.c.h.b16 %v87
  %v555 = vunpack.c.l.b16 %v88
  %v556 = vunpack.c.h.b16 %v88
  %v557 = vunpack.c.l.b16 %v89
  %v558 = vunpack.c.h.b16 %v89
  %v559 = vunpack.c.l.b16 %v90
  %v560 = vunpack.c.h.b16 %v90
  %v561 = vunpack.c.l.b16 %v91
  %v562 = vunpack.c.h.b16 %v91
  %v563 = vunpack.c.l.b16 %v92
  %v564 = vunpack.c.h.b16 %v92
  %v565 = vunpack.c.l.b16 %v93
  %v566 = vunpack.c.h.b16 %v93
  %v567 = vunpack.c.l.b16 %v94
  %v568 = vunpack.c.h.b16 %v94
  %v569 = vunpack.c.l.b16 %v95
  %v570 = vunpack.c.h.b16 %v95
  %v571 = vunpack.c.l.b16 %v96
  %v572 = vunpack.c.h.b16 %v96
  %v573 = vunpack.c.l.b16 %v97
  %v574 = vunpack.c.h.b16 %v97
  %v575 = vunpack.c.l.b16 %v98
  %v576 = vunpack.c.h.b16 %v98
  %v577 = vunpack.c.l.b16 %v99
  %v578 = vunpack.c.h.b16 %v99
  %v579 = vunpack.c.l.b16 %v100
  %v580 = vunpack.c.h.b16 %v100
  %v581 = vunpack.c.l.b16 %v101
  %v582 = vunpack.c.h.b16 %v101
  %v583 = vunpack.c.l.b16 %v102
  %v584 = vunpack.c.h.b16 %v102
  %v585 = vunpack.c.l.b16 %v103
  %v586 = vunpack.c.h.b16 %v103
  %v587 = vunpack.c.l.b16 %v104
  %v588 = vunpack.c.h.b16 %v104
  %v589 = vunpack.c.l.b16 %v105
  %v590 = vunpack.c.h.b16 %v105
  %v591 = vunpack.c.l.b16 %v106
  %v592 = vunpack.c.h.b16 %v106
  %v593 = vunpack.c.l.b16 %v107
  %v594 = vunpack.c.h.b16 %v107
  %v595 = vunpack.c.l.b16 %v108
  %v596 = vunpack.c.h.b16 %v108
  %v597 = vunpack.c.l.b16 %v109
  %v598 = vunpack.c.h.b16 %v109
  %v599 = vunpack.c.l.b16 %v110
  %v600 = vunpack.c.h.b16 %v110
  %v601 = vunpack.c.l.b16 %v111
  %v602 = vunpack.c.h.b16 %v111
  %v603 = vunpack.c.l.b16 %v112
  %v604 = vunpack.c.h.b16 %v112
  %v605 = vunpack.c.l.b16 %v113
  %v606 = vunpack.c.h.b16 %v113
  %v607 = vunpack.c.l.b16 %v114
  %v608 = vunpack.c.h.b16 %v114
  %v609 = vunpack.c.l.b16 %v115
  %v610 = vunpack.c.h.b16 %v115
  %v611 = vunpack.c.l.b16 %v116
  %v612 = vunpack.c.h.b16 %v116
  %v613 = vunpack.c.l.b16 %v117
  %v614 = vunpack.c.h.b16 %v117
  %v615 = vunpack.c.l.b16 %v118
  %v616 = vunpack.c.h.b16 %v118
  %v617 = vunpack.c.l.b16 %v119
  %v618 = vunpack.c.h.b16 %v119
  %v619 = vunpack.c.l.b16 %v120
  %v620 = vunpack.c.h.b16 %v120
  %v621 = vunpack.c.l.b16 %v121
  %v622 = vunpack.c.h.b16 %v121
  %v623 = vunpack.c.l.b16 %v122
  %v624 = vunpack.c.h.b16 %v122
  %v625 = vunpack.c.l.b16 %v123
  %v626 = vunpack.c.h.b16 %v123
  %v627 = vunpack.c.l.b16 %v124
  %v628 = vunpack.c.h.b16 %v124
  %v629 = vunpack.c.l.b16 %v125
  %v630 = vunpack.c.h.b16 %v125
  %v631 = vunpack.c.l.b16 %v126
  %v632 = vunpack.c.h.b16 %v126
  %v633 = vunpack.c.l.b16 %v127
  %v634 = vunpack.c.h.b16 %v127
  %v635 = vunpack.c.l.b16 %v128
  %v636 = vunpack.c.h.b16 %v128
  %v637 = vunpack.c.l.b16 %v129
  %v638 = vunpack.c.h.b16 %v129
  %v639 = vunpack.c.l.b16 %v130
  %v640 = vunpack.c.h.b16 %v130
  %v641 = vunpack.c.l.b16 %v131
  %v642 = vunpack.c.h.b16 %v131
  %v643 = vunpack.c.l.b16 %v132
  %v644 = vunpack.c.h.b16 %v132
  %v645 = vunpack.c.l.b16 %v133
  %v646 = vunpack.c.h.b16 %v133
  %v647 = vunpack.c.l.b16 %v134
  %v648 = vunpack.c.h.b16 %v134
  %v649 = vunpack.c.l.b16 %v135
  %v650 = vunpack.c.h.b16 %v135
  %v651 = vunpack.c.l.b16 %v136
  %v652 = vunpack.c.h.b16 %v136
  %v653 = vunpack.c.l.b16 %v137
  %v654 = vunpack.c.h.b16 %v137
  %v655 = vunpack.c.l.b16 %v138
  %v656 = vunpack.c.h.b16 %v138
  %v657 = vunpack.c.l.b16 %v139
  %v658 = vunpack.c.h.b16 %v139
  %v659 = vunpack.c.l.b16 %v140
  %v660 = vunpack.c.h.b16 %v140
  %v661 = vunpack.c.l.b16 %v141
  %v662 = vunpack.c.h.b16 %v141
  %v663 = vunpack.c.l.b16 %v142
  %v664 = vunpack.c.h.b16 %v142
  %v665 = vunpack.c.l.b16 %v143
  %v666 = vunpack.c.h.b16 %v143
  %v667 = vunpack.c.l.b16 %v144
  %v668 = vunpack.c.h.b16 %v144
  %v669 = vunpack.c.l.b16 %v145
  %v670 = vunpack.c.h.b16 %v145
  %v671 = vunpack.c.l.b16 %v146
  %v672 = vunpack.c.h.b16 %v146
  %v673 = vunpack.c.l.b16 %v147
  %v674 = vunpack.c.h.b16 %v147
  %v675 = vunpack.c.l.b16 %v148
  %v676 = vunpack.c.h.b16 %v148
  %v677 = vunpack.c.l.b16 %v149
  %v678 = vunpack.c.h.b16 %v149
  %v679 = vunpack.c.l.b16 %v150
  %v680 = vunpack.c.h.b16 %v150
  %v681 = vunpack.c.l.b16 %v151
  %v682 = vunpack.c.h.b16 %v151
  %v683 = vunpack.c.l.b16 %v152
  %v684 = vunpack.c.h.b16 %v152
  %v685 = vunpack.c.l.b16 %v153
  %v686 = vunpack.c.h.b16 %v153
  %v687 = vunpack.c.l.b16 %v154
  %v688 = vunpack.c.h.b16 %v154
  %v689 = vunpack.c.l.b16 %v155
  %v690 = vunpack.c.h.b16 %v155
  %v691 = vunpack.c.l.b16 %v156
  %v692 = vunpack.c.h.b16 %v156
  %v693 = vunpack.c.l.b16 %v157
  %v694 = vunpack.c.h.b16 %v157
  %v695 = vunpack.c.l.b16 %v158
  %v696 = vunpack.c.h.b16 %v158
  %v697 = vunpack.c.l.b16 %v159
  %v698 = vunpack.c.h.b16 %v159
  %v699 = vunpack.c.l.b16 %v160
  %v700 = vunpack.c.h.b16 %v160
  %v701 = vunpack.c.l.b16 %v161
  %v702 = vunpack.c.h.b16 %v161
  %v703 = vunpack.c.l.b16 %v162
  %v704 = vunpack.c.h.b16 %v162
  %v705 = vunpack.c.l.b16 %v163
  %v706 = vunpack.c.h.b16 %v163
  %v707 = vunpack.c.l.b16 %v164
  %v708 = vunpack.c.h.b16 %v164
  %v709 = vunpack.c.l.b16 %v165
  %v710 = vunpack.c.h.b16 %v165
  %v711 = vunpack.c.l.b16 %v166
  %v712 = vunpack.c.h.b16 %v166
  %v713 = vunpack.c.l.b16 %v167
  %v714 = vunpack.c.h.b16 %v167
  %v715 = vunpack.c.l.b16 %v168
  %v716 = vunpack.c.h.b16 %v168
  %v717 = vunpack.c.l.b16 %v169
  %v718 = vunpack.c.h.b16 %v169
  %v719 = vunpack.c.l.b16 %v170
  %v720 = vunpack.c.h.b16 %v170
  %v721 = vunpack.c.l.b16 %v171
  %v722 = vunpack.c.h.b16 %v171
  %v723 = vunpack.c.l.b16 %v172
  %v724 = vunpack.c.h.b16 %v172
  %v725 = vunpack.c.l.b16 %v173
  %v726 = vunpack.c.h.b16 %v173
  %v727 = vunpack.c.l.b16 %v174
  %v728 = vunpack.c.h.b16 %v174
  %v729 = vunpack.c.l.b16 %v175
  %v730 = vunpack.c.h.b16 %v175
  %v731 = vunpack.c.l.b16 %v176
  %v732 = vunpack.c.h.b16 %v176
  %v733 = vunpack.c.l.b16 %v177
  %v734 = vunpack.c.h.b16 %v177
  %v735 = vunpack.c.l.b16 %v178
  %v736 = vunpack.c.h.b16 %v178
  %v737 = vunpack.c.l.b16 %v179
  %v738 = vunpack.c.h.b16 %v179
  %v739 = vunpack.c.l.b16 %v180
  %v740 = vunpack.c.h.b16 %v180
  %v741 = vunpack.c.l.b16 %v181
  %v742 = vunpack.c.h.b16 %v181
  %v743 = vunpack.c.l.b16 %v182
  %v744 = vunpack.c.h.b16 %v182
  %v745 = vunpack.c.l.b16 %v183
  %v746 = vunpack.c.h.b16 %v183
  %v747 = vunpack.c.l.b16 %v184
  %v748 = vunpack.c.h.b16 %v184
  %v749 = vunpack.c.l.b16 %v185
  %v750 = vunpack.c.h.b16 %v185
  %v751 = vunpack.c.l.b16 %v186
  %v752 = vunpack.c.h.b16 %v186
  %v753 = vunpack.c.l.b16 %v187
  %v754 = vunpack.c.h.b16 %v187
  %v755 = vunpack.c.l.b16 %v188
  %v756 = vunpack.c.h.b16 %v188
  %v757 = vunpack.c.l.b16 %v189
  %v758 = vunpack.c.h.b16 %v189
  %v759 = vunpack.c.l.b16 %v190
  %v760 = vunpack.c.h.b16 %v190
  %v761 = vunpack.c.l.b16 %v191
  %v762 = vunpack.c.h.b16 %v191
  %v763 = vunpack.c.l.b16 %v192
  %v764 = vunpack.c.h.b16 %v192
  %v765 = vunpack.c.l.b16 %v193
  %v766 = vunpack.c.h.b16 %v193
  %v767 = vunpack.c.l.b16 %v194
  %v768 = vunpack.c.h.b16 %v194
  %v769 = vunpack.c.l.b16 %v195
  %v770 = vunpack.c.h.b16 %v195
  %v771 = vunpack.c.l.b16 %v196
  %v772 = vunpack.c.h.b16 %v196
  %v773 = vunpack.c.l.b16 %v197
  %v774 = vunpack.c.h.b16 %v197
  %v775 = vunpack.c.l.b16 %v198
  %v776 = vunpack.c.h.b16 %v198
  %v777 = vunpack.c.l.b16 %v199
  %v778 = vunpack.c.h.b16 %v199
  %v779 = vunpack.c.l.b16 %v200
  %v780 = vunpack.c.h.b16 %v200
  %v781 = vunpack.c.l.b16 %v201
  %v782 = vunpack.c.h.b16 %v201
  %v783 = vunpack.c.l.b16 %v202
  %v784 = vunpack.c.h.b16 %v202
  %v785 = vunpack.c.l.b16 %v203
  %v786 = vunpack.c.h.b16 %v203
  %v787 = vpack.c.b16 %v415, %v403
  %v788 = vpack.c.b16 %v416, %v404
  %v789 = vpack.c.b16 %v417, %v405
  %v790 = vpack.c.b16 %v418, %v406
  %v791 = vpack.c.b16 %v419, %v407
  %v792 = vpack.c.b16 %v420, %v408
  %v793 = vpack.c.b16 %v421, %v409
  %v794 = vpack.c.b16 %v422, %v410
  %v795 = vpack.c.b16 %v423, %v411
  %v796 = vpack.c.b16 %v424, %v412
  %v797 = vpack.c.b16 %v425, %v413
  %v798 = vpack.c.b16 %v426, %v414
  %v799 = vpack.c.b16 %v439, %v427
  %v800 = vpack.c.b16 %v440, %v428
  %v801 = vpack.c.b16 %v441, %v429
  %v802 = vpack.c.b16 %v442, %v430
  %v803 = vpack.c.b16 %v443, %v431
  %v804 = vpack.c.b16 %v444, %v432
  %v805 = vpack.c.b16 %v445, %v433
  %v806 = vpack.c.b16 %v446, %v434
  %v807 = vpack.c.b16 %v447, %v435
  %v808 = vpack.c.b16 %v448, %v436
  %v809 = vpack.c.b16 %v449, %v437
  %v810 = vpack.c.b16 %v450, %v438
  %v811 = vpack.c.b16 %v463, %v451
  %v812 = vpack.c.b16 %v464, %v452
  %v813 = vpack.c.b16 %v465, %v453
  %v814 = vpack.c.b16 %v466, %v454
  %v815 = vpack.c.b16 %v467, %v455
  %v816 = vpack.c.b16 %v468, %v456
  %v817 = vpack.c.b16 %v469, %v457
  %v818 = vpack.c.b16 %v470, %v458
  %v819 = vpack.c.b16 %v471, %v459
  %v820 = vpack.c.b16 %v472, %v460
  %v821 = vpack.c.b16 %v473, %v461
  %v822 = vpack.c.b16 %v474, %v462
  %v823 = vpack.c.b16 %v487, %v475
  %v824 = vpack.c.b16 %v488, %v476
  %v825 = vpack.c.b16 %v489, %v477
  %v826 = vpack.c.b16 %v490, %v478
  %v827 = vpack.c.b16 %v491, %v479
  %v828 = vpack.c.b16 %v492, %v480
  %v829 = vpack.c.b16 %v493, %v481
  %v830 = vpack.c.b16 %v494, %v482
  %v831 = vpack.c.b16 %v495, %v483
  %v832 = vpack.c.b16 %v496, %v484
  %v833 = vpack.c.b16 %v497, %v485
  %v834 = vpack.c.b16 %v498, %v486
  %v835 = vpack.c.b16 %v511, %v499
  %v836 = vpack.c.b16 %v512, %v500
  %v837 = vpack.c.b16 %v513, %v501
  %v838 = vpack.c.b16 %v514, %v502
  %v839 = vpack.c.b16 %v515, %v503
  %v840 = vpack.c.b16 %v516, %v504
  %v841 = vpack.c.b16 %v517, %v505
  %v842 = vpack.c.b16 %v518, %v506
  %v843 = vpack.c.b16 %v519, %v507
  %v844 = vpack.c.b16 %v520, %v508
  %v845 = vpack.c.b16 %v521, %v509
  %v846 = vpack.c.b16 %v522, %v510
  %v847 = vpack.c.b16 %v535, %v523
  %v848 = vpack.c.b16 %v536, %v524
  %v849 = vpack.c.b16 %v537, %v525
  %v850 = vpack.c.b16 %v538, %v526
  %v851 = vpack.c.b16 %v539, %v527
  %v852 = vpack.c.b16 %v540, %v528
  %v853 = vpack.c.b16 %v541, %v529
  %v854 = vpack.c.b16 %v542, %v530
  %v855 = vpack.c.b16 %v543, %v531
  %v856 = vpack.c.b16 %v544, %v532
  %v857 = vpack.c.b16 %v545, %v533
  %v858 = vpack.c.b16 %v546, %v534
  %v859 = vpack.c.b16 %v559, %v547
  %v860 = vpack.c.b16 %v560, %v548
  %v861 = vpack.c.b16 %v561, %v549
  %v862 = vpack.c.b16 %v562, %v550
  %v863 = vpack.c.b16 %v563, %v551
  %v864 = vpack.c.b16 %v564, %v552
  %v865 = vpack.c.b16 %v565, %v553
  %v866 = vpack.c.b16 %v566, %v554
  %v867 = vpack.c.b16 %v567, %v555
  %v868 = vpack.c.b16 %v568, %v556
  %v869 = vpack.c.b16 %v569, %v557
  %v870 = vpack.c.b16 %v570, %v558
  %v871 = vpack.c.b16 %v583, %v571
  %v872 = vpack.c.b16 %v584, %v572
  %v873 = vpack.c.b16 %v585, %v573
  %v874 = vpack.c.b16 %v586, %v574
  %v875 = vpack.c.b16 %v587, %v575
  %v876 = vpack.c.b16 %v588, %v576
  %v877 = vpack.c.b16 %v589, %v577
  %v878 = vpack.c.b16 %v590, %v578
  %v879 = vpack.c.b16 %v591, %v579
  %v880 = vpack.c.b16 %v592, %v580
  %v881 = vpack.c.b16 %v593, %v581
  %v882 = vpack.c.b16 %v594, %v582
  %v883 = vpack.c.b16 %v607, %v595
  %v884 = vpack.c.b16 %v608, %v596
  %v885 = vpack.c.b16 %v609, %v597
  %v886 = vpack.c.b16 %v610, %v598
  %v887 = vpack.c.b16 %v611, %v599
  %v888 = vpack.c.b16 %v612, %v600
  %v889 = vpack.c.b16 %v613, %v601
  %v890 = vpack.c.b16 %v614, %v602
  %v891 = vpack.c.b16 %v615, %v603
  %v892 = vpack.c.b16 %v616, %v604
  %v893 = vpack.c.b16 %v617, %v605
  %v894 = vpack.c.b16 %v618, %v606
  %v895 = vpack.c.b16 %v631, %v619
  %v896 = vpack.c.b16 %v632, %v620
  %v897 = vpack.c.b16 %v633, %v621
  %v898 = vpack.c.b16 %v634, %v622
  %v899 = vpack.c.b16 %v635, %v623
  %v900 = vpack.c.b16 %v636, %v624
  %v901 = vpack.c.b16 %v637, %v625
  %v902 = vpack.c.b16 %v638, %v626
  %v903 = vpack.c.b16 %v639, %v627
  %v904 = vpack.c.b16 %v640, %v628
  %v905 = vpack.c.b16 %v641, %v629
  %v906 = vpack.c.b16 %v642, %v630
  %v907 = vpack.c.b16 %v655, %v643
  %v908 = vpack.c.b16 %v656, %v644
  %v909 = vpack.c.b16 %v657, %v645
  %v910 = vpack.c.b16 %v658, %v646
  %v911 = vpack.c.b16 %v659, %v647
  %v912 = vpack.c.b16 %v660, %v648
  %v913 = vpack.c.b16 %v661, %v649
  %v914 = vpack.c.b16 %v662, %v650
  %v915 = vpack.c.b16 %v663, %v651
  %v916 = vpack.c.b16 %v664, %v652
  %v917 = vpack.c.b16 %v665, %v653
  %v918 = vpack.c.b16 %v666, %v654
  %v919 = vpack.c.b16 %v679, %v667
  %v920 = vpack.c.b16 %v680, %v668
  %v921 = vpack.c.b16 %v681, %v669
  %v922 = vpack.c.b16 %v682, %v670
  %v923 = vpack.c.b16 %v683, %v671
  %v924 = vpack.c.b16 %v684, %v672
  %v925 = vpack.c.b16 %v685, %v673
  %v926 = vpack.c.b16 %v686, %v674
  %v927 = vpack.c.b16 %v687, %v675
  %v928 = vpack.c.b16 %v688, %v676
  %v929 = vpack.c.b16 %v689, %v677
  %v930 = vpack.c.b16 %v690, %v678
  %v931 = vpack.c.b16 %v703, %v691
  %v932 = vpack.c.b16 %v704, %v692
  %v933 = vpack.c.b16 %v705, %v693
  %v934 = vpack.c.b16 %v706, %v694
  %v935 = vpack.c.b16 %v707, %v695
  %v936 = vpack.c.b16 %v708, %v696
  %v937 = vpack.c.b16 %v709, %v697
  %v938 = vpack.c.b16 %v710, %v698
  %v939 = vpack.c.b16 %v711, %v699
  %v940 = vpack.c.b16 %v712, %v700
  %v941 = vpack.c.b16 %v713, %v701
  %v942 = vpack.c.b16 %v714, %v702
  %v943 = vpack.c.b16 %v727, %v715
  %v944 = vpack.c.b16 %v728, %v716
  %v945 = vpack.c.b16 %v729, %v717
  %v946 = vpack.c.b16 %v730, %v718
  %v947 = vpack.c.b16 %v731, %v719
  %v948 = vpack.c.b16 %v732, %v720
  %v949 = vpack.c.b16 %v733, %v721
  %v950 = vpack.c.b16 %v734, %v722
  %v951 = vpack.c.b16 %v735, %v723
  %v952 = vpack.c.b16 %v736, %v724
  %v953 = vpack.c.b16 %v737, %v725
  %v954 = vpack.c.b16 %v738, %v726
  %v955 = vpack.c.b16 %v751, %v739
  %v956 = vpack.c.b16 %v752, %v740
  %v957 = vpack.c.b16 %v753, %v741
  %v958 = vpack.c.b16 %v754, %v742
  %v959 = vpack.c.b16 %v755, %v743
  %v960 = vpack.c.b16 %v756, %v744
  %v961 = vpack.c.b16 %v757, %v745
  %v962 = vpack.c.b16 %v758, %v746
  %v963 = vpack.c.b16 %v759, %v747
  %v964 = vpack.c.b16 %v760, %v748
  %v965 = vpack.c.b16 %v761, %v749
  %v966 = vpack.c.b16 %v762, %v750
  %v967 = vpack.c.b16 %v775, %v763
  %v968 = vpack.c.b16 %v776, %v764
  %v969 = vpack.c.b16 %v777, %v765
  %v970 = vpack.c.b16 %v778, %v766
  %v971 = vpack.c.b16 %v779, %v767
  %v972 = vpack.c.b16 %v780, %v768
  %v973 = vpack.c.b16 %v781, %v769
  %v974 = vpack.c.b16 %v782, %v770
  %v975 = vpack.c.b16 %v783, %v771
  %v976 = vpack.c.b16 %v784, %v772
  %v977 = vpack.c.b16 %v785, %v773
  %v978 = vpack.c.b16 %v786, %v774
  %1171 = vmatprep.subr.bf16.mxu0 %v872
  %1172 = vmatpush1.bf16.msra.mxu0 %v871
  %1173 = vmatprep.subr.bf16.mxu0 %v860
  %1174 = vmatpush1.bf16.msra.mxu0 %v859
  %1175 = vmatprep.subr.bf16.mxu0 %v848
  %1176 = vmatpush1.bf16.msra.mxu0 %v847
  %1177 = vmatprep.subr.bf16.mxu0 %v836
  %1178 = vmatpush1.bf16.msra.mxu0 %v835
  %1179 = vmatprep.subr.bf16.mxu0 %v824
  %1180 = vmatpush1.bf16.msra.mxu0 %v823
  %1181 = vmatprep.subr.bf16.mxu0 %v812
  %1182 = vmatpush1.bf16.msra.mxu0 %v811
  %1183 = vmatprep.subr.bf16.mxu0 %v800
  %1184 = vmatpush1.bf16.msra.mxu0 %v799
  %1185 = vmatprep.subr.bf16.mxu0 %v788
  %1186 = vmatpush1.bf16.msra.mxu0 %v787
  %1187 = vmatprep.subr.bf16.mxu0 %v968
  %1188 = vmatpush2.bf16.msra.mxu0 %v967
  %1189 = vmatprep.subr.bf16.mxu0 %v956
  %1190 = vmatpush2.bf16.msra.mxu0 %v955
  %1191 = vmatprep.subr.bf16.mxu0 %v944
  %1192 = vmatpush2.bf16.msra.mxu0 %v943
  %1193 = vmatprep.subr.bf16.mxu0 %v932
  %1194 = vmatpush2.bf16.msra.mxu0 %v931
  %1195 = vmatprep.subr.bf16.mxu0 %v920
  %1196 = vmatpush2.bf16.msra.mxu0 %v919
  %1197 = vmatprep.subr.bf16.mxu0 %v908
  %1198 = vmatpush2.bf16.msra.mxu0 %v907
  %1199 = vmatprep.subr.bf16.mxu0 %v896
  %1200 = vmatpush2.bf16.msra.mxu0 %v895
  %1201 = vmatprep.subr.bf16.mxu0 %v884
  %1202 = vmatpush2.bf16.msra.mxu0 %v883
  %1203 = vmatprep.mubr.bf16.mxu0 %v208
  %1204 = vmatmul.mubr.bf16.gmra.mxu0 %v207
  %v1205 = vpop.f32.mrf.mxu0
  %v1206 = vadd.f32 0.0, %v1205
  %v1207 = vpop.f32.mrf.mxu0
  %v1208 = vadd.f32 0.0, %v1207
  %v1209 = vpop.f32.mrf.mxu0
  %v1210 = vpop.f32.mrf.mxu0
  %1211 = vdwg.mxu0
  %1212 = vmatprep.subr.bf16.mxu0 %v874
  %1213 = vmatpush1.bf16.msra.mxu0 %v873
  %1214 = vmatprep.subr.bf16.mxu0 %v862
  %1215 = vmatpush1.bf16.msra.mxu0 %v861
  %1216 = vmatprep.subr.bf16.mxu0 %v850
  %1217 = vmatpush1.bf16.msra.mxu0 %v849
  %1218 = vmatprep.subr.bf16.mxu0 %v838
  %1219 = vmatpush1.bf16.msra.mxu0 %v837
  %1220 = vmatprep.subr.bf16.mxu0 %v826
  %1221 = vmatpush1.bf16.msra.mxu0 %v825
  %1222 = vmatprep.subr.bf16.mxu0 %v814
  %1223 = vmatpush1.bf16.msra.mxu0 %v813
  %1224 = vmatprep.subr.bf16.mxu0 %v802
  %1225 = vmatpush1.bf16.msra.mxu0 %v801
  %1226 = vmatprep.subr.bf16.mxu0 %v790
  %1227 = vmatpush1.bf16.msra.mxu0 %v789
  %1228 = vmatprep.subr.bf16.mxu0 %v970
  %1229 = vmatpush2.bf16.msra.mxu0 %v969
  %1230 = vmatprep.subr.bf16.mxu0 %v958
  %1231 = vmatpush2.bf16.msra.mxu0 %v957
  %1232 = vmatprep.subr.bf16.mxu0 %v946
  %1233 = vmatpush2.bf16.msra.mxu0 %v945
  %1234 = vmatprep.subr.bf16.mxu0 %v934
  %1235 = vmatpush2.bf16.msra.mxu0 %v933
  %1236 = vmatprep.subr.bf16.mxu0 %v922
  %1237 = vmatpush2.bf16.msra.mxu0 %v921
  %1238 = vmatprep.subr.bf16.mxu0 %v910
  %1239 = vmatpush2.bf16.msra.mxu0 %v909
  %1240 = vmatprep.subr.bf16.mxu0 %v898
  %1241 = vmatpush2.bf16.msra.mxu0 %v897
  %1242 = vmatprep.subr.bf16.mxu0 %v886
  %1243 = vmatpush2.bf16.msra.mxu0 %v885
  %1244 = vmatprep.mubr.bf16.mxu0 %v208
  %1245 = vmatmul.mubr.bf16.gmra.mxu0 %v207
  %v1246 = vpop.f32.mrf.mxu0
  %v1247 = vadd.f32 0.0, %v1246
  %v1248 = vpop.f32.mrf.mxu0
  %v1249 = vadd.f32 0.0, %v1248
  %v1250 = vpop.f32.mrf.mxu0
  %v1251 = vpop.f32.mrf.mxu0
  %1252 = vdwg.mxu0
  %1253 = vmatprep.subr.bf16.mxu0 %v876
  %1254 = vmatpush1.bf16.msra.mxu0 %v875
  %1255 = vmatprep.subr.bf16.mxu0 %v864
  %1256 = vmatpush1.bf16.msra.mxu0 %v863
  %1257 = vmatprep.subr.bf16.mxu0 %v852
  %1258 = vmatpush1.bf16.msra.mxu0 %v851
  %1259 = vmatprep.subr.bf16.mxu0 %v840
  %1260 = vmatpush1.bf16.msra.mxu0 %v839
  %1261 = vmatprep.subr.bf16.mxu0 %v828
  %1262 = vmatpush1.bf16.msra.mxu0 %v827
  %1263 = vmatprep.subr.bf16.mxu0 %v816
  %1264 = vmatpush1.bf16.msra.mxu0 %v815
  %1265 = vmatprep.subr.bf16.mxu0 %v804
  %1266 = vmatpush1.bf16.msra.mxu0 %v803
  %1267 = vmatprep.subr.bf16.mxu0 %v792
  %1268 = vmatpush1.bf16.msra.mxu0 %v791
  %1269 = vmatprep.subr.bf16.mxu0 %v972
  %1270 = vmatpush2.bf16.msra.mxu0 %v971
  %1271 = vmatprep.subr.bf16.mxu0 %v960
  %1272 = vmatpush2.bf16.msra.mxu0 %v959
  %1273 = vmatprep.subr.bf16.mxu0 %v948
  %1274 = vmatpush2.bf16.msra.mxu0 %v947
  %1275 = vmatprep.subr.bf16.mxu0 %v936
  %1276 = vmatpush2.bf16.msra.mxu0 %v935
  %1277 = vmatprep.subr.bf16.mxu0 %v924
  %1278 = vmatpush2.bf16.msra.mxu0 %v923
  %1279 = vmatprep.subr.bf16.mxu0 %v912
  %1280 = vmatpush2.bf16.msra.mxu0 %v911
  %1281 = vmatprep.subr.bf16.mxu0 %v900
  %1282 = vmatpush2.bf16.msra.mxu0 %v899
  %1283 = vmatprep.subr.bf16.mxu0 %v888
  %1284 = vmatpush2.bf16.msra.mxu0 %v887
  %1285 = vmatprep.mubr.bf16.mxu0 %v208
  %1286 = vmatmul.mubr.bf16.gmra.mxu0 %v207
  %v1287 = vpop.f32.mrf.mxu0
  %v1288 = vadd.f32 0.0, %v1287
  %v1289 = vpop.f32.mrf.mxu0
  %v1290 = vadd.f32 0.0, %v1289
  %v1291 = vpop.f32.mrf.mxu0
  %v1292 = vpop.f32.mrf.mxu0
  %1293 = vdwg.mxu0
  %1294 = vmatprep.subr.bf16.mxu0 %v878
  %1295 = vmatpush1.bf16.msra.mxu0 %v877
  %1296 = vmatprep.subr.bf16.mxu0 %v866
  %1297 = vmatpush1.bf16.msra.mxu0 %v865
  %1298 = vmatprep.subr.bf16.mxu0 %v854
  %1299 = vmatpush1.bf16.msra.mxu0 %v853
  %1300 = vmatprep.subr.bf16.mxu0 %v842
  %1301 = vmatpush1.bf16.msra.mxu0 %v841
  %1302 = vmatprep.subr.bf16.mxu0 %v830
  %1303 = vmatpush1.bf16.msra.mxu0 %v829
  %1304 = vmatprep.subr.bf16.mxu0 %v818
  %1305 = vmatpush1.bf16.msra.mxu0 %v817
  %1306 = vmatprep.subr.bf16.mxu0 %v806
  %1307 = vmatpush1.bf16.msra.mxu0 %v805
  %1308 = vmatprep.subr.bf16.mxu0 %v794
  %1309 = vmatpush1.bf16.msra.mxu0 %v793
  %1310 = vmatprep.subr.bf16.mxu0 %v974
  %1311 = vmatpush2.bf16.msra.mxu0 %v973
  %1312 = vmatprep.subr.bf16.mxu0 %v962
  %1313 = vmatpush2.bf16.msra.mxu0 %v961
  %1314 = vmatprep.subr.bf16.mxu0 %v950
  %1315 = vmatpush2.bf16.msra.mxu0 %v949
  %1316 = vmatprep.subr.bf16.mxu0 %v938
  %1317 = vmatpush2.bf16.msra.mxu0 %v937
  %1318 = vmatprep.subr.bf16.mxu0 %v926
  %1319 = vmatpush2.bf16.msra.mxu0 %v925
  %1320 = vmatprep.subr.bf16.mxu0 %v914
  %1321 = vmatpush2.bf16.msra.mxu0 %v913
  %1322 = vmatprep.subr.bf16.mxu0 %v902
  %1323 = vmatpush2.bf16.msra.mxu0 %v901
  %1324 = vmatprep.subr.bf16.mxu0 %v890
  %1325 = vmatpush2.bf16.msra.mxu0 %v889
  %1326 = vmatprep.mubr.bf16.mxu0 %v208
  %1327 = vmatmul.mubr.bf16.gmra.mxu0 %v207
  %v1328 = vpop.f32.mrf.mxu0
  %v1329 = vadd.f32 0.0, %v1328
  %v1330 = vpop.f32.mrf.mxu0
  %v1331 = vadd.f32 0.0, %v1330
  %v1332 = vpop.f32.mrf.mxu0
  %v1333 = vpop.f32.mrf.mxu0
  %1334 = vdwg.mxu0
  %1335 = vmatprep.subr.bf16.mxu0 %v880
  %1336 = vmatpush1.bf16.msra.mxu0 %v879
  %1337 = vmatprep.subr.bf16.mxu0 %v868
  %1338 = vmatpush1.bf16.msra.mxu0 %v867
  %1339 = vmatprep.subr.bf16.mxu0 %v856
  %1340 = vmatpush1.bf16.msra.mxu0 %v855
  %1341 = vmatprep.subr.bf16.mxu0 %v844
  %1342 = vmatpush1.bf16.msra.mxu0 %v843
  %1343 = vmatprep.subr.bf16.mxu0 %v832
  %1344 = vmatpush1.bf16.msra.mxu0 %v831
  %1345 = vmatprep.subr.bf16.mxu0 %v820
  %1346 = vmatpush1.bf16.msra.mxu0 %v819
  %1347 = vmatprep.subr.bf16.mxu0 %v808
  %1348 = vmatpush1.bf16.msra.mxu0 %v807
  %1349 = vmatprep.subr.bf16.mxu0 %v796
  %1350 = vmatpush1.bf16.msra.mxu0 %v795
  %1351 = vmatprep.subr.bf16.mxu0 %v976
  %1352 = vmatpush2.bf16.msra.mxu0 %v975
  %1353 = vmatprep.subr.bf16.mxu0 %v964
  %1354 = vmatpush2.bf16.msra.mxu0 %v963
  %1355 = vmatprep.subr.bf16.mxu0 %v952
  %1356 = vmatpush2.bf16.msra.mxu0 %v951
  %1357 = vmatprep.subr.bf16.mxu0 %v940
  %1358 = vmatpush2.bf16.msra.mxu0 %v939
  %1359 = vmatprep.subr.bf16.mxu0 %v928
  %1360 = vmatpush2.bf16.msra.mxu0 %v927
  %1361 = vmatprep.subr.bf16.mxu0 %v916
  %1362 = vmatpush2.bf16.msra.mxu0 %v915
  %1363 = vmatprep.subr.bf16.mxu0 %v904
  %1364 = vmatpush2.bf16.msra.mxu0 %v903
  %1365 = vmatprep.subr.bf16.mxu0 %v892
  %1366 = vmatpush2.bf16.msra.mxu0 %v891
  %1367 = vmatprep.mubr.bf16.mxu0 %v208
  %1368 = vmatmul.mubr.bf16.gmra.mxu0 %v207
  %v1369 = vpop.f32.mrf.mxu0
  %v1370 = vadd.f32 0.0, %v1369
  %v1371 = vpop.f32.mrf.mxu0
  %v1372 = vadd.f32 0.0, %v1371
  %v1373 = vpop.f32.mrf.mxu0
  %v1374 = vpop.f32.mrf.mxu0
  %1375 = vdwg.mxu0
  %1376 = vmatprep.subr.bf16.mxu0 %v882
  %1377 = vmatpush1.bf16.msra.mxu0 %v881
  %1378 = vmatprep.subr.bf16.mxu0 %v870
  %1379 = vmatpush1.bf16.msra.mxu0 %v869
  %1380 = vmatprep.subr.bf16.mxu0 %v858
  %1381 = vmatpush1.bf16.msra.mxu0 %v857
  %1382 = vmatprep.subr.bf16.mxu0 %v846
  %1383 = vmatpush1.bf16.msra.mxu0 %v845
  %1384 = vmatprep.subr.bf16.mxu0 %v834
  %1385 = vmatpush1.bf16.msra.mxu0 %v833
  %1386 = vmatprep.subr.bf16.mxu0 %v822
  %1387 = vmatpush1.bf16.msra.mxu0 %v821
  %1388 = vmatprep.subr.bf16.mxu0 %v810
  %1389 = vmatpush1.bf16.msra.mxu0 %v809
  %1390 = vmatprep.subr.bf16.mxu0 %v798
  %1391 = vmatpush1.bf16.msra.mxu0 %v797
  %1392 = vmatprep.subr.bf16.mxu0 %v978
  %1393 = vmatpush2.bf16.msra.mxu0 %v977
  %1394 = vmatprep.subr.bf16.mxu0 %v966
  %1395 = vmatpush2.bf16.msra.mxu0 %v965
  %1396 = vmatprep.subr.bf16.mxu0 %v954
  %1397 = vmatpush2.bf16.msra.mxu0 %v953
  %1398 = vmatprep.subr.bf16.mxu0 %v942
  %1399 = vmatpush2.bf16.msra.mxu0 %v941
  %1400 = vmatprep.subr.bf16.mxu0 %v930
  %1401 = vmatpush2.bf16.msra.mxu0 %v929
  %1402 = vmatprep.subr.bf16.mxu0 %v918
  %1403 = vmatpush2.bf16.msra.mxu0 %v917
  %1404 = vmatprep.subr.bf16.mxu0 %v906
  %1405 = vmatpush2.bf16.msra.mxu0 %v905
  %1406 = vmatprep.subr.bf16.mxu0 %v894
  %1407 = vmatpush2.bf16.msra.mxu0 %v893
  %1408 = vmatprep.mubr.bf16.mxu0 %v208
  %1409 = vmatmul.mubr.bf16.gmra.mxu0 %v207
  %v1410 = vpop.f32.mrf.mxu0
  %v1411 = vadd.f32 0.0, %v1410
  %v1412 = vpop.f32.mrf.mxu0
  %v1413 = vadd.f32 0.0, %v1412
  %v1414 = vpop.f32.mrf.mxu0
  %v1415 = vpop.f32.mrf.mxu0
  %1416 = vdwg.mxu0
  %v1417 = vmax.f32 %v1206, 0.0
  %v1418 = vmax.f32 %v1208, 0.0
  %v1419 = vmax.f32 %v1247, 0.0
  %v1420 = vmax.f32 %v1249, 0.0
  %v1421 = vmax.f32 %v1288, 0.0
  %v1422 = vmax.f32 %v1290, 0.0
  %v1423 = vmax.f32 %v1329, 0.0
  %v1424 = vmax.f32 %v1331, 0.0
  %v1425 = vmax.f32 %v1370, 0.0
  %v1426 = vmax.f32 %v1372, 0.0
  %v1427 = vmax.f32 %v1411, 0.0
  %v1428 = vmax.f32 %v1413, 0.0
  %1429 = vst [vmem:[%s2] sm:$0xff] %v1417
  %1430 = vst [vmem:[%s2 + $0x8] sm:$0xff] %v1418
  %1431 = vst [vmem:[%s2 + $0x10] sm:$0xff] %v1419
  %1432 = vst [vmem:[%s2 + $0x18] sm:$0xff] %v1420
  %1433 = vst [vmem:[%s2 + $0x20] sm:$0xff] %v1421
  %1434 = vst [vmem:[%s2 + $0x28] sm:$0xff] %v1422
  %1435 = vst [vmem:[%s2 + $0x30] sm:$0xff] %v1423
  %1436 = vst [vmem:[%s2 + $0x38] sm:$0xff] %v1424
  %1437 = vst [vmem:[%s2 + $0x40] sm:$0xff] %v1425
  %1438 = vst [vmem:[%s2 + $0x48] sm:$0xff] %v1426
  %1439 = vst [vmem:[%s2 + $0x50] sm:$0xff] %v1427
  %1440 = vst [vmem:[%s2 + $0x58] sm:$0xff] %v1428
  // Predicated region
  $region10: #{generator2_forward.11} parent=0 // pred_check
    _
  $region11: #{generator2_forward.11} parent=0 // pred_check_branch
    %1442 = sbr.rel (0) target = $region13
  $region12: #{generator2_forward.11} parent=0 // pred_region
    _
  $region13: #{generator2_forward.11} parent=0 // pred_fallthru
    _
  // Predicated region
  $region14: #{generator2_forward.11} parent=0 // pred_check
    _
  $region15: #{generator2_forward.11} parent=0 // pred_check_branch
    %1444 = sbr.rel (0) target = $region17
  $region16: #{generator2_forward.11} parent=0 // pred_region
    _
  $region17: #{generator2_forward.11} parent=0 // pred_fallthru
    _

</llo_original>
